<compile_context>
chip_gen: v5e
topology: v5e:2x2
jax: 0.10.0
libtpu: 0.0.40
codegen_flags: <defaults>
</compile_context>

<pallas_src>
import functools

import jax
import jax.numpy as jnp
import numpy as np
from jax.experimental import pallas as pl
from jax.experimental.pallas import tpu as pltpu


# ---------------------------------------------------------------------------
# Fused kernel (one image per grid step)
# ---------------------------------------------------------------------------

def _fused_kernel(H2, W2, Cin, C1,
                  z1_ref, w1_ref, w2_ref, w3_ref, pp_ref, r_ref, ct_ref,
                  o_ref, z2_ref):
    """conv1+BN+ReLU -> conv2+BN+ReLU -> var_layer -> bilinear, all in VMEM.

    z1_ref: (4, H2+1, W2+1, 4*Cin) parity-split space-to-depth of padded x
    w1_ref: (4, 4*Cin, C1)         conv1 weight, one matrix per 2x2 tap
    w2_ref: (16*C1, C1)            conv2 weight, fat-K (tap-major) layout
    w3_ref: (C1, C1)               var_layer 1x1 conv weight
    pp_ref: (9, C1)                rows: s1,b1,s2,b2,cb3,s3,t3,w4,[cb4,0..]
    r_ref:  (H, H2)  ct_ref: (W2, W)   bilinear interpolation matrices
    o_ref:  (1, H, W)              output variance map
    z2_ref: (H2+1, W2+1, 4*C1)     VMEM scratch: s2d layout of padded y1
    """
    f32 = jnp.float32
    s1, b1 = pp_ref[0:1, :], pp_ref[1:2, :]
    s2, b2 = pp_ref[2:3, :], pp_ref[3:4, :]
    cb3, s3, t3 = pp_ref[4:5, :], pp_ref[5:6, :], pp_ref[6:7, :]
    w4 = pp_ref[7:8, :]
    cb4 = pp_ref[8:9, 0:1]

    # Zero the scratch so the 1-element halo of the s2d layout is 0 (re-done
    # every step: scratch is per-core-persistent under "parallel" semantics).
    z2_ref[...] = jnp.zeros(z2_ref.shape, f32)

    # ---- conv1(s=2,p=1) + BN1 + ReLU, one output-parity class (a,b) at a
    # time, written straight into the padded s2d layout conv2 consumes. -----
    for a in (0, 1):
        for b in (0, 1):
            acc = jnp.zeros((H2 * W2, C1), f32)
            for di in (0, 1):
                for dj in (0, 1):
                    rp, rs = (a + di) % 2, (a + di) // 2
                    cp, cs = (b + dj) % 2, (b + dj) // 2
                    blk = z1_ref[rp * 2 + cp, rs:rs + H2, cs:cs + W2, :]
                    acc = acc + jnp.dot(blk.reshape(H2 * W2, 4 * Cin),
                                        w1_ref[di * 2 + dj],
                                        preferred_element_type=f32)
            y = jnp.maximum(acc * s1 + b1, 0.0).reshape(H2, W2, C1)
            sub = (1 - a) * 2 + (1 - b)
            z2_ref[a:a + H2, b:b + W2, sub * C1:(sub + 1) * C1] = y

    # ---- conv2(s=2,p=1) + BN2 + ReLU: single fat-K (16*C1) MXU matmul -----
    taps = [z2_ref[di:di + H2, dj:dj + W2, :].reshape(H2 * W2, 4 * C1)
            for di in (0, 1) for dj in (0, 1)]
    y2 = jnp.dot(jnp.concatenate(taps, axis=-1), w2_ref[...],
                 preferred_element_type=f32)
    y2 = jnp.maximum(y2 * s2 + b2, 0.0)                        # (H2*W2, C1)

    # ---- var_layer: 1x1 conv(+bias) -> BN -> ReLU -> 1x1 conv (1 channel) --
    h = jnp.dot(y2, w3_ref[...], preferred_element_type=f32) + cb3
    h = jnp.maximum(h * s3 + t3, 0.0)                          # (H2*W2, C1)
    # final 1-channel conv as VPU multiply + lane reduction (no N=1 MXU dot);
    # result is already (H2, W2) so nothing lane-sparse is ever materialized.
    v = jnp.sum(h.reshape(H2, W2, C1) * w4, axis=-1) + cb4     # (H2, W2)

    # ---- bilinear upsample (align_corners=True): out = R @ V @ C^T ---------
    t = jnp.dot(r_ref[...], v, preferred_element_type=f32)     # (H, W2)
    o_ref[0] = jnp.dot(t, ct_ref[...],
                       preferred_element_type=f32).astype(o_ref.dtype)


# ---------------------------------------------------------------------------
# Host-side layout / parameter helpers
# ---------------------------------------------------------------------------

def _conv_s2_weight(w_oihw):
    """OIHW 3x3 weight -> (4, 4*Cin, Cout) matching the s2d tap layout."""
    w = np.asarray(w_oihw)
    Cout, Cin, _, _ = w.shape
    w_khwc = np.transpose(w, (2, 3, 1, 0))           # (dy, dx, Cin, Cout)
    wz = np.zeros((4, 4, Cin, Cout), np.float32)     # (tap, sub-pos, Cin, Cout)
    for di in (0, 1):
        for dj in (0, 1):
            for a in (0, 1):
                for b in (0, 1):
                    dy, dx = 2 * di + a, 2 * dj + b
                    if dy < 3 and dx < 3:
                        wz[di * 2 + dj, a * 2 + b] = w_khwc[dy, dx]
    return jnp.asarray(wz.reshape(4, 4 * Cin, Cout))


def _bilinear_matrix(out_size, in_size):
    """Interp matrix (out_size, in_size), bilinear with align_corners=True."""
    if in_size == 1:
        return jnp.ones((out_size, 1), jnp.float32)
    src = np.arange(out_size, dtype=np.float64) * (in_size - 1) / max(out_size - 1, 1)
    i0 = np.clip(np.floor(src).astype(np.int64), 0, in_size - 2)
    frac = (src - i0).astype(np.float32)
    m = np.zeros((out_size, in_size), np.float32)
    m[np.arange(out_size), i0] += 1.0 - frac
    m[np.arange(out_size), i0 + 1] += frac
    return jnp.asarray(m)


# ---------------------------------------------------------------------------
# Forward pass
# ---------------------------------------------------------------------------

@jax.jit
def aleatoric_net_pallas(x_nchw, params):
    N, Cin, H, W = x_nchw.shape
    assert H % 4 == 0 and W % 4 == 0, "two stride-2 convs need H, W % 4 == 0"
    H2, W2 = H // 4, W // 4
    C1 = params["w3"].shape[0]

    # One fused layout pass (XLA): NCHW -> padded NHWC -> parity-split s2d.
    # z1p[n*4 + rp*2 + cp, k, l, (a*2+b)*Cin + c] = xpad[n, 2*(2k+rp)+a, 2*(2l+cp)+b, c]
    x_nhwc = jnp.transpose(x_nchw, (0, 2, 3, 1))
    xp = jnp.pad(x_nhwc, ((0, 0), (1, 3), (1, 3), (0, 0)))
    z1p = xp.reshape(N, H2 + 1, 2, 2, W2 + 1, 2, 2, Cin)
    z1p = jnp.transpose(z1p, (0, 2, 5, 1, 4, 3, 6, 7))
    z1p = z1p.reshape(N * 4, H2 + 1, W2 + 1, 4 * Cin)

    r_mat = _bilinear_matrix(H, H2)                  # (H, H2)
    ct_mat = _bilinear_matrix(W, W2).T               # (W2, W)

    out = pl.pallas_call(
        functools.partial(_fused_kernel, H2, W2, Cin, C1),
        out_shape=jax.ShapeDtypeStruct((N, H, W), jnp.float32),
        grid_spec=pltpu.PrefetchScalarGridSpec(
            num_scalar_prefetch=0,
            grid=(N,),
            in_specs=[
                pl.BlockSpec((4, H2 + 1, W2 + 1, 4 * Cin), lambda n: (n, 0, 0, 0)),
                pl.BlockSpec((4, 4 * Cin, C1), lambda n: (0, 0, 0)),
                pl.BlockSpec((16 * C1, C1), lambda n: (0, 0)),
                pl.BlockSpec((C1, C1), lambda n: (0, 0)),
                pl.BlockSpec((9, C1), lambda n: (0, 0)),
                pl.BlockSpec((H, H2), lambda n: (0, 0)),
                pl.BlockSpec((W2, W), lambda n: (0, 0)),
            ],
            out_specs=pl.BlockSpec((1, H, W), lambda n: (n, 0, 0)),
            scratch_shapes=[pltpu.VMEM((H2 + 1, W2 + 1, 4 * C1), jnp.float32)],
        ),
        compiler_params=pltpu.CompilerParams(
            dimension_semantics=("parallel",),
            vmem_limit_bytes=48 * 1024 * 1024,
        ),
    )(z1p, params["w1"], params["w2"], params["w3"], params["pp"],
      r_mat, ct_mat)

    return out.reshape(N, 1, H, W)


# ---------------------------------------------------------------------------
# Pure-JAX reference (NCHW / OIHW lax convs, gather-based bilinear)
# ---------------------------------------------------------------------------

def _bilinear_upsample_ref(x, out_h, out_w):
    """Matches F.interpolate(mode='bilinear', align_corners=True)."""
    n, c, h, w = x.shape

    def coords(out_size, in_size):
        src = np.arange(out_size, dtype=np.float64) * (in_size - 1) / max(out_size - 1, 1)
        i0 = np.clip(np.floor(src).astype(np.int64), 0, in_size - 2)
        return jnp.asarray(i0), jnp.asarray((src - i0).astype(np.float32))

    y0, wy = coords(out_h, h)
    x0, wx = coords(out_w, w)
    wy = wy[None, None, :, None]
    wx = wx[None, None, None, :]

    def g(yy, xx):
        return x[:, :, yy, :][:, :, :, xx]

    return ((1 - wy) * (1 - wx) * g(y0, x0) + (1 - wy) * wx * g(y0, x0 + 1)
            + wy * (1 - wx) * g(y0 + 1, x0) + wy * wx * g(y0 + 1, x0 + 1))


def _reference(x, w1_oihw, s1, b1, w2_oihw, s2, b2,
               w3_oihw, cb3, s3, t3, w4_oihw, cb4):
    def conv(v, w, stride, pad):
        return jax.lax.conv_general_dilated(
            v, w, window_strides=(stride, stride),
            padding=((pad, pad), (pad, pad)),
            dimension_numbers=("NCHW", "OIHW", "NCHW"))

    def bn(v, s, b):
        return v * s.reshape(1, -1, 1, 1) + b.reshape(1, -1, 1, 1)

    _, _, H, W = x.shape
    h = jax.nn.relu(bn(conv(x, w1_oihw, 2, 1), s1, b1))
    h = jax.nn.relu(bn(conv(h, w2_oihw, 2, 1), s2, b2))
    h = conv(h, w3_oihw, 1, 0) + cb3.reshape(1, -1, 1, 1)
    h = jax.nn.relu(bn(h, s3, t3))
    v = conv(h, w4_oihw, 1, 0) + cb4.reshape(1, -1, 1, 1)
    return _bilinear_upsample_ref(v, H, W)


# ---------------------------------------------------------------------------

if __name__ == "__main__":
    # Small shapes consistent with the module: RGB input, 64-channel trunk,
    # two stride-2 convs, 1-channel variance head, upsample back to (H, W).
    N, Cin, H, W = 2, 3, 32, 32
    C1 = 64
    key = jax.random.PRNGKey(0)
    ks = jax.random.split(key, 13)

    x = jax.random.normal(ks[0], (N, Cin, H, W), jnp.float32)

    # Conv weights in PyTorch OIHW layout (conv1/conv2 have no bias).
    w1_oihw = jax.random.normal(ks[1], (C1, Cin, 3, 3), jnp.float32) * 0.1
    w2_oihw = jax.random.normal(ks[2], (C1, C1, 3, 3), jnp.float32) * 0.05
    # var_layer convs (bias=True). FINAL_CONV_KERNEL = 1 (standard HRNet cfg).
    w3_oihw = jax.random.normal(ks[3], (C1, C1, 1, 1), jnp.float32) * 0.05
    cb3 = 0.1 * jax.random.normal(ks[4], (C1,), jnp.float32)
    w4_oihw = jax.random.normal(ks[5], (1, C1, 1, 1), jnp.float32) * 0.1
    cb4 = 0.1 * jax.random.normal(ks[6], (1,), jnp.float32)

    # BatchNorm2d (inference form, running_mean=0, running_var=1) folded.
    eps = 1e-5

    def bn_fold(kg, kb, c):
        gamma = 1.0 + 0.1 * jax.random.normal(kg, (c,), jnp.float32)
        beta = 0.1 * jax.random.normal(kb, (c,), jnp.float32)
        scale = gamma / jnp.sqrt(jnp.float32(1.0 + eps))
        return scale, beta

    s1, b1 = bn_fold(ks[7], ks[8], C1)
    s2, b2 = bn_fold(ks[9], ks[10], C1)
    s3, t3 = bn_fold(ks[11], ks[12], C1)

    # Pack every per-channel vector + the w4 row + cb4 into one (9, C1) block.
    pp = jnp.zeros((9, C1), jnp.float32)
    pp = pp.at[0].set(s1).at[1].set(b1).at[2].set(s2).at[3].set(b2)
    pp = pp.at[4].set(cb3).at[5].set(s3).at[6].set(t3)
    pp = pp.at[7].set(w4_oihw.reshape(C1))
    pp = pp.at[8, 0].set(cb4[0])

    params = dict(
        w1=_conv_s2_weight(w1_oihw),                               # (4, 12, 64)
        w2=_conv_s2_weight(w2_oihw).reshape(16 * C1, C1),          # (1024, 64)
        w3=jnp.transpose(w3_oihw.reshape(C1, C1)),                 # (Cin, Cout)
        pp=pp,
    )

    out = aleatoric_net_pallas(x, params)
    out = jax.block_until_ready(out)

    ref = _reference(x, w1_oihw, s1, b1, w2_oihw, s2, b2,
                     w3_oihw, cb3, s3, t3, w4_oihw, cb4)
    np.testing.assert_allclose(np.asarray(out), np.asarray(ref),
                               rtol=1e-4, atol=1e-4)

    print("KERNEL_OK")
</pallas_src>

<mosaic_0001>
module attributes {stable_mosaic.version = 11 : i64} {
  func.func @_fused_kernel(%arg0: i32, %arg1: memref<4x9x9x12xf32, #tpu.memory_space<vmem>>, %arg2: memref<4x12x64xf32, #tpu.memory_space<vmem>>, %arg3: memref<1024x64xf32, #tpu.memory_space<vmem>>, %arg4: memref<64x64xf32, #tpu.memory_space<vmem>>, %arg5: memref<9x64xf32, #tpu.memory_space<vmem>>, %arg6: memref<32x8xf32, #tpu.memory_space<vmem>>, %arg7: memref<8x32xf32, #tpu.memory_space<vmem>>, %arg8: memref<1x32x32xf32, #tpu.memory_space<vmem>>, %arg9: memref<9x9x256xf32, #tpu.memory_space<vmem>>) attributes {dimension_semantics = [#tpu.dimension_semantics<parallel>], iteration_bounds = array<i64: 2>, scalar_prefetch = 0 : i64, scratch_operands = 1 : i64, tpu.core_type = #tpu.core_type<tc>, window_params = [{transform_indices = @transform_0, window_bounds = array<i64: 4, 9, 9, 12>}, {pipeline_mode = #tpu.pipeline_mode<synchronous>, transform_indices = @transform_1, window_bounds = array<i64: 4, 12, 64>}, {pipeline_mode = #tpu.pipeline_mode<synchronous>, transform_indices = @transform_2, window_bounds = array<i64: 1024, 64>}, {pipeline_mode = #tpu.pipeline_mode<synchronous>, transform_indices = @transform_3, window_bounds = array<i64: 64, 64>}, {pipeline_mode = #tpu.pipeline_mode<synchronous>, transform_indices = @transform_4, window_bounds = array<i64: 9, 64>}, {pipeline_mode = #tpu.pipeline_mode<synchronous>, transform_indices = @transform_5, window_bounds = array<i64: 32, 8>}, {pipeline_mode = #tpu.pipeline_mode<synchronous>, transform_indices = @transform_6, window_bounds = array<i64: 8, 32>}, {transform_indices = @transform_7, window_bounds = array<i64: 1, 32, 32>}]} {
    %c0 = arith.constant 0 : index
    %c0_0 = arith.constant 0 : index
    %0 = vector.load %arg5[%c0, %c0_0] : memref<9x64xf32, #tpu.memory_space<vmem>>, vector<1x64xf32>
    %c1 = arith.constant 1 : index
    %c0_1 = arith.constant 0 : index
    %1 = vector.load %arg5[%c1, %c0_1] : memref<9x64xf32, #tpu.memory_space<vmem>>, vector<1x64xf32>
    %c2 = arith.constant 2 : index
    %c0_2 = arith.constant 0 : index
    %2 = vector.load %arg5[%c2, %c0_2] : memref<9x64xf32, #tpu.memory_space<vmem>>, vector<1x64xf32>
    %c3 = arith.constant 3 : index
    %c0_3 = arith.constant 0 : index
    %3 = vector.load %arg5[%c3, %c0_3] : memref<9x64xf32, #tpu.memory_space<vmem>>, vector<1x64xf32>
    %c4 = arith.constant 4 : index
    %c0_4 = arith.constant 0 : index
    %4 = vector.load %arg5[%c4, %c0_4] : memref<9x64xf32, #tpu.memory_space<vmem>>, vector<1x64xf32>
    %c5 = arith.constant 5 : index
    %c0_5 = arith.constant 0 : index
    %5 = vector.load %arg5[%c5, %c0_5] : memref<9x64xf32, #tpu.memory_space<vmem>>, vector<1x64xf32>
    %c6 = arith.constant 6 : index
    %c0_6 = arith.constant 0 : index
    %6 = vector.load %arg5[%c6, %c0_6] : memref<9x64xf32, #tpu.memory_space<vmem>>, vector<1x64xf32>
    %c7 = arith.constant 7 : index
    %c0_7 = arith.constant 0 : index
    %7 = vector.load %arg5[%c7, %c0_7] : memref<9x64xf32, #tpu.memory_space<vmem>>, vector<1x64xf32>
    %c8 = arith.constant 8 : index
    %c0_8 = arith.constant 0 : index
    %8 = vector.load %arg5[%c8, %c0_8] : memref<9x64xf32, #tpu.memory_space<vmem>>, vector<1x1xf32>
    %cst = arith.constant 0.000000e+00 : f32
    %9 = vector.broadcast %cst : f32 to vector<9x9x256xf32>
    %c0_9 = arith.constant 0 : index
    %c0_10 = arith.constant 0 : index
    %c0_11 = arith.constant 0 : index
    %10 = vector.load %arg9[%c0_9, %c0_10, %c0_11] : memref<9x9x256xf32, #tpu.memory_space<vmem>>, vector<9x9x256xf32>
    tpu.vector_store %arg9[%c0_9, %c0_10, %c0_11], %9 {strides = array<i32>} : memref<9x9x256xf32, #tpu.memory_space<vmem>>, vector<9x9x256xf32>,
    %cst_12 = arith.constant 0.000000e+00 : f32
    %11 = vector.broadcast %cst_12 : f32 to vector<64x64xf32>
    %c0_13 = arith.constant 0 : index
    %c0_14 = arith.constant 0 : index
    %c0_15 = arith.constant 0 : index
    %c0_16 = arith.constant 0 : index
    %12 = vector.load %arg1[%c0_13, %c0_14, %c0_15, %c0_16] : memref<4x9x9x12xf32, #tpu.memory_space<vmem>>, vector<1x8x8x12xf32>
    %13 = vector.shape_cast %12 : vector<1x8x8x12xf32> to vector<8x8x12xf32>
    %14 = vector.shape_cast %13 : vector<8x8x12xf32> to vector<64x12xf32>
    %c0_17 = arith.constant 0 : index
    %c0_18 = arith.constant 0 : index
    %c0_19 = arith.constant 0 : index
    %15 = vector.load %arg2[%c0_17, %c0_18, %c0_19] : memref<4x12x64xf32, #tpu.memory_space<vmem>>, vector<1x12x64xf32>
    %16 = vector.shape_cast %15 : vector<1x12x64xf32> to vector<12x64xf32>
    %cst_20 = arith.constant dense<0.000000e+00> : vector<64x64xf32>
    %17 = tpu.matmul %14, %16, %cst_20 {dimension_numbers = #tpu.dot_dimension_numbers<[1], [0], [0], [1], [0, 0, 1, 1], [], []>} : vector<64x12xf32>, vector<12x64xf32>, vector<64x64xf32> -> vector<64x64xf32>
    %18 = arith.addf %11, %17 : vector<64x64xf32>
    %c1_21 = arith.constant 1 : index
    %c0_22 = arith.constant 0 : index
    %c0_23 = arith.constant 0 : index
    %c0_24 = arith.constant 0 : index
    %19 = vector.load %arg1[%c1_21, %c0_22, %c0_23, %c0_24] : memref<4x9x9x12xf32, #tpu.memory_space<vmem>>, vector<1x8x8x12xf32>
    %20 = vector.shape_cast %19 : vector<1x8x8x12xf32> to vector<8x8x12xf32>
    %21 = vector.shape_cast %20 : vector<8x8x12xf32> to vector<64x12xf32>
    %c1_25 = arith.constant 1 : index
    %c0_26 = arith.constant 0 : index
    %c0_27 = arith.constant 0 : index
    %22 = vector.load %arg2[%c1_25, %c0_26, %c0_27] : memref<4x12x64xf32, #tpu.memory_space<vmem>>, vector<1x12x64xf32>
    %23 = vector.shape_cast %22 : vector<1x12x64xf32> to vector<12x64xf32>
    %cst_28 = arith.constant dense<0.000000e+00> : vector<64x64xf32>
    %24 = tpu.matmul %21, %23, %cst_28 {dimension_numbers = #tpu.dot_dimension_numbers<[1], [0], [0], [1], [0, 0, 1, 1], [], []>} : vector<64x12xf32>, vector<12x64xf32>, vector<64x64xf32> -> vector<64x64xf32>
    %25 = arith.addf %18, %24 : vector<64x64xf32>
    %c2_29 = arith.constant 2 : index
    %c0_30 = arith.constant 0 : index
    %c0_31 = arith.constant 0 : index
    %c0_32 = arith.constant 0 : index
    %26 = vector.load %arg1[%c2_29, %c0_30, %c0_31, %c0_32] : memref<4x9x9x12xf32, #tpu.memory_space<vmem>>, vector<1x8x8x12xf32>
    %27 = vector.shape_cast %26 : vector<1x8x8x12xf32> to vector<8x8x12xf32>
    %28 = vector.shape_cast %27 : vector<8x8x12xf32> to vector<64x12xf32>
    %c2_33 = arith.constant 2 : index
    %c0_34 = arith.constant 0 : index
    %c0_35 = arith.constant 0 : index
    %29 = vector.load %arg2[%c2_33, %c0_34, %c0_35] : memref<4x12x64xf32, #tpu.memory_space<vmem>>, vector<1x12x64xf32>
    %30 = vector.shape_cast %29 : vector<1x12x64xf32> to vector<12x64xf32>
    %cst_36 = arith.constant dense<0.000000e+00> : vector<64x64xf32>
    %31 = tpu.matmul %28, %30, %cst_36 {dimension_numbers = #tpu.dot_dimension_numbers<[1], [0], [0], [1], [0, 0, 1, 1], [], []>} : vector<64x12xf32>, vector<12x64xf32>, vector<64x64xf32> -> vector<64x64xf32>
    %32 = arith.addf %25, %31 : vector<64x64xf32>
    %c3_37 = arith.constant 3 : index
    %c0_38 = arith.constant 0 : index
    %c0_39 = arith.constant 0 : index
    %c0_40 = arith.constant 0 : index
    %33 = vector.load %arg1[%c3_37, %c0_38, %c0_39, %c0_40] : memref<4x9x9x12xf32, #tpu.memory_space<vmem>>, vector<1x8x8x12xf32>
    %34 = vector.shape_cast %33 : vector<1x8x8x12xf32> to vector<8x8x12xf32>
    %35 = vector.shape_cast %34 : vector<8x8x12xf32> to vector<64x12xf32>
    %c3_41 = arith.constant 3 : index
    %c0_42 = arith.constant 0 : index
    %c0_43 = arith.constant 0 : index
    %36 = vector.load %arg2[%c3_41, %c0_42, %c0_43] : memref<4x12x64xf32, #tpu.memory_space<vmem>>, vector<1x12x64xf32>
    %37 = vector.shape_cast %36 : vector<1x12x64xf32> to vector<12x64xf32>
    %cst_44 = arith.constant dense<0.000000e+00> : vector<64x64xf32>
    %38 = tpu.matmul %35, %37, %cst_44 {dimension_numbers = #tpu.dot_dimension_numbers<[1], [0], [0], [1], [0, 0, 1, 1], [], []>} : vector<64x12xf32>, vector<12x64xf32>, vector<64x64xf32> -> vector<64x64xf32>
    %39 = arith.addf %32, %38 : vector<64x64xf32>
    %40 = vector.broadcast %0 : vector<1x64xf32> to vector<64x64xf32>
    %41 = arith.mulf %39, %40 : vector<64x64xf32>
    %42 = vector.broadcast %1 : vector<1x64xf32> to vector<64x64xf32>
    %43 = arith.addf %41, %42 : vector<64x64xf32>
    %cst_45 = arith.constant 0.000000e+00 : f32
    %44 = vector.broadcast %cst_45 : f32 to vector<64x64xf32>
    %45 = arith.maximumf %43, %44 : vector<64x64xf32>
    %46 = vector.shape_cast %45 : vector<64x64xf32> to vector<8x8x64xf32>
    %c0_46 = arith.constant 0 : index
    %c0_47 = arith.constant 0 : index
    %c192 = arith.constant 192 : index
    %47 = vector.load %arg9[%c0_46, %c0_47, %c192] : memref<9x9x256xf32, #tpu.memory_space<vmem>>, vector<8x8x64xf32>
    tpu.vector_store %arg9[%c0_46, %c0_47, %c192], %46 {strides = array<i32>} : memref<9x9x256xf32, #tpu.memory_space<vmem>>, vector<8x8x64xf32>,
    %cst_48 = arith.constant 0.000000e+00 : f32
    %48 = vector.broadcast %cst_48 : f32 to vector<64x64xf32>
    %c1_49 = arith.constant 1 : index
    %c0_50 = arith.constant 0 : index
    %c0_51 = arith.constant 0 : index
    %c0_52 = arith.constant 0 : index
    %49 = vector.load %arg1[%c1_49, %c0_50, %c0_51, %c0_52] : memref<4x9x9x12xf32, #tpu.memory_space<vmem>>, vector<1x8x8x12xf32>
    %50 = vector.shape_cast %49 : vector<1x8x8x12xf32> to vector<8x8x12xf32>
    %51 = vector.shape_cast %50 : vector<8x8x12xf32> to vector<64x12xf32>
    %c0_53 = arith.constant 0 : index
    %c0_54 = arith.constant 0 : index
    %c0_55 = arith.constant 0 : index
    %52 = vector.load %arg2[%c0_53, %c0_54, %c0_55] : memref<4x12x64xf32, #tpu.memory_space<vmem>>, vector<1x12x64xf32>
    %53 = vector.shape_cast %52 : vector<1x12x64xf32> to vector<12x64xf32>
    %cst_56 = arith.constant dense<0.000000e+00> : vector<64x64xf32>
    %54 = tpu.matmul %51, %53, %cst_56 {dimension_numbers = #tpu.dot_dimension_numbers<[1], [0], [0], [1], [0, 0, 1, 1], [], []>} : vector<64x12xf32>, vector<12x64xf32>, vector<64x64xf32> -> vector<64x64xf32>
    %55 = arith.addf %48, %54 : vector<64x64xf32>
    %c0_57 = arith.constant 0 : index
    %c0_58 = arith.constant 0 : index
    %c1_59 = arith.constant 1 : index
    %c0_60 = arith.constant 0 : index
    %56 = vector.load %arg1[%c0_57, %c0_58, %c1_59, %c0_60] : memref<4x9x9x12xf32, #tpu.memory_space<vmem>>, vector<1x8x8x12xf32>
    %57 = vector.shape_cast %56 : vector<1x8x8x12xf32> to vector<8x8x12xf32>
    %58 = vector.shape_cast %57 : vector<8x8x12xf32> to vector<64x12xf32>
    %c1_61 = arith.constant 1 : index
    %c0_62 = arith.constant 0 : index
    %c0_63 = arith.constant 0 : index
    %59 = vector.load %arg2[%c1_61, %c0_62, %c0_63] : memref<4x12x64xf32, #tpu.memory_space<vmem>>, vector<1x12x64xf32>
    %60 = vector.shape_cast %59 : vector<1x12x64xf32> to vector<12x64xf32>
    %cst_64 = arith.constant dense<0.000000e+00> : vector<64x64xf32>
    %61 = tpu.matmul %58, %60, %cst_64 {dimension_numbers = #tpu.dot_dimension_numbers<[1], [0], [0], [1], [0, 0, 1, 1], [], []>} : vector<64x12xf32>, vector<12x64xf32>, vector<64x64xf32> -> vector<64x64xf32>
    %62 = arith.addf %55, %61 : vector<64x64xf32>
    %c3_65 = arith.constant 3 : index
    %c0_66 = arith.constant 0 : index
    %c0_67 = arith.constant 0 : index
    %c0_68 = arith.constant 0 : index
    %63 = vector.load %arg1[%c3_65, %c0_66, %c0_67, %c0_68] : memref<4x9x9x12xf32, #tpu.memory_space<vmem>>, vector<1x8x8x12xf32>
    %64 = vector.shape_cast %63 : vector<1x8x8x12xf32> to vector<8x8x12xf32>
    %65 = vector.shape_cast %64 : vector<8x8x12xf32> to vector<64x12xf32>
    %c2_69 = arith.constant 2 : index
    %c0_70 = arith.constant 0 : index
    %c0_71 = arith.constant 0 : index
    %66 = vector.load %arg2[%c2_69, %c0_70, %c0_71] : memref<4x12x64xf32, #tpu.memory_space<vmem>>, vector<1x12x64xf32>
    %67 = vector.shape_cast %66 : vector<1x12x64xf32> to vector<12x64xf32>
    %cst_72 = arith.constant dense<0.000000e+00> : vector<64x64xf32>
    %68 = tpu.matmul %65, %67, %cst_72 {dimension_numbers = #tpu.dot_dimension_numbers<[1], [0], [0], [1], [0, 0, 1, 1], [], []>} : vector<64x12xf32>, vector<12x64xf32>, vector<64x64xf32> -> vector<64x64xf32>
    %69 = arith.addf %62, %68 : vector<64x64xf32>
    %c2_73 = arith.constant 2 : index
    %c0_74 = arith.constant 0 : index
    %c1_75 = arith.constant 1 : index
    %c0_76 = arith.constant 0 : index
    %70 = vector.load %arg1[%c2_73, %c0_74, %c1_75, %c0_76] : memref<4x9x9x12xf32, #tpu.memory_space<vmem>>, vector<1x8x8x12xf32>
    %71 = vector.shape_cast %70 : vector<1x8x8x12xf32> to vector<8x8x12xf32>
    %72 = vector.shape_cast %71 : vector<8x8x12xf32> to vector<64x12xf32>
    %c3_77 = arith.constant 3 : index
    %c0_78 = arith.constant 0 : index
    %c0_79 = arith.constant 0 : index
    %73 = vector.load %arg2[%c3_77, %c0_78, %c0_79] : memref<4x12x64xf32, #tpu.memory_space<vmem>>, vector<1x12x64xf32>
    %74 = vector.shape_cast %73 : vector<1x12x64xf32> to vector<12x64xf32>
    %cst_80 = arith.constant dense<0.000000e+00> : vector<64x64xf32>
    %75 = tpu.matmul %72, %74, %cst_80 {dimension_numbers = #tpu.dot_dimension_numbers<[1], [0], [0], [1], [0, 0, 1, 1], [], []>} : vector<64x12xf32>, vector<12x64xf32>, vector<64x64xf32> -> vector<64x64xf32>
    %76 = arith.addf %69, %75 : vector<64x64xf32>
    %77 = vector.broadcast %0 : vector<1x64xf32> to vector<64x64xf32>
    %78 = arith.mulf %76, %77 : vector<64x64xf32>
    %79 = vector.broadcast %1 : vector<1x64xf32> to vector<64x64xf32>
    %80 = arith.addf %78, %79 : vector<64x64xf32>
    %cst_81 = arith.constant 0.000000e+00 : f32
    %81 = vector.broadcast %cst_81 : f32 to vector<64x64xf32>
    %82 = arith.maximumf %80, %81 : vector<64x64xf32>
    %83 = vector.shape_cast %82 : vector<64x64xf32> to vector<8x8x64xf32>
    %c0_82 = arith.constant 0 : index
    %c1_83 = arith.constant 1 : index
    %c128 = arith.constant 128 : index
    %84 = vector.load %arg9[%c0_82, %c1_83, %c128] : memref<9x9x256xf32, #tpu.memory_space<vmem>>, vector<8x8x64xf32>
    tpu.vector_store %arg9[%c0_82, %c1_83, %c128], %83 {strides = array<i32>} : memref<9x9x256xf32, #tpu.memory_space<vmem>>, vector<8x8x64xf32>,
    %cst_84 = arith.constant 0.000000e+00 : f32
    %85 = vector.broadcast %cst_84 : f32 to vector<64x64xf32>
    %c2_85 = arith.constant 2 : index
    %c0_86 = arith.constant 0 : index
    %c0_87 = arith.constant 0 : index
    %c0_88 = arith.constant 0 : index
    %86 = vector.load %arg1[%c2_85, %c0_86, %c0_87, %c0_88] : memref<4x9x9x12xf32, #tpu.memory_space<vmem>>, vector<1x8x8x12xf32>
    %87 = vector.shape_cast %86 : vector<1x8x8x12xf32> to vector<8x8x12xf32>
    %88 = vector.shape_cast %87 : vector<8x8x12xf32> to vector<64x12xf32>
    %c0_89 = arith.constant 0 : index
    %c0_90 = arith.constant 0 : index
    %c0_91 = arith.constant 0 : index
    %89 = vector.load %arg2[%c0_89, %c0_90, %c0_91] : memref<4x12x64xf32, #tpu.memory_space<vmem>>, vector<1x12x64xf32>
    %90 = vector.shape_cast %89 : vector<1x12x64xf32> to vector<12x64xf32>
    %cst_92 = arith.constant dense<0.000000e+00> : vector<64x64xf32>
    %91 = tpu.matmul %88, %90, %cst_92 {dimension_numbers = #tpu.dot_dimension_numbers<[1], [0], [0], [1], [0, 0, 1, 1], [], []>} : vector<64x12xf32>, vector<12x64xf32>, vector<64x64xf32> -> vector<64x64xf32>
    %92 = arith.addf %85, %91 : vector<64x64xf32>
    %c3_93 = arith.constant 3 : index
    %c0_94 = arith.constant 0 : index
    %c0_95 = arith.constant 0 : index
    %c0_96 = arith.constant 0 : index
    %93 = vector.load %arg1[%c3_93, %c0_94, %c0_95, %c0_96] : memref<4x9x9x12xf32, #tpu.memory_space<vmem>>, vector<1x8x8x12xf32>
    %94 = vector.shape_cast %93 : vector<1x8x8x12xf32> to vector<8x8x12xf32>
    %95 = vector.shape_cast %94 : vector<8x8x12xf32> to vector<64x12xf32>
    %c1_97 = arith.constant 1 : index
    %c0_98 = arith.constant 0 : index
    %c0_99 = arith.constant 0 : index
    %96 = vector.load %arg2[%c1_97, %c0_98, %c0_99] : memref<4x12x64xf32, #tpu.memory_space<vmem>>, vector<1x12x64xf32>
    %97 = vector.shape_cast %96 : vector<1x12x64xf32> to vector<12x64xf32>
    %cst_100 = arith.constant dense<0.000000e+00> : vector<64x64xf32>
    %98 = tpu.matmul %95, %97, %cst_100 {dimension_numbers = #tpu.dot_dimension_numbers<[1], [0], [0], [1], [0, 0, 1, 1], [], []>} : vector<64x12xf32>, vector<12x64xf32>, vector<64x64xf32> -> vector<64x64xf32>
    %99 = arith.addf %92, %98 : vector<64x64xf32>
    %c0_101 = arith.constant 0 : index
    %c1_102 = arith.constant 1 : index
    %c0_103 = arith.constant 0 : index
    %c0_104 = arith.constant 0 : index
    %100 = vector.load %arg1[%c0_101, %c1_102, %c0_103, %c0_104] : memref<4x9x9x12xf32, #tpu.memory_space<vmem>>, vector<1x8x8x12xf32>
    %101 = vector.shape_cast %100 : vector<1x8x8x12xf32> to vector<8x8x12xf32>
    %102 = vector.shape_cast %101 : vector<8x8x12xf32> to vector<64x12xf32>
    %c2_105 = arith.constant 2 : index
    %c0_106 = arith.constant 0 : index
    %c0_107 = arith.constant 0 : index
    %103 = vector.load %arg2[%c2_105, %c0_106, %c0_107] : memref<4x12x64xf32, #tpu.memory_space<vmem>>, vector<1x12x64xf32>
    %104 = vector.shape_cast %103 : vector<1x12x64xf32> to vector<12x64xf32>
    %cst_108 = arith.constant dense<0.000000e+00> : vector<64x64xf32>
    %105 = tpu.matmul %102, %104, %cst_108 {dimension_numbers = #tpu.dot_dimension_numbers<[1], [0], [0], [1], [0, 0, 1, 1], [], []>} : vector<64x12xf32>, vector<12x64xf32>, vector<64x64xf32> -> vector<64x64xf32>
    %106 = arith.addf %99, %105 : vector<64x64xf32>
    %c1_109 = arith.constant 1 : index
    %c1_110 = arith.constant 1 : index
    %c0_111 = arith.constant 0 : index
    %c0_112 = arith.constant 0 : index
    %107 = vector.load %arg1[%c1_109, %c1_110, %c0_111, %c0_112] : memref<4x9x9x12xf32, #tpu.memory_space<vmem>>, vector<1x8x8x12xf32>
    %108 = vector.shape_cast %107 : vector<1x8x8x12xf32> to vector<8x8x12xf32>
    %109 = vector.shape_cast %108 : vector<8x8x12xf32> to vector<64x12xf32>
    %c3_113 = arith.constant 3 : index
    %c0_114 = arith.constant 0 : index
    %c0_115 = arith.constant 0 : index
    %110 = vector.load %arg2[%c3_113, %c0_114, %c0_115] : memref<4x12x64xf32, #tpu.memory_space<vmem>>, vector<1x12x64xf32>
    %111 = vector.shape_cast %110 : vector<1x12x64xf32> to vector<12x64xf32>
    %cst_116 = arith.constant dense<0.000000e+00> : vector<64x64xf32>
    %112 = tpu.matmul %109, %111, %cst_116 {dimension_numbers = #tpu.dot_dimension_numbers<[1], [0], [0], [1], [0, 0, 1, 1], [], []>} : vector<64x12xf32>, vector<12x64xf32>, vector<64x64xf32> -> vector<64x64xf32>
    %113 = arith.addf %106, %112 : vector<64x64xf32>
    %114 = vector.broadcast %0 : vector<1x64xf32> to vector<64x64xf32>
    %115 = arith.mulf %113, %114 : vector<64x64xf32>
    %116 = vector.broadcast %1 : vector<1x64xf32> to vector<64x64xf32>
    %117 = arith.addf %115, %116 : vector<64x64xf32>
    %cst_117 = arith.constant 0.000000e+00 : f32
    %118 = vector.broadcast %cst_117 : f32 to vector<64x64xf32>
    %119 = arith.maximumf %117, %118 : vector<64x64xf32>
    %120 = vector.shape_cast %119 : vector<64x64xf32> to vector<8x8x64xf32>
    %c1_118 = arith.constant 1 : index
    %c0_119 = arith.constant 0 : index
    %c64 = arith.constant 64 : index
    %121 = vector.load %arg9[%c1_118, %c0_119, %c64] : memref<9x9x256xf32, #tpu.memory_space<vmem>>, vector<8x8x64xf32>
    tpu.vector_store %arg9[%c1_118, %c0_119, %c64], %120 {strides = array<i32>} : memref<9x9x256xf32, #tpu.memory_space<vmem>>, vector<8x8x64xf32>,
    %cst_120 = arith.constant 0.000000e+00 : f32
    %122 = vector.broadcast %cst_120 : f32 to vector<64x64xf32>
    %c3_121 = arith.constant 3 : index
    %c0_122 = arith.constant 0 : index
    %c0_123 = arith.constant 0 : index
    %c0_124 = arith.constant 0 : index
    %123 = vector.load %arg1[%c3_121, %c0_122, %c0_123, %c0_124] : memref<4x9x9x12xf32, #tpu.memory_space<vmem>>, vector<1x8x8x12xf32>
    %124 = vector.shape_cast %123 : vector<1x8x8x12xf32> to vector<8x8x12xf32>
    %125 = vector.shape_cast %124 : vector<8x8x12xf32> to vector<64x12xf32>
    %c0_125 = arith.constant 0 : index
    %c0_126 = arith.constant 0 : index
    %c0_127 = arith.constant 0 : index
    %126 = vector.load %arg2[%c0_125, %c0_126, %c0_127] : memref<4x12x64xf32, #tpu.memory_space<vmem>>, vector<1x12x64xf32>
    %127 = vector.shape_cast %126 : vector<1x12x64xf32> to vector<12x64xf32>
    %cst_128 = arith.constant dense<0.000000e+00> : vector<64x64xf32>
    %128 = tpu.matmul %125, %127, %cst_128 {dimension_numbers = #tpu.dot_dimension_numbers<[1], [0], [0], [1], [0, 0, 1, 1], [], []>} : vector<64x12xf32>, vector<12x64xf32>, vector<64x64xf32> -> vector<64x64xf32>
    %129 = arith.addf %122, %128 : vector<64x64xf32>
    %c2_129 = arith.constant 2 : index
    %c0_130 = arith.constant 0 : index
    %c1_131 = arith.constant 1 : index
    %c0_132 = arith.constant 0 : index
    %130 = vector.load %arg1[%c2_129, %c0_130, %c1_131, %c0_132] : memref<4x9x9x12xf32, #tpu.memory_space<vmem>>, vector<1x8x8x12xf32>
    %131 = vector.shape_cast %130 : vector<1x8x8x12xf32> to vector<8x8x12xf32>
    %132 = vector.shape_cast %131 : vector<8x8x12xf32> to vector<64x12xf32>
    %c1_133 = arith.constant 1 : index
    %c0_134 = arith.constant 0 : index
    %c0_135 = arith.constant 0 : index
    %133 = vector.load %arg2[%c1_133, %c0_134, %c0_135] : memref<4x12x64xf32, #tpu.memory_space<vmem>>, vector<1x12x64xf32>
    %134 = vector.shape_cast %133 : vector<1x12x64xf32> to vector<12x64xf32>
    %cst_136 = arith.constant dense<0.000000e+00> : vector<64x64xf32>
    %135 = tpu.matmul %132, %134, %cst_136 {dimension_numbers = #tpu.dot_dimension_numbers<[1], [0], [0], [1], [0, 0, 1, 1], [], []>} : vector<64x12xf32>, vector<12x64xf32>, vector<64x64xf32> -> vector<64x64xf32>
    %136 = arith.addf %129, %135 : vector<64x64xf32>
    %c1_137 = arith.constant 1 : index
    %c1_138 = arith.constant 1 : index
    %c0_139 = arith.constant 0 : index
    %c0_140 = arith.constant 0 : index
    %137 = vector.load %arg1[%c1_137, %c1_138, %c0_139, %c0_140] : memref<4x9x9x12xf32, #tpu.memory_space<vmem>>, vector<1x8x8x12xf32>
    %138 = vector.shape_cast %137 : vector<1x8x8x12xf32> to vector<8x8x12xf32>
    %139 = vector.shape_cast %138 : vector<8x8x12xf32> to vector<64x12xf32>
    %c2_141 = arith.constant 2 : index
    %c0_142 = arith.constant 0 : index
    %c0_143 = arith.constant 0 : index
    %140 = vector.load %arg2[%c2_141, %c0_142, %c0_143] : memref<4x12x64xf32, #tpu.memory_space<vmem>>, vector<1x12x64xf32>
    %141 = vector.shape_cast %140 : vector<1x12x64xf32> to vector<12x64xf32>
    %cst_144 = arith.constant dense<0.000000e+00> : vector<64x64xf32>
    %142 = tpu.matmul %139, %141, %cst_144 {dimension_numbers = #tpu.dot_dimension_numbers<[1], [0], [0], [1], [0, 0, 1, 1], [], []>} : vector<64x12xf32>, vector<12x64xf32>, vector<64x64xf32> -> vector<64x64xf32>
    %143 = arith.addf %136, %142 : vector<64x64xf32>
    %c0_145 = arith.constant 0 : index
    %c1_146 = arith.constant 1 : index
    %c1_147 = arith.constant 1 : index
    %c0_148 = arith.constant 0 : index
    %144 = vector.load %arg1[%c0_145, %c1_146, %c1_147, %c0_148] : memref<4x9x9x12xf32, #tpu.memory_space<vmem>>, vector<1x8x8x12xf32>
    %145 = vector.shape_cast %144 : vector<1x8x8x12xf32> to vector<8x8x12xf32>
    %146 = vector.shape_cast %145 : vector<8x8x12xf32> to vector<64x12xf32>
    %c3_149 = arith.constant 3 : index
    %c0_150 = arith.constant 0 : index
    %c0_151 = arith.constant 0 : index
    %147 = vector.load %arg2[%c3_149, %c0_150, %c0_151] : memref<4x12x64xf32, #tpu.memory_space<vmem>>, vector<1x12x64xf32>
    %148 = vector.shape_cast %147 : vector<1x12x64xf32> to vector<12x64xf32>
    %cst_152 = arith.constant dense<0.000000e+00> : vector<64x64xf32>
    %149 = tpu.matmul %146, %148, %cst_152 {dimension_numbers = #tpu.dot_dimension_numbers<[1], [0], [0], [1], [0, 0, 1, 1], [], []>} : vector<64x12xf32>, vector<12x64xf32>, vector<64x64xf32> -> vector<64x64xf32>
    %150 = arith.addf %143, %149 : vector<64x64xf32>
    %151 = vector.broadcast %0 : vector<1x64xf32> to vector<64x64xf32>
    %152 = arith.mulf %150, %151 : vector<64x64xf32>
    %153 = vector.broadcast %1 : vector<1x64xf32> to vector<64x64xf32>
    %154 = arith.addf %152, %153 : vector<64x64xf32>
    %cst_153 = arith.constant 0.000000e+00 : f32
    %155 = vector.broadcast %cst_153 : f32 to vector<64x64xf32>
    %156 = arith.maximumf %154, %155 : vector<64x64xf32>
    %157 = vector.shape_cast %156 : vector<64x64xf32> to vector<8x8x64xf32>
    %c1_154 = arith.constant 1 : index
    %c1_155 = arith.constant 1 : index
    %c0_156 = arith.constant 0 : index
    %158 = vector.load %arg9[%c1_154, %c1_155, %c0_156] : memref<9x9x256xf32, #tpu.memory_space<vmem>>, vector<8x8x64xf32>
    tpu.vector_store %arg9[%c1_154, %c1_155, %c0_156], %157 {strides = array<i32>} : memref<9x9x256xf32, #tpu.memory_space<vmem>>, vector<8x8x64xf32>,
    %c0_157 = arith.constant 0 : index
    %c0_158 = arith.constant 0 : index
    %c0_159 = arith.constant 0 : index
    %159 = vector.load %arg9[%c0_157, %c0_158, %c0_159] : memref<9x9x256xf32, #tpu.memory_space<vmem>>, vector<8x8x256xf32>
    %160 = vector.shape_cast %159 : vector<8x8x256xf32> to vector<64x256xf32>
    %c0_160 = arith.constant 0 : index
    %c1_161 = arith.constant 1 : index
    %c0_162 = arith.constant 0 : index
    %161 = vector.load %arg9[%c0_160, %c1_161, %c0_162] : memref<9x9x256xf32, #tpu.memory_space<vmem>>, vector<8x8x256xf32>
    %162 = vector.shape_cast %161 : vector<8x8x256xf32> to vector<64x256xf32>
    %c1_163 = arith.constant 1 : index
    %c0_164 = arith.constant 0 : index
    %c0_165 = arith.constant 0 : index
    %163 = vector.load %arg9[%c1_163, %c0_164, %c0_165] : memref<9x9x256xf32, #tpu.memory_space<vmem>>, vector<8x8x256xf32>
    %164 = vector.shape_cast %163 : vector<8x8x256xf32> to vector<64x256xf32>
    %c1_166 = arith.constant 1 : index
    %c1_167 = arith.constant 1 : index
    %c0_168 = arith.constant 0 : index
    %165 = vector.load %arg9[%c1_166, %c1_167, %c0_168] : memref<9x9x256xf32, #tpu.memory_space<vmem>>, vector<8x8x256xf32>
    %166 = vector.shape_cast %165 : vector<8x8x256xf32> to vector<64x256xf32>
    %167 = tpu.concatenate %160, %162, %164, %166 in 1 : vector<64x256xf32>, vector<64x256xf32>, vector<64x256xf32>, vector<64x256xf32> -> vector<64x1024xf32>
    %c0_169 = arith.constant 0 : index
    %c0_170 = arith.constant 0 : index
    %168 = vector.load %arg3[%c0_169, %c0_170] : memref<1024x64xf32, #tpu.memory_space<vmem>>, vector<1024x64xf32>
    %cst_171 = arith.constant dense<0.000000e+00> : vector<64x64xf32>
    %169 = tpu.matmul %167, %168, %cst_171 {dimension_numbers = #tpu.dot_dimension_numbers<[1], [0], [0], [1], [0, 0, 1, 1], [], []>} : vector<64x1024xf32>, vector<1024x64xf32>, vector<64x64xf32> -> vector<64x64xf32>
    %170 = vector.broadcast %2 : vector<1x64xf32> to vector<64x64xf32>
    %171 = arith.mulf %169, %170 : vector<64x64xf32>
    %172 = vector.broadcast %3 : vector<1x64xf32> to vector<64x64xf32>
    %173 = arith.addf %171, %172 : vector<64x64xf32>
    %cst_172 = arith.constant 0.000000e+00 : f32
    %174 = vector.broadcast %cst_172 : f32 to vector<64x64xf32>
    %175 = arith.maximumf %173, %174 : vector<64x64xf32>
    %c0_173 = arith.constant 0 : index
    %c0_174 = arith.constant 0 : index
    %176 = vector.load %arg4[%c0_173, %c0_174] : memref<64x64xf32, #tpu.memory_space<vmem>>, vector<64x64xf32>
    %cst_175 = arith.constant dense<0.000000e+00> : vector<64x64xf32>
    %177 = tpu.matmul %175, %176, %cst_175 {dimension_numbers = #tpu.dot_dimension_numbers<[1], [0], [0], [1], [0, 0, 1, 1], [], []>} : vector<64x64xf32>, vector<64x64xf32>, vector<64x64xf32> -> vector<64x64xf32>
    %178 = vector.broadcast %4 : vector<1x64xf32> to vector<64x64xf32>
    %179 = arith.addf %177, %178 : vector<64x64xf32>
    %180 = vector.broadcast %5 : vector<1x64xf32> to vector<64x64xf32>
    %181 = arith.mulf %179, %180 : vector<64x64xf32>
    %182 = vector.broadcast %6 : vector<1x64xf32> to vector<64x64xf32>
    %183 = arith.addf %181, %182 : vector<64x64xf32>
    %cst_176 = arith.constant 0.000000e+00 : f32
    %184 = vector.broadcast %cst_176 : f32 to vector<64x64xf32>
    %185 = arith.maximumf %183, %184 : vector<64x64xf32>
    %186 = vector.shape_cast %185 : vector<64x64xf32> to vector<8x8x64xf32>
    %187 = vector.shape_cast %7 : vector<1x64xf32> to vector<1x1x64xf32>
    %188 = vector.broadcast %187 : vector<1x1x64xf32> to vector<8x8x64xf32>
    %189 = arith.mulf %186, %188 : vector<8x8x64xf32>
    %cst_177 = arith.constant dense<0.000000e+00> : vector<8x8xf32>
    %190 = vector.multi_reduction <add>, %189, %cst_177 [2] : vector<8x8x64xf32> to vector<8x8xf32>
    %191 = vector.broadcast %8 : vector<1x1xf32> to vector<8x8xf32>
    %192 = arith.addf %190, %191 : vector<8x8xf32>
    %c0_178 = arith.constant 0 : index
    %c0_179 = arith.constant 0 : index
    %193 = vector.load %arg6[%c0_178, %c0_179] : memref<32x8xf32, #tpu.memory_space<vmem>>, vector<32x8xf32>
    %cst_180 = arith.constant dense<0.000000e+00> : vector<32x8xf32>
    %194 = tpu.matmul %193, %192, %cst_180 {dimension_numbers = #tpu.dot_dimension_numbers<[1], [0], [0], [1], [0, 0, 1, 1], [], []>} : vector<32x8xf32>, vector<8x8xf32>, vector<32x8xf32> -> vector<32x8xf32>
    %c0_181 = arith.constant 0 : index
    %c0_182 = arith.constant 0 : index
    %195 = vector.load %arg7[%c0_181, %c0_182] : memref<8x32xf32, #tpu.memory_space<vmem>>, vector<8x32xf32>
    %cst_183 = arith.constant dense<0.000000e+00> : vector<32x32xf32>
    %196 = tpu.matmul %194, %195, %cst_183 {dimension_numbers = #tpu.dot_dimension_numbers<[1], [0], [0], [1], [0, 0, 1, 1], [], []>} : vector<32x8xf32>, vector<8x32xf32>, vector<32x32xf32> -> vector<32x32xf32>
    %c0_184 = arith.constant 0 : index
    %c0_185 = arith.constant 0 : index
    %c0_186 = arith.constant 0 : index
    %197 = vector.load %arg8[%c0_184, %c0_185, %c0_186] : memref<1x32x32xf32, #tpu.memory_space<vmem>>, vector<1x32x32xf32>
    %198 = vector.shape_cast %197 : vector<1x32x32xf32> to vector<32x32xf32>
    %199 = vector.shape_cast %196 : vector<32x32xf32> to vector<1x32x32xf32>
    tpu.vector_store %arg8[%c0_184, %c0_185, %c0_186], %199 {strides = array<i32>} : memref<1x32x32xf32, #tpu.memory_space<vmem>>, vector<1x32x32xf32>,
    return
  }
  func.func @transform_0(%arg0: i32) -> (i32, i32, i32, i32) {
    %c0_i32 = arith.constant 0 : i32
    %c0_i32_0 = arith.constant 0 : i32
    %c0_i32_1 = arith.constant 0 : i32
    %c0_i32_2 = arith.constant 0 : i32
    return %arg0, %c0_i32, %c0_i32_0, %c0_i32_1 : i32, i32, i32, i32
  }
  func.func @transform_1(%arg0: i32) -> (i32, i32, i32) {
    %c0_i32 = arith.constant 0 : i32
    %c0_i32_0 = arith.constant 0 : i32
    %c0_i32_1 = arith.constant 0 : i32
    %c0_i32_2 = arith.constant 0 : i32
    return %c0_i32, %c0_i32_0, %c0_i32_1 : i32, i32, i32
  }
  func.func @transform_2(%arg0: i32) -> (i32, i32) {
    %c0_i32 = arith.constant 0 : i32
    %c0_i32_0 = arith.constant 0 : i32
    %c0_i32_1 = arith.constant 0 : i32
    return %c0_i32, %c0_i32_0 : i32, i32
  }
  func.func @transform_3(%arg0: i32) -> (i32, i32) {
    %c0_i32 = arith.constant 0 : i32
    %c0_i32_0 = arith.constant 0 : i32
    %c0_i32_1 = arith.constant 0 : i32
    return %c0_i32, %c0_i32_0 : i32, i32
  }
  func.func @transform_4(%arg0: i32) -> (i32, i32) {
    %c0_i32 = arith.constant 0 : i32
    %c0_i32_0 = arith.constant 0 : i32
    %c0_i32_1 = arith.constant 0 : i32
    return %c0_i32, %c0_i32_0 : i32, i32
  }
  func.func @transform_5(%arg0: i32) -> (i32, i32) {
    %c0_i32 = arith.constant 0 : i32
    %c0_i32_0 = arith.constant 0 : i32
    %c0_i32_1 = arith.constant 0 : i32
    return %c0_i32, %c0_i32_0 : i32, i32
  }
  func.func @transform_6(%arg0: i32) -> (i32, i32) {
    %c0_i32 = arith.constant 0 : i32
    %c0_i32_0 = arith.constant 0 : i32
    %c0_i32_1 = arith.constant 0 : i32
    return %c0_i32, %c0_i32_0 : i32, i32
  }
  func.func @transform_7(%arg0: i32) -> (i32, i32, i32) {
    %c0_i32 = arith.constant 0 : i32
    %c0_i32_0 = arith.constant 0 : i32
    %c0_i32_1 = arith.constant 0 : i32
    return %arg0, %c0_i32, %c0_i32_0 : i32, i32, i32
  }
}

</mosaic_0001>

<llo_original>
// kernel: aleatoric_net_pallas.1
$region0: #{aleatoric_net_pallas.1}
  #allocation0 [shape = 'u32[]', space=smem, size = 0x4, offset = 0x4, fixed_abs, tag = 'smem constant byte address 0x4 - core index']
  #allocation1 [shape = 'u32[72,128]{1,0:T(1,128)}', space=vmem, size = 0x9000, scoped, tag = 'internal scratch']
  #allocation2 [shape = 'f32[9,9,256]{2,1,0:T(8,128)}', space=vmem, size = 0x24000, scoped, tag = 'scratch operand']
  %s0 = inlined_call_operand.vmem [shape: f32[8,9,9,12], index: 0, kind: input, shape index: {}]
  %s1 = inlined_call_operand.vmem [shape: f32[4,12,64], index: 1, kind: input, shape index: {}]
  %s2 = inlined_call_operand.vmem [shape: f32[1024,64], index: 2, kind: input, shape index: {}]
  %s3 = inlined_call_operand.vmem [shape: f32[64,64], index: 3, kind: input, shape index: {}]
  %s4 = inlined_call_operand.vmem [shape: f32[9,64], index: 4, kind: input, shape index: {}]
  %s5 = inlined_call_operand.vmem [shape: f32[32,8], index: 5, kind: input, shape index: {}]
  %s6 = inlined_call_operand.vmem [shape: f32[8,32], index: 6, kind: input, shape index: {}]
  %s7 = inlined_call_operand.hbm [shape: f32[2,32,32], index: 7, kind: output, shape index: {}]
  %s8 = sld [smem:[#allocation0]]
  $region61: #{aleatoric_net_pallas.1} parent=0
    _
  %s10 = ssub.s32 1, %s8
  %s11 = scalar_select 0, %s10, %s8
  $region1: #{aleatoric_net_pallas.1} parent=0
    #allocation3 [shape = 'u8[32768]{0}', space=vmem, size = 0x8000, scoped, tag = 'output window, operand 0']
    #allocation4 [shape = 's32[2]{0}', space=sflag, size = 0x8, scoped, tag = 'scoped memory for aleatoric_net_pallas.1']
    %12 = vsyncpa [#allocation4], 0
    %s13 = scalar_lea.sflag [#allocation4], 1
    %14 = vsyncpa %s13, 0
    loop: start=0, step=1, limit=4
    $region2: #{aleatoric_net_pallas.1} parent=1 // loop_pre_header
      _
    $region3: #{aleatoric_net_pallas.1} parent=1 // loop_header
      %s16 = sphi 0, %s20
      %p17 = scmp.ge.s32.totalorder %s16, 4
      %s26 = sphi 0, %s28
      %s29 = sphi 0, %s26
      %s30 = sphi 0, %s29
      %s46 = sphi 0, %s30
      %s50 = sphi 0, %s50
      %s52 = sphi 0, %s50
      %s53 = sphi 0, %s52
      %s67 = sphi 0, %s53
      %s71 = sphi 0, %s71
      %s73 = sphi 0, %s71
      %s74 = sphi 0, %s73
      %s88 = sphi 0, %s74
      %s92 = sphi 0, %s92
      %s94 = sphi 0, %s92
      %s95 = sphi 0, %s94
      %s109 = sphi 0, %s95
      %s113 = sphi 0, %s113
      %s115 = sphi 0, %s113
      %s116 = sphi 0, %s115
      %s130 = sphi 0, %s116
      %s134 = sphi 0, %s134
      %s136 = sphi 0, %s134
      %s137 = sphi 0, %s136
      %s151 = sphi 0, %s137
      %s155 = sphi 0, %s155
      %s157 = sphi 0, %s155
      %s158 = sphi 0, %s157
      %s172 = sphi 0, %s158
      %s178 = sphi 0, %s180
      %s181 = sphi 0, %s178
      %s182 = sphi 0, %s181
      %s198 = sphi 0, %s182
    $region4: #{aleatoric_net_pallas.1} parent=1 // loop_header_branch
      %19 = sbr.rel (%p17) target = $region8
    $region5: #{aleatoric_net_pallas.1} parent=1 // loop_body
      %s21 = ssub.s32 %s16, 1
      %s22 = ssub.s32 %s16, 2
      %s23 = sadd.s32 %s16, 1
      %s24 = ssub.s32 %s16, %s23
      %p25 = scmp.eq.s32.totalorder %s24, 0
      %s27 = sadd.s32 %s26, 1
      %s28 = scalar_select %p25, %s26, %s27
      %p31 = pneg %p25
      %p32 = scmp.eq.s32.totalorder %s16, 1
      %p33 = por %p31, %p32
      %p34 = scmp.ne.s32.totalorder %s26, %s29
      %p35 = scmp.eq.s32.totalorder %s16, 0
      %p36 = por %p34, %p35
      %p37 = scmp.ne.s32.totalorder %s26, %s29
      %p38 = scmp.eq.s32.totalorder %s21, 1
      %p39 = por %p37, %p38
      %p40 = scmp.ne.s32.totalorder %s29, %s30
      %p41 = scmp.eq.s32.totalorder %s21, 0
      %p42 = por %p40, %p41
      %p43 = scmp.ne.s32.totalorder %s29, %s30
      %p44 = scmp.eq.s32.totalorder %s22, 1
      %p45 = por %p43, %p44
      %p47 = scmp.ne.s32.totalorder %s30, %s46
      %p48 = scmp.eq.s32.totalorder %s22, 0
      %p49 = por %p47, %p48
      %s51 = sadd.s32 %s50, 1
      %p54 = scmp.eq.s32.totalorder %s16, 1
      %p55 = scmp.ne.s32.totalorder %s50, %s52
      %p56 = scmp.eq.s32.totalorder %s16, 0
      %p57 = por %p55, %p56
      %p58 = scmp.ne.s32.totalorder %s50, %s52
      %p59 = scmp.eq.s32.totalorder %s21, 1
      %p60 = por %p58, %p59
      %p61 = scmp.ne.s32.totalorder %s52, %s53
      %p62 = scmp.eq.s32.totalorder %s21, 0
      %p63 = por %p61, %p62
      %p64 = scmp.ne.s32.totalorder %s52, %s53
      %p65 = scmp.eq.s32.totalorder %s22, 1
      %p66 = por %p64, %p65
      %p68 = scmp.ne.s32.totalorder %s53, %s67
      %p69 = scmp.eq.s32.totalorder %s22, 0
      %p70 = por %p68, %p69
      %s72 = sadd.s32 %s71, 1
      %p75 = scmp.eq.s32.totalorder %s16, 1
      %p76 = scmp.ne.s32.totalorder %s71, %s73
      %p77 = scmp.eq.s32.totalorder %s16, 0
      %p78 = por %p76, %p77
      %p79 = scmp.ne.s32.totalorder %s71, %s73
      %p80 = scmp.eq.s32.totalorder %s21, 1
      %p81 = por %p79, %p80
      %p82 = scmp.ne.s32.totalorder %s73, %s74
      %p83 = scmp.eq.s32.totalorder %s21, 0
      %p84 = por %p82, %p83
      %p85 = scmp.ne.s32.totalorder %s73, %s74
      %p86 = scmp.eq.s32.totalorder %s22, 1
      %p87 = por %p85, %p86
      %p89 = scmp.ne.s32.totalorder %s74, %s88
      %p90 = scmp.eq.s32.totalorder %s22, 0
      %p91 = por %p89, %p90
      %s93 = sadd.s32 %s92, 1
      %p96 = scmp.eq.s32.totalorder %s16, 1
      %p97 = scmp.ne.s32.totalorder %s92, %s94
      %p98 = scmp.eq.s32.totalorder %s16, 0
      %p99 = por %p97, %p98
      %p100 = scmp.ne.s32.totalorder %s92, %s94
      %p101 = scmp.eq.s32.totalorder %s21, 1
      %p102 = por %p100, %p101
      %p103 = scmp.ne.s32.totalorder %s94, %s95
      %p104 = scmp.eq.s32.totalorder %s21, 0
      %p105 = por %p103, %p104
      %p106 = scmp.ne.s32.totalorder %s94, %s95
      %p107 = scmp.eq.s32.totalorder %s22, 1
      %p108 = por %p106, %p107
      %p110 = scmp.ne.s32.totalorder %s95, %s109
      %p111 = scmp.eq.s32.totalorder %s22, 0
      %p112 = por %p110, %p111
      %s114 = sadd.s32 %s113, 1
      %p117 = scmp.eq.s32.totalorder %s16, 1
      %p118 = scmp.ne.s32.totalorder %s113, %s115
      %p119 = scmp.eq.s32.totalorder %s16, 0
      %p120 = por %p118, %p119
      %p121 = scmp.ne.s32.totalorder %s113, %s115
      %p122 = scmp.eq.s32.totalorder %s21, 1
      %p123 = por %p121, %p122
      %p124 = scmp.ne.s32.totalorder %s115, %s116
      %p125 = scmp.eq.s32.totalorder %s21, 0
      %p126 = por %p124, %p125
      %p127 = scmp.ne.s32.totalorder %s115, %s116
      %p128 = scmp.eq.s32.totalorder %s22, 1
      %p129 = por %p127, %p128
      %p131 = scmp.ne.s32.totalorder %s116, %s130
      %p132 = scmp.eq.s32.totalorder %s22, 0
      %p133 = por %p131, %p132
      %s135 = sadd.s32 %s134, 1
      %p138 = scmp.eq.s32.totalorder %s16, 1
      %p139 = scmp.ne.s32.totalorder %s134, %s136
      %p140 = scmp.eq.s32.totalorder %s16, 0
      %p141 = por %p139, %p140
      %p142 = scmp.ne.s32.totalorder %s134, %s136
      %p143 = scmp.eq.s32.totalorder %s21, 1
      %p144 = por %p142, %p143
      %p145 = scmp.ne.s32.totalorder %s136, %s137
      %p146 = scmp.eq.s32.totalorder %s21, 0
      %p147 = por %p145, %p146
      %p148 = scmp.ne.s32.totalorder %s136, %s137
      %p149 = scmp.eq.s32.totalorder %s22, 1
      %p150 = por %p148, %p149
      %p152 = scmp.ne.s32.totalorder %s137, %s151
      %p153 = scmp.eq.s32.totalorder %s22, 0
      %p154 = por %p152, %p153
      %s156 = sadd.s32 %s155, 1
      %p159 = scmp.eq.s32.totalorder %s16, 1
      %p160 = scmp.ne.s32.totalorder %s155, %s157
      %p161 = scmp.eq.s32.totalorder %s16, 0
      %p162 = por %p160, %p161
      %p163 = scmp.ne.s32.totalorder %s155, %s157
      %p164 = scmp.eq.s32.totalorder %s21, 1
      %p165 = por %p163, %p164
      %p166 = scmp.ne.s32.totalorder %s157, %s158
      %p167 = scmp.eq.s32.totalorder %s21, 0
      %p168 = por %p166, %p167
      %p169 = scmp.ne.s32.totalorder %s157, %s158
      %p170 = scmp.eq.s32.totalorder %s22, 1
      %p171 = por %p169, %p170
      %p173 = scmp.ne.s32.totalorder %s158, %s172
      %p174 = scmp.eq.s32.totalorder %s22, 0
      %p175 = por %p173, %p174
      %s176 = ssub.s32 %s16, %s23
      %p177 = scmp.eq.s32.totalorder %s176, 0
      %s179 = sadd.s32 %s178, 1
      %s180 = scalar_select %p177, %s178, %s179
      %p183 = pneg %p177
      %p184 = scmp.eq.s32.totalorder %s16, 1
      %p185 = por %p183, %p184
      %p186 = scmp.ne.s32.totalorder %s178, %s181
      %p187 = scmp.eq.s32.totalorder %s16, 0
      %p188 = por %p186, %p187
      %p189 = scmp.ne.s32.totalorder %s178, %s181
      %p190 = scmp.eq.s32.totalorder %s21, 1
      %p191 = por %p189, %p190
      %p192 = scmp.ne.s32.totalorder %s181, %s182
      %p193 = scmp.eq.s32.totalorder %s21, 0
      %p194 = por %p192, %p193
      %p195 = scmp.ne.s32.totalorder %s181, %s182
      %p196 = scmp.eq.s32.totalorder %s22, 1
      %p197 = por %p195, %p196
      %p199 = scmp.ne.s32.totalorder %s182, %s198
      %p200 = scmp.eq.s32.totalorder %s22, 0
      %p201 = por %p199, %p200
      %p202 = scmp.le.s32.totalorder 1, %s16
      %p203 = scmp.lt.s32.totalorder %s16, 3
      %p204 = pnand %p202, %p203
      %p205 = pneg %p204
      // Predicated region
      $region9: #{aleatoric_net_pallas.1} parent=5 // pred_check
        _
      $region10: #{aleatoric_net_pallas.1} parent=5 // pred_check_branch
        %207 = sbr.rel (%p204) target = $region12
      $region11: #{aleatoric_net_pallas.1} parent=5 // pred_region
        %s208 = ssub.s32 %s16, 1
        // Predicated region
        $region13: #{aleatoric_net_pallas.1} parent=11 // pred_check
          %p209 = pneg %p63
        $region14: #{aleatoric_net_pallas.1} parent=11 // pred_check_branch
          %211 = sbr.rel (%p209) target = $region16
        $region15: #{aleatoric_net_pallas.1} parent=11 // pred_region
          _
        $region16: #{aleatoric_net_pallas.1} parent=11 // pred_fallthru
          _
        // Predicated region
        $region17: #{aleatoric_net_pallas.1} parent=11 // pred_check
          %p212 = pneg %p84
        $region18: #{aleatoric_net_pallas.1} parent=11 // pred_check_branch
          %214 = sbr.rel (%p212) target = $region20
        $region19: #{aleatoric_net_pallas.1} parent=11 // pred_region
          _
        $region20: #{aleatoric_net_pallas.1} parent=11 // pred_fallthru
          _
        // Predicated region
        $region21: #{aleatoric_net_pallas.1} parent=11 // pred_check
          %p215 = pneg %p105
        $region22: #{aleatoric_net_pallas.1} parent=11 // pred_check_branch
          %217 = sbr.rel (%p215) target = $region24
        $region23: #{aleatoric_net_pallas.1} parent=11 // pred_region
          _
        $region24: #{aleatoric_net_pallas.1} parent=11 // pred_fallthru
          _
        // Predicated region
        $region25: #{aleatoric_net_pallas.1} parent=11 // pred_check
          %p218 = pneg %p126
        $region26: #{aleatoric_net_pallas.1} parent=11 // pred_check_branch
          %220 = sbr.rel (%p218) target = $region28
        $region27: #{aleatoric_net_pallas.1} parent=11 // pred_region
          _
        $region28: #{aleatoric_net_pallas.1} parent=11 // pred_fallthru
          _
        // Predicated region
        $region29: #{aleatoric_net_pallas.1} parent=11 // pred_check
          %p221 = pneg %p147
        $region30: #{aleatoric_net_pallas.1} parent=11 // pred_check_branch
          %223 = sbr.rel (%p221) target = $region32
        $region31: #{aleatoric_net_pallas.1} parent=11 // pred_region
          _
        $region32: #{aleatoric_net_pallas.1} parent=11 // pred_fallthru
          _
        // Predicated region
        $region33: #{aleatoric_net_pallas.1} parent=11 // pred_check
          %p224 = pneg %p168
        $region34: #{aleatoric_net_pallas.1} parent=11 // pred_check_branch
          %226 = sbr.rel (%p224) target = $region36
        $region35: #{aleatoric_net_pallas.1} parent=11 // pred_region
          _
        $region36: #{aleatoric_net_pallas.1} parent=11 // pred_fallthru
          _
      $region12: #{aleatoric_net_pallas.1} parent=5 // pred_fallthru
        _
      %p227 = scmp.lt.s32.totalorder %s16, 2
      // Predicated region
      $region37: #{aleatoric_net_pallas.1} parent=5 // pred_check
        %p228 = pneg %p227
      $region38: #{aleatoric_net_pallas.1} parent=5 // pred_check_branch
        %230 = sbr.rel (%p228) target = $region40
      $region39: #{aleatoric_net_pallas.1} parent=5 // pred_region
        // Predicated region
        $region41: #{aleatoric_net_pallas.1} parent=39 // pred_check
          %p231 = pneg %p36
        $region42: #{aleatoric_net_pallas.1} parent=39 // pred_check_branch
          %233 = sbr.rel (%p231) target = $region44
        $region43: #{aleatoric_net_pallas.1} parent=39 // pred_region
          %s234 = smul.u32 4, %s16
          %p235 = scmp.lt.s32.totalorder %s234, 7
          %s236 = scalar_select %p235, %s234, 7
          %s237 = smul.addr %s236, 18
          %s238 = smul.addr %s237, 8
          %s239 = scalar_lea.vmem %s0, %s238
          %s240 = smul.u32 4, %s16
        $region44: #{aleatoric_net_pallas.1} parent=39 // pred_fallthru
          _
      $region40: #{aleatoric_net_pallas.1} parent=5 // pred_fallthru
        _
      %p241 = scmp.le.s32.totalorder 1, %s16
      %p242 = scmp.lt.s32.totalorder %s16, 3
      %p243 = pnand %p241, %p242
      %p244 = pneg %p243
      // Predicated region
      $region45: #{aleatoric_net_pallas.1} parent=5 // pred_check
        _
      $region46: #{aleatoric_net_pallas.1} parent=5 // pred_check_branch
        %246 = sbr.rel (%p243) target = $region48
      $region47: #{aleatoric_net_pallas.1} parent=5 // pred_region
        %s247 = ssub.s32 %s16, 1
        %s248 = smul.u32 4, %s21
        %p249 = scmp.lt.s32.totalorder %s248, 7
        %s250 = scalar_select %p249, %s248, 7
        %s251 = smul.addr %s250, 18
        %s252 = smul.addr %s251, 8
        %s253 = scalar_lea.vmem %s0, %s252
        %p254 = pneg %p42
        %p255 = pneg %p39
        %p256 = pneg %p63
        %p257 = pneg %p60
        %p258 = pneg %p84
        %p259 = pneg %p81
        %p260 = pneg %p105
        %p261 = pneg %p102
        %p262 = pneg %p126
        %p263 = pneg %p123
        %p264 = pneg %p147
        %p265 = pneg %p144
        %p266 = pneg %p168
        %p267 = pneg %p165
        %p268 = pneg %p194
        %p269 = pneg %p191
        %s270 = sand.u32 %s181, 1
        %s271 = scalar_lea.sflag [#allocation4], %s270
        %s272 = sand.u32 %s181, 1
        %s273 = smul.addr %s272, 32
        %s274 = scalar_lea.vmem [#allocation3], %s273
        %s275 = smul.u32 4, %s21
        %p276 = scmp.lt.s32.totalorder %s275, 7
        %s277 = scalar_select %p276, %s275, 7
        %s278 = smul.addr %s277, 18
        %s279 = smul.addr %s278, 8
        %s280 = scalar_lea.vmem %s0, %s279
        %s281 = smul.u32 4, %s21
        %v282 = vld [vmem:[%s4] sm:$0x1]
        %v283 = vld [vmem:[%s4 + $0x1] sm:$0x1]
        %v284 = vld [vmem:[%s4 + $0x2] sm:$0x1]
        %v285 = vld [vmem:[%s4 + $0x3] sm:$0x1]
        %v286 = vld [vmem:[%s4 + $0x4] sm:$0x1]
        %v287 = vld [vmem:[%s4 + $0x5] sm:$0x1]
        %v288 = vld [vmem:[%s4 + $0x6] sm:$0x1]
        %v289 = vld [vmem:[%s4 + $0x7] sm:$0x1]
        %v290 = vld [vmem:[%s4 + $0x8] sm:$0x1]
        %291 = vst [vmem:[#allocation2] sm:$0xff] 0.0
        %292 = vst [vmem:[#allocation2 + $0x8] sm:$0xff] 0.0
        %293 = vst [vmem:[#allocation2 + $0x10] sm:$0x1] 0.0
        %294 = vst [vmem:[#allocation2 + $0x18] sm:$0x1] 0.0
        %295 = vst [vmem:[#allocation2 + $0x20] sm:$0xff] 0.0
        %296 = vst [vmem:[#allocation2 + $0x28] sm:$0xff] 0.0
        %297 = vst [vmem:[#allocation2 + $0x30] sm:$0x1] 0.0
        %298 = vst [vmem:[#allocation2 + $0x38] sm:$0x1] 0.0
        %299 = vst [vmem:[#allocation2 + $0x40] sm:$0xff] 0.0
        %300 = vst [vmem:[#allocation2 + $0x48] sm:$0xff] 0.0
        %301 = vst [vmem:[#allocation2 + $0x50] sm:$0x1] 0.0
        %302 = vst [vmem:[#allocation2 + $0x58] sm:$0x1] 0.0
        %303 = vst [vmem:[#allocation2 + $0x60] sm:$0xff] 0.0
        %304 = vst [vmem:[#allocation2 + $0x68] sm:$0xff] 0.0
        %305 = vst [vmem:[#allocation2 + $0x70] sm:$0x1] 0.0
        %306 = vst [vmem:[#allocation2 + $0x78] sm:$0x1] 0.0
        %307 = vst [vmem:[#allocation2 + $0x80] sm:$0xff] 0.0
        %308 = vst [vmem:[#allocation2 + $0x88] sm:$0xff] 0.0
        %309 = vst [vmem:[#allocation2 + $0x90] sm:$0x1] 0.0
        %310 = vst [vmem:[#allocation2 + $0x98] sm:$0x1] 0.0
        %311 = vst [vmem:[#allocation2 + $0xa0] sm:$0xff] 0.0
        %312 = vst [vmem:[#allocation2 + $0xa8] sm:$0xff] 0.0
        %313 = vst [vmem:[#allocation2 + $0xb0] sm:$0x1] 0.0
        %314 = vst [vmem:[#allocation2 + $0xb8] sm:$0x1] 0.0
        %315 = vst [vmem:[#allocation2 + $0xc0] sm:$0xff] 0.0
        %316 = vst [vmem:[#allocation2 + $0xc8] sm:$0xff] 0.0
        %317 = vst [vmem:[#allocation2 + $0xd0] sm:$0x1] 0.0
        %318 = vst [vmem:[#allocation2 + $0xd8] sm:$0x1] 0.0
        %319 = vst [vmem:[#allocation2 + $0xe0] sm:$0xff] 0.0
        %320 = vst [vmem:[#allocation2 + $0xe8] sm:$0xff] 0.0
        %321 = vst [vmem:[#allocation2 + $0xf0] sm:$0x1] 0.0
        %322 = vst [vmem:[#allocation2 + $0xf8] sm:$0x1] 0.0
        %323 = vst [vmem:[#allocation2 + $0x100] sm:$0xff] 0.0
        %324 = vst [vmem:[#allocation2 + $0x108] sm:$0xff] 0.0
        %325 = vst [vmem:[#allocation2 + $0x110] sm:$0x1] 0.0
        %326 = vst [vmem:[#allocation2 + $0x118] sm:$0x1] 0.0
        %v327 = vld [vmem:[%s280] sm:$0xff]
        %v328 = vld [vmem:[%s280 + $0x10] sm:$0xff]
        %v329 = vld [vmem:[%s280 + $0x20] sm:$0xff]
        %v330 = vld [vmem:[%s280 + $0x30] sm:$0xff]
        %v331 = vld [vmem:[%s280 + $0x40] sm:$0xff]
        %v332 = vld [vmem:[%s280 + $0x50] sm:$0xff]
        %v333 = vld [vmem:[%s280 + $0x60] sm:$0xff]
        %v334 = vld [vmem:[%s280 + $0x70] sm:$0xff]
        %v335 = vld [vmem:[%s1] sm:$0xff]
        %v336 = vld [vmem:[%s1 + $0x8] sm:$0xf]
        %s337 = scalar_lea.vmem %s280, 144
        %v338 = vld [vmem:[%s337] sm:$0xff]
        %v339 = vld [vmem:[%s337 + $0x10] sm:$0xff]
        %v340 = vld [vmem:[%s337 + $0x20] sm:$0xff]
        %v341 = vld [vmem:[%s337 + $0x30] sm:$0xff]
        %v342 = vld [vmem:[%s337 + $0x40] sm:$0xff]
        %v343 = vld [vmem:[%s337 + $0x50] sm:$0xff]
        %v344 = vld [vmem:[%s337 + $0x60] sm:$0xff]
        %v345 = vld [vmem:[%s337 + $0x70] sm:$0xff]
        %s346 = scalar_lea.vmem %s1, 16
        %v347 = vld [vmem:[%s346] sm:$0xff]
        %v348 = vld [vmem:[%s346 + $0x8] sm:$0xf]
        %vm349 = vcmask 97280
        %v351 = vsel %vm349, %v338, 0
        %v354 = vsel %vm349, %v339, 0
        %v357 = vsel %vm349, %v340, 0
        %v360 = vsel %vm349, %v341, 0
        %v363 = vsel %vm349, %v342, 0
        %v366 = vsel %vm349, %v343, 0
        %v369 = vsel %vm349, %v344, 0
        %v372 = vsel %vm349, %v345, 0
        %vm374 = vcmask 1043456
        %v376 = vsel %vm374, %v348, 0
        %378 = vmatpush.msra.mxu0 0.0
        %379 = vmatpush.msra.mxu0 0.0
        %380 = vmatpush.msra.mxu0 0.0
        %381 = vmatpush.msra.mxu0 0.0
        %382 = vmatpush.msra.mxu0 0.0
        %383 = vmatpush.msra.mxu0 0.0
        %384 = vmatpush.msra.mxu0 0.0
        %385 = vmatpush.msra.mxu0 0.0
        %386 = vmatpush.msra.mxu0 0.0
        %387 = vmatpush.msra.mxu0 0.0
        %388 = vmatpush.msra.mxu0 0.0
        %389 = vmatpush.msra.mxu0 0.0
        %390 = vmatpush.msra.mxu0 0.0
        %391 = vmatpush.msra.mxu0 0.0
        %392 = vmatpush.msra.mxu0 %v376
        %393 = vmatpush.msra.mxu0 %v347
        %394 = vmatmul.f32.gmra.mxu0 %v351
        %v395 = vpop.f32.mrf.mxu0
        %v396 = vadd.f32 0.0, %v395
        %397 = vmatmul.f32.gmra.mxu0 %v354
        %v398 = vpop.f32.mrf.mxu0
        %v399 = vadd.f32 0.0, %v398
        %400 = vmatmul.f32.gmra.mxu0 %v357
        %v401 = vpop.f32.mrf.mxu0
        %v402 = vadd.f32 0.0, %v401
        %403 = vmatmul.f32.gmra.mxu0 %v360
        %v404 = vpop.f32.mrf.mxu0
        %v405 = vadd.f32 0.0, %v404
        %406 = vmatmul.f32.gmra.mxu0 %v363
        %v407 = vpop.f32.mrf.mxu0
        %v408 = vadd.f32 0.0, %v407
        %409 = vmatmul.f32.gmra.mxu0 %v366
        %v410 = vpop.f32.mrf.mxu0
        %v411 = vadd.f32 0.0, %v410
        %412 = vmatmul.f32.gmra.mxu0 %v369
        %v413 = vpop.f32.mrf.mxu0
        %v414 = vadd.f32 0.0, %v413
        %415 = vmatmul.f32.gmra.mxu0 %v372
        %v416 = vpop.f32.mrf.mxu0
        %v417 = vadd.f32 0.0, %v416
        %418 = vdwg.mxu0
        %v420 = vsel %vm349, %v327, 0
        %v423 = vsel %vm349, %v328, 0
        %v426 = vsel %vm349, %v329, 0
        %v429 = vsel %vm349, %v330, 0
        %v432 = vsel %vm349, %v331, 0
        %v435 = vsel %vm349, %v332, 0
        %v438 = vsel %vm349, %v333, 0
        %v441 = vsel %vm349, %v334, 0
        %v444 = vsel %vm374, %v336, 0
        %446 = vmatpush.msra.mxu0 0.0
        %447 = vmatpush.msra.mxu0 0.0
        %448 = vmatpush.msra.mxu0 0.0
        %449 = vmatpush.msra.mxu0 0.0
        %450 = vmatpush.msra.mxu0 0.0
        %451 = vmatpush.msra.mxu0 0.0
        %452 = vmatpush.msra.mxu0 0.0
        %453 = vmatpush.msra.mxu0 0.0
        %454 = vmatpush.msra.mxu0 0.0
        %455 = vmatpush.msra.mxu0 0.0
        %456 = vmatpush.msra.mxu0 0.0
        %457 = vmatpush.msra.mxu0 0.0
        %458 = vmatpush.msra.mxu0 0.0
        %459 = vmatpush.msra.mxu0 0.0
        %460 = vmatpush.msra.mxu0 %v444
        %461 = vmatpush.msra.mxu0 %v335
        %462 = vmatmul.f32.gmra.mxu0 %v420
        %v463 = vpop.f32.mrf.mxu0
        %v464 = vadd.f32 %v396, %v463
        %465 = vmatmul.f32.gmra.mxu0 %v423
        %v466 = vpop.f32.mrf.mxu0
        %v467 = vadd.f32 %v399, %v466
        %468 = vmatmul.f32.gmra.mxu0 %v426
        %v469 = vpop.f32.mrf.mxu0
        %v470 = vadd.f32 %v402, %v469
        %471 = vmatmul.f32.gmra.mxu0 %v429
        %v472 = vpop.f32.mrf.mxu0
        %v473 = vadd.f32 %v405, %v472
        %474 = vmatmul.f32.gmra.mxu0 %v432
        %v475 = vpop.f32.mrf.mxu0
        %v476 = vadd.f32 %v408, %v475
        %477 = vmatmul.f32.gmra.mxu0 %v435
        %v478 = vpop.f32.mrf.mxu0
        %v479 = vadd.f32 %v411, %v478
        %480 = vmatmul.f32.gmra.mxu0 %v438
        %v481 = vpop.f32.mrf.mxu0
        %v482 = vadd.f32 %v414, %v481
        %483 = vmatmul.f32.gmra.mxu0 %v441
        %v484 = vpop.f32.mrf.mxu0
        %v485 = vadd.f32 %v417, %v484
        %486 = vdwg.mxu0
        %s487 = scalar_lea.vmem %s280, 288
        %v488 = vld [vmem:[%s487] sm:$0xff]
        %v489 = vld [vmem:[%s487 + $0x10] sm:$0xff]
        %v490 = vld [vmem:[%s487 + $0x20] sm:$0xff]
        %v491 = vld [vmem:[%s487 + $0x30] sm:$0xff]
        %v492 = vld [vmem:[%s487 + $0x40] sm:$0xff]
        %v493 = vld [vmem:[%s487 + $0x50] sm:$0xff]
        %v494 = vld [vmem:[%s487 + $0x60] sm:$0xff]
        %v495 = vld [vmem:[%s487 + $0x70] sm:$0xff]
        %s496 = scalar_lea.vmem %s1, 32
        %v497 = vld [vmem:[%s496] sm:$0xff]
        %v498 = vld [vmem:[%s496 + $0x8] sm:$0xf]
        %v500 = vsel %vm349, %v488, 0
        %v503 = vsel %vm349, %v489, 0
        %v506 = vsel %vm349, %v490, 0
        %v509 = vsel %vm349, %v491, 0
        %v512 = vsel %vm349, %v492, 0
        %v515 = vsel %vm349, %v493, 0
        %v518 = vsel %vm349, %v494, 0
        %v521 = vsel %vm349, %v495, 0
        %v524 = vsel %vm374, %v498, 0
        %526 = vmatpush.msra.mxu0 0.0
        %527 = vmatpush.msra.mxu0 0.0
        %528 = vmatpush.msra.mxu0 0.0
        %529 = vmatpush.msra.mxu0 0.0
        %530 = vmatpush.msra.mxu0 0.0
        %531 = vmatpush.msra.mxu0 0.0
        %532 = vmatpush.msra.mxu0 0.0
        %533 = vmatpush.msra.mxu0 0.0
        %534 = vmatpush.msra.mxu0 0.0
        %535 = vmatpush.msra.mxu0 0.0
        %536 = vmatpush.msra.mxu0 0.0
        %537 = vmatpush.msra.mxu0 0.0
        %538 = vmatpush.msra.mxu0 0.0
        %539 = vmatpush.msra.mxu0 0.0
        %540 = vmatpush.msra.mxu0 %v524
        %541 = vmatpush.msra.mxu0 %v497
        %542 = vmatmul.f32.gmra.mxu0 %v500
        %v543 = vpop.f32.mrf.mxu0
        %v544 = vadd.f32 0.0, %v543
        %545 = vmatmul.f32.gmra.mxu0 %v503
        %v546 = vpop.f32.mrf.mxu0
        %v547 = vadd.f32 0.0, %v546
        %548 = vmatmul.f32.gmra.mxu0 %v506
        %v549 = vpop.f32.mrf.mxu0
        %v550 = vadd.f32 0.0, %v549
        %551 = vmatmul.f32.gmra.mxu0 %v509
        %v552 = vpop.f32.mrf.mxu0
        %v553 = vadd.f32 0.0, %v552
        %554 = vmatmul.f32.gmra.mxu0 %v512
        %v555 = vpop.f32.mrf.mxu0
        %v556 = vadd.f32 0.0, %v555
        %557 = vmatmul.f32.gmra.mxu0 %v515
        %v558 = vpop.f32.mrf.mxu0
        %v559 = vadd.f32 0.0, %v558
        %560 = vmatmul.f32.gmra.mxu0 %v518
        %v561 = vpop.f32.mrf.mxu0
        %v562 = vadd.f32 0.0, %v561
        %563 = vmatmul.f32.gmra.mxu0 %v521
        %v564 = vpop.f32.mrf.mxu0
        %v565 = vadd.f32 0.0, %v564
        %566 = vdwg.mxu0
        %v567 = vadd.f32 %v464, %v544
        %v568 = vadd.f32 %v467, %v547
        %v569 = vadd.f32 %v470, %v550
        %v570 = vadd.f32 %v473, %v553
        %v571 = vadd.f32 %v476, %v556
        %v572 = vadd.f32 %v479, %v559
        %v573 = vadd.f32 %v482, %v562
        %v574 = vadd.f32 %v485, %v565
        %s575 = scalar_lea.vmem %s280, 432
        %v576 = vld [vmem:[%s575] sm:$0xff]
        %v577 = vld [vmem:[%s575 + $0x10] sm:$0xff]
        %v578 = vld [vmem:[%s575 + $0x20] sm:$0xff]
        %v579 = vld [vmem:[%s575 + $0x30] sm:$0xff]
        %v580 = vld [vmem:[%s575 + $0x40] sm:$0xff]
        %v581 = vld [vmem:[%s575 + $0x50] sm:$0xff]
        %v582 = vld [vmem:[%s575 + $0x60] sm:$0xff]
        %v583 = vld [vmem:[%s575 + $0x70] sm:$0xff]
        %s584 = scalar_lea.vmem %s1, 48
        %v585 = vld [vmem:[%s584] sm:$0xff]
        %v586 = vld [vmem:[%s584 + $0x8] sm:$0xf]
        %v588 = vsel %vm349, %v576, 0
        %v591 = vsel %vm349, %v577, 0
        %v594 = vsel %vm349, %v578, 0
        %v597 = vsel %vm349, %v579, 0
        %v600 = vsel %vm349, %v580, 0
        %v603 = vsel %vm349, %v581, 0
        %v606 = vsel %vm349, %v582, 0
        %v609 = vsel %vm349, %v583, 0
        %v612 = vsel %vm374, %v586, 0
        %614 = vmatpush.msra.mxu0 0.0
        %615 = vmatpush.msra.mxu0 0.0
        %616 = vmatpush.msra.mxu0 0.0
        %617 = vmatpush.msra.mxu0 0.0
        %618 = vmatpush.msra.mxu0 0.0
        %619 = vmatpush.msra.mxu0 0.0
        %620 = vmatpush.msra.mxu0 0.0
        %621 = vmatpush.msra.mxu0 0.0
        %622 = vmatpush.msra.mxu0 0.0
        %623 = vmatpush.msra.mxu0 0.0
        %624 = vmatpush.msra.mxu0 0.0
        %625 = vmatpush.msra.mxu0 0.0
        %626 = vmatpush.msra.mxu0 0.0
        %627 = vmatpush.msra.mxu0 0.0
        %628 = vmatpush.msra.mxu0 %v612
        %629 = vmatpush.msra.mxu0 %v585
        %630 = vmatmul.f32.gmra.mxu0 %v588
        %v631 = vpop.f32.mrf.mxu0
        %v632 = vadd.f32 0.0, %v631
        %633 = vmatmul.f32.gmra.mxu0 %v591
        %v634 = vpop.f32.mrf.mxu0
        %v635 = vadd.f32 0.0, %v634
        %636 = vmatmul.f32.gmra.mxu0 %v594
        %v637 = vpop.f32.mrf.mxu0
        %v638 = vadd.f32 0.0, %v637
        %639 = vmatmul.f32.gmra.mxu0 %v597
        %v640 = vpop.f32.mrf.mxu0
        %v641 = vadd.f32 0.0, %v640
        %642 = vmatmul.f32.gmra.mxu0 %v600
        %v643 = vpop.f32.mrf.mxu0
        %v644 = vadd.f32 0.0, %v643
        %645 = vmatmul.f32.gmra.mxu0 %v603
        %v646 = vpop.f32.mrf.mxu0
        %v647 = vadd.f32 0.0, %v646
        %648 = vmatmul.f32.gmra.mxu0 %v606
        %v649 = vpop.f32.mrf.mxu0
        %v650 = vadd.f32 0.0, %v649
        %651 = vmatmul.f32.gmra.mxu0 %v609
        %v652 = vpop.f32.mrf.mxu0
        %v653 = vadd.f32 0.0, %v652
        %654 = vdwg.mxu0
        %v655 = vadd.f32 %v567, %v632
        %v656 = vadd.f32 %v568, %v635
        %v657 = vadd.f32 %v569, %v638
        %v658 = vadd.f32 %v570, %v641
        %v659 = vadd.f32 %v571, %v644
        %v660 = vadd.f32 %v572, %v647
        %v661 = vadd.f32 %v573, %v650
        %v662 = vadd.f32 %v574, %v653
        %v663 = vperm.slane %v282, 0
        %v664 = vmul.f32 %v655, %v663
        %v665 = vmul.f32 %v656, %v663
        %v666 = vmul.f32 %v657, %v663
        %v667 = vmul.f32 %v658, %v663
        %v668 = vmul.f32 %v659, %v663
        %v669 = vmul.f32 %v660, %v663
        %v670 = vmul.f32 %v661, %v663
        %v671 = vmul.f32 %v662, %v663
        %v672 = vperm.slane %v283, 0
        %v673 = vadd.f32 %v664, %v672
        %v674 = vadd.f32 %v665, %v672
        %v675 = vadd.f32 %v666, %v672
        %v676 = vadd.f32 %v667, %v672
        %v677 = vadd.f32 %v668, %v672
        %v678 = vadd.f32 %v669, %v672
        %v679 = vadd.f32 %v670, %v672
        %v680 = vadd.f32 %v671, %v672
        %v681 = vmax.f32 %v673, 0.0
        %v682 = vmax.f32 %v674, 0.0
        %v683 = vmax.f32 %v675, 0.0
        %v684 = vmax.f32 %v676, 0.0
        %v685 = vmax.f32 %v677, 0.0
        %v686 = vmax.f32 %v678, 0.0
        %v687 = vmax.f32 %v679, 0.0
        %v688 = vmax.f32 %v680, 0.0
        %697 = vrot.lane.b32.xlu0 %v681, 64
        %v698 = vpop.permute.xlu0 %697
        %699 = vrot.lane.b32.xlu0 %v682, 64
        %v700 = vpop.permute.xlu0 %699
        %701 = vrot.lane.b32.xlu0 %v683, 64
        %v702 = vpop.permute.xlu0 %701
        %703 = vrot.lane.b32.xlu0 %v684, 64
        %v704 = vpop.permute.xlu0 %703
        %705 = vrot.lane.b32.xlu0 %v685, 64
        %v706 = vpop.permute.xlu0 %705
        %707 = vrot.lane.b32.xlu0 %v686, 64
        %v708 = vpop.permute.xlu0 %707
        %709 = vrot.lane.b32.xlu0 %v687, 64
        %v710 = vpop.permute.xlu0 %709
        %711 = vrot.lane.b32.xlu0 %v688, 64
        %v712 = vpop.permute.xlu0 %711
        %vm721 = vcmask 1048064
        %722 = vst.msk [vmem:[#allocation2 + $0x8] sm:$0xff] %vm721, %v698
        %723 = vst.msk [vmem:[#allocation2 + $0x28] sm:$0xff] %vm721, %v700
        %724 = vst.msk [vmem:[#allocation2 + $0x48] sm:$0xff] %vm721, %v702
        %725 = vst.msk [vmem:[#allocation2 + $0x68] sm:$0xff] %vm721, %v704
        %726 = vst.msk [vmem:[#allocation2 + $0x88] sm:$0xff] %vm721, %v706
        %727 = vst.msk [vmem:[#allocation2 + $0xa8] sm:$0xff] %vm721, %v708
        %728 = vst.msk [vmem:[#allocation2 + $0xc8] sm:$0xff] %vm721, %v710
        %729 = vst.msk [vmem:[#allocation2 + $0xe8] sm:$0xff] %vm721, %v712
        %v730 = vld [vmem:[%s337] sm:$0xff]
        %v731 = vld [vmem:[%s337 + $0x10] sm:$0xff]
        %v732 = vld [vmem:[%s337 + $0x20] sm:$0xff]
        %v733 = vld [vmem:[%s337 + $0x30] sm:$0xff]
        %v734 = vld [vmem:[%s337 + $0x40] sm:$0xff]
        %v735 = vld [vmem:[%s337 + $0x50] sm:$0xff]
        %v736 = vld [vmem:[%s337 + $0x60] sm:$0xff]
        %v737 = vld [vmem:[%s337 + $0x70] sm:$0xff]
        %v738 = vld [vmem:[%s1] sm:$0xff]
        %v739 = vld [vmem:[%s1 + $0x8] sm:$0xf]
        %v740 = vld [vmem:[%s280 + $0x1] sm:$0xff]
        %v741 = vld [vmem:[%s280 + $0x11] sm:$0xff]
        %v742 = vld [vmem:[%s280 + $0x21] sm:$0xff]
        %v743 = vld [vmem:[%s280 + $0x31] sm:$0xff]
        %v744 = vld [vmem:[%s280 + $0x41] sm:$0xff]
        %v745 = vld [vmem:[%s280 + $0x51] sm:$0xff]
        %v746 = vld [vmem:[%s280 + $0x61] sm:$0xff]
        %v747 = vld [vmem:[%s280 + $0x71] sm:$0xff]
        %v748 = vld [vmem:[%s346] sm:$0xff]
        %v749 = vld [vmem:[%s346 + $0x8] sm:$0xf]
        %v751 = vsel %vm349, %v740, 0
        %v754 = vsel %vm349, %v741, 0
        %v757 = vsel %vm349, %v742, 0
        %v760 = vsel %vm349, %v743, 0
        %v763 = vsel %vm349, %v744, 0
        %v766 = vsel %vm349, %v745, 0
        %v769 = vsel %vm349, %v746, 0
        %v772 = vsel %vm349, %v747, 0
        %v775 = vsel %vm374, %v749, 0
        %777 = vmatpush.msra.mxu0 0.0
        %778 = vmatpush.msra.mxu0 0.0
        %779 = vmatpush.msra.mxu0 0.0
        %780 = vmatpush.msra.mxu0 0.0
        %781 = vmatpush.msra.mxu0 0.0
        %782 = vmatpush.msra.mxu0 0.0
        %783 = vmatpush.msra.mxu0 0.0
        %784 = vmatpush.msra.mxu0 0.0
        %785 = vmatpush.msra.mxu0 0.0
        %786 = vmatpush.msra.mxu0 0.0
        %787 = vmatpush.msra.mxu0 0.0
        %788 = vmatpush.msra.mxu0 0.0
        %789 = vmatpush.msra.mxu0 0.0
        %790 = vmatpush.msra.mxu0 0.0
        %791 = vmatpush.msra.mxu0 %v775
        %792 = vmatpush.msra.mxu0 %v748
        %793 = vmatmul.f32.gmra.mxu0 %v751
        %v794 = vpop.f32.mrf.mxu0
        %v795 = vadd.f32 0.0, %v794
        %796 = vmatmul.f32.gmra.mxu0 %v754
        %v797 = vpop.f32.mrf.mxu0
        %v798 = vadd.f32 0.0, %v797
        %799 = vmatmul.f32.gmra.mxu0 %v757
        %v800 = vpop.f32.mrf.mxu0
        %v801 = vadd.f32 0.0, %v800
        %802 = vmatmul.f32.gmra.mxu0 %v760
        %v803 = vpop.f32.mrf.mxu0
        %v804 = vadd.f32 0.0, %v803
        %805 = vmatmul.f32.gmra.mxu0 %v763
        %v806 = vpop.f32.mrf.mxu0
        %v807 = vadd.f32 0.0, %v806
        %808 = vmatmul.f32.gmra.mxu0 %v766
        %v809 = vpop.f32.mrf.mxu0
        %v810 = vadd.f32 0.0, %v809
        %811 = vmatmul.f32.gmra.mxu0 %v769
        %v812 = vpop.f32.mrf.mxu0
        %v813 = vadd.f32 0.0, %v812
        %814 = vmatmul.f32.gmra.mxu0 %v772
        %v815 = vpop.f32.mrf.mxu0
        %v816 = vadd.f32 0.0, %v815
        %817 = vdwg.mxu0
        %v819 = vsel %vm349, %v730, 0
        %v822 = vsel %vm349, %v731, 0
        %v825 = vsel %vm349, %v732, 0
        %v828 = vsel %vm349, %v733, 0
        %v831 = vsel %vm349, %v734, 0
        %v834 = vsel %vm349, %v735, 0
        %v837 = vsel %vm349, %v736, 0
        %v840 = vsel %vm349, %v737, 0
        %v843 = vsel %vm374, %v739, 0
        %845 = vmatpush.msra.mxu0 0.0
        %846 = vmatpush.msra.mxu0 0.0
        %847 = vmatpush.msra.mxu0 0.0
        %848 = vmatpush.msra.mxu0 0.0
        %849 = vmatpush.msra.mxu0 0.0
        %850 = vmatpush.msra.mxu0 0.0
        %851 = vmatpush.msra.mxu0 0.0
        %852 = vmatpush.msra.mxu0 0.0
        %853 = vmatpush.msra.mxu0 0.0
        %854 = vmatpush.msra.mxu0 0.0
        %855 = vmatpush.msra.mxu0 0.0
        %856 = vmatpush.msra.mxu0 0.0
        %857 = vmatpush.msra.mxu0 0.0
        %858 = vmatpush.msra.mxu0 0.0
        %859 = vmatpush.msra.mxu0 %v843
        %860 = vmatpush.msra.mxu0 %v738
        %861 = vmatmul.f32.gmra.mxu0 %v819
        %v862 = vpop.f32.mrf.mxu0
        %v863 = vadd.f32 %v795, %v862
        %864 = vmatmul.f32.gmra.mxu0 %v822
        %v865 = vpop.f32.mrf.mxu0
        %v866 = vadd.f32 %v798, %v865
        %867 = vmatmul.f32.gmra.mxu0 %v825
        %v868 = vpop.f32.mrf.mxu0
        %v869 = vadd.f32 %v801, %v868
        %870 = vmatmul.f32.gmra.mxu0 %v828
        %v871 = vpop.f32.mrf.mxu0
        %v872 = vadd.f32 %v804, %v871
        %873 = vmatmul.f32.gmra.mxu0 %v831
        %v874 = vpop.f32.mrf.mxu0
        %v875 = vadd.f32 %v807, %v874
        %876 = vmatmul.f32.gmra.mxu0 %v834
        %v877 = vpop.f32.mrf.mxu0
        %v878 = vadd.f32 %v810, %v877
        %879 = vmatmul.f32.gmra.mxu0 %v837
        %v880 = vpop.f32.mrf.mxu0
        %v881 = vadd.f32 %v813, %v880
        %882 = vmatmul.f32.gmra.mxu0 %v840
        %v883 = vpop.f32.mrf.mxu0
        %v884 = vadd.f32 %v816, %v883
        %885 = vdwg.mxu0
        %v886 = vld [vmem:[%s575] sm:$0xff]
        %v887 = vld [vmem:[%s575 + $0x10] sm:$0xff]
        %v888 = vld [vmem:[%s575 + $0x20] sm:$0xff]
        %v889 = vld [vmem:[%s575 + $0x30] sm:$0xff]
        %v890 = vld [vmem:[%s575 + $0x40] sm:$0xff]
        %v891 = vld [vmem:[%s575 + $0x50] sm:$0xff]
        %v892 = vld [vmem:[%s575 + $0x60] sm:$0xff]
        %v893 = vld [vmem:[%s575 + $0x70] sm:$0xff]
        %v894 = vld [vmem:[%s496] sm:$0xff]
        %v895 = vld [vmem:[%s496 + $0x8] sm:$0xf]
        %v897 = vsel %vm349, %v886, 0
        %v900 = vsel %vm349, %v887, 0
        %v903 = vsel %vm349, %v888, 0
        %v906 = vsel %vm349, %v889, 0
        %v909 = vsel %vm349, %v890, 0
        %v912 = vsel %vm349, %v891, 0
        %v915 = vsel %vm349, %v892, 0
        %v918 = vsel %vm349, %v893, 0
        %v921 = vsel %vm374, %v895, 0
        %923 = vmatpush.msra.mxu0 0.0
        %924 = vmatpush.msra.mxu0 0.0
        %925 = vmatpush.msra.mxu0 0.0
        %926 = vmatpush.msra.mxu0 0.0
        %927 = vmatpush.msra.mxu0 0.0
        %928 = vmatpush.msra.mxu0 0.0
        %929 = vmatpush.msra.mxu0 0.0
        %930 = vmatpush.msra.mxu0 0.0
        %931 = vmatpush.msra.mxu0 0.0
        %932 = vmatpush.msra.mxu0 0.0
        %933 = vmatpush.msra.mxu0 0.0
        %934 = vmatpush.msra.mxu0 0.0
        %935 = vmatpush.msra.mxu0 0.0
        %936 = vmatpush.msra.mxu0 0.0
        %937 = vmatpush.msra.mxu0 %v921
        %938 = vmatpush.msra.mxu0 %v894
        %939 = vmatmul.f32.gmra.mxu0 %v897
        %v940 = vpop.f32.mrf.mxu0
        %v941 = vadd.f32 0.0, %v940
        %942 = vmatmul.f32.gmra.mxu0 %v900
        %v943 = vpop.f32.mrf.mxu0
        %v944 = vadd.f32 0.0, %v943
        %945 = vmatmul.f32.gmra.mxu0 %v903
        %v946 = vpop.f32.mrf.mxu0
        %v947 = vadd.f32 0.0, %v946
        %948 = vmatmul.f32.gmra.mxu0 %v906
        %v949 = vpop.f32.mrf.mxu0
        %v950 = vadd.f32 0.0, %v949
        %951 = vmatmul.f32.gmra.mxu0 %v909
        %v952 = vpop.f32.mrf.mxu0
        %v953 = vadd.f32 0.0, %v952
        %954 = vmatmul.f32.gmra.mxu0 %v912
        %v955 = vpop.f32.mrf.mxu0
        %v956 = vadd.f32 0.0, %v955
        %957 = vmatmul.f32.gmra.mxu0 %v915
        %v958 = vpop.f32.mrf.mxu0
        %v959 = vadd.f32 0.0, %v958
        %960 = vmatmul.f32.gmra.mxu0 %v918
        %v961 = vpop.f32.mrf.mxu0
        %v962 = vadd.f32 0.0, %v961
        %963 = vdwg.mxu0
        %v964 = vadd.f32 %v863, %v941
        %v965 = vadd.f32 %v866, %v944
        %v966 = vadd.f32 %v869, %v947
        %v967 = vadd.f32 %v872, %v950
        %v968 = vadd.f32 %v875, %v953
        %v969 = vadd.f32 %v878, %v956
        %v970 = vadd.f32 %v881, %v959
        %v971 = vadd.f32 %v884, %v962
        %v972 = vld [vmem:[%s487 + $0x1] sm:$0xff]
        %v973 = vld [vmem:[%s487 + $0x11] sm:$0xff]
        %v974 = vld [vmem:[%s487 + $0x21] sm:$0xff]
        %v975 = vld [vmem:[%s487 + $0x31] sm:$0xff]
        %v976 = vld [vmem:[%s487 + $0x41] sm:$0xff]
        %v977 = vld [vmem:[%s487 + $0x51] sm:$0xff]
        %v978 = vld [vmem:[%s487 + $0x61] sm:$0xff]
        %v979 = vld [vmem:[%s487 + $0x71] sm:$0xff]
        %v980 = vld [vmem:[%s584] sm:$0xff]
        %v981 = vld [vmem:[%s584 + $0x8] sm:$0xf]
        %v983 = vsel %vm349, %v972, 0
        %v986 = vsel %vm349, %v973, 0
        %v989 = vsel %vm349, %v974, 0
        %v992 = vsel %vm349, %v975, 0
        %v995 = vsel %vm349, %v976, 0
        %v998 = vsel %vm349, %v977, 0
        %v1001 = vsel %vm349, %v978, 0
        %v1004 = vsel %vm349, %v979, 0
        %v1007 = vsel %vm374, %v981, 0
        %1009 = vmatpush.msra.mxu0 0.0
        %1010 = vmatpush.msra.mxu0 0.0
        %1011 = vmatpush.msra.mxu0 0.0
        %1012 = vmatpush.msra.mxu0 0.0
        %1013 = vmatpush.msra.mxu0 0.0
        %1014 = vmatpush.msra.mxu0 0.0
        %1015 = vmatpush.msra.mxu0 0.0
        %1016 = vmatpush.msra.mxu0 0.0
        %1017 = vmatpush.msra.mxu0 0.0
        %1018 = vmatpush.msra.mxu0 0.0
        %1019 = vmatpush.msra.mxu0 0.0
        %1020 = vmatpush.msra.mxu0 0.0
        %1021 = vmatpush.msra.mxu0 0.0
        %1022 = vmatpush.msra.mxu0 0.0
        %1023 = vmatpush.msra.mxu0 %v1007
        %1024 = vmatpush.msra.mxu0 %v980
        %1025 = vmatmul.f32.gmra.mxu0 %v983
        %v1026 = vpop.f32.mrf.mxu0
        %v1027 = vadd.f32 0.0, %v1026
        %1028 = vmatmul.f32.gmra.mxu0 %v986
        %v1029 = vpop.f32.mrf.mxu0
        %v1030 = vadd.f32 0.0, %v1029
        %1031 = vmatmul.f32.gmra.mxu0 %v989
        %v1032 = vpop.f32.mrf.mxu0
        %v1033 = vadd.f32 0.0, %v1032
        %1034 = vmatmul.f32.gmra.mxu0 %v992
        %v1035 = vpop.f32.mrf.mxu0
        %v1036 = vadd.f32 0.0, %v1035
        %1037 = vmatmul.f32.gmra.mxu0 %v995
        %v1038 = vpop.f32.mrf.mxu0
        %v1039 = vadd.f32 0.0, %v1038
        %1040 = vmatmul.f32.gmra.mxu0 %v998
        %v1041 = vpop.f32.mrf.mxu0
        %v1042 = vadd.f32 0.0, %v1041
        %1043 = vmatmul.f32.gmra.mxu0 %v1001
        %v1044 = vpop.f32.mrf.mxu0
        %v1045 = vadd.f32 0.0, %v1044
        %1046 = vmatmul.f32.gmra.mxu0 %v1004
        %v1047 = vpop.f32.mrf.mxu0
        %v1048 = vadd.f32 0.0, %v1047
        %1049 = vdwg.mxu0
        %v1050 = vadd.f32 %v964, %v1027
        %v1051 = vadd.f32 %v965, %v1030
        %v1052 = vadd.f32 %v966, %v1033
        %v1053 = vadd.f32 %v967, %v1036
        %v1054 = vadd.f32 %v968, %v1039
        %v1055 = vadd.f32 %v969, %v1042
        %v1056 = vadd.f32 %v970, %v1045
        %v1057 = vadd.f32 %v971, %v1048
        %v1058 = vmul.f32 %v1050, %v663
        %v1059 = vmul.f32 %v1051, %v663
        %v1060 = vmul.f32 %v1052, %v663
        %v1061 = vmul.f32 %v1053, %v663
        %v1062 = vmul.f32 %v1054, %v663
        %v1063 = vmul.f32 %v1055, %v663
        %v1064 = vmul.f32 %v1056, %v663
        %v1065 = vmul.f32 %v1057, %v663
        %v1066 = vadd.f32 %v1058, %v672
        %v1067 = vadd.f32 %v1059, %v672
        %v1068 = vadd.f32 %v1060, %v672
        %v1069 = vadd.f32 %v1061, %v672
        %v1070 = vadd.f32 %v1062, %v672
        %v1071 = vadd.f32 %v1063, %v672
        %v1072 = vadd.f32 %v1064, %v672
        %v1073 = vadd.f32 %v1065, %v672
        %v1074 = vmax.f32 %v1066, 0.0
        %v1075 = vmax.f32 %v1067, 0.0
        %v1076 = vmax.f32 %v1068, 0.0
        %v1077 = vmax.f32 %v1069, 0.0
        %v1078 = vmax.f32 %v1070, 0.0
        %v1079 = vmax.f32 %v1071, 0.0
        %v1080 = vmax.f32 %v1072, 0.0
        %v1081 = vmax.f32 %v1073, 0.0
        %v1090 = vrot.slane %v1074, 7
        %v1091 = vrot.slane %v1075, 7
        %v1092 = vrot.slane %v1076, 7
        %v1093 = vrot.slane %v1077, 7
        %v1094 = vrot.slane %v1078, 7
        %v1095 = vrot.slane %v1079, 7
        %v1096 = vrot.slane %v1080, 7
        %v1097 = vrot.slane %v1081, 7
        %vm1106 = vcmask 523265
        %1107 = vst.msk [vmem:[#allocation2 + $0x8] sm:$0xfe] %vm1106, %v1090
        %vm1108 = vcmask 516096
        %1109 = vst.msk [vmem:[#allocation2 + $0x18] sm:$0x1] %vm1108, %v1090
        %1110 = vst.msk [vmem:[#allocation2 + $0x28] sm:$0xfe] %vm1106, %v1091
        %1111 = vst.msk [vmem:[#allocation2 + $0x38] sm:$0x1] %vm1108, %v1091
        %1112 = vst.msk [vmem:[#allocation2 + $0x48] sm:$0xfe] %vm1106, %v1092
        %1113 = vst.msk [vmem:[#allocation2 + $0x58] sm:$0x1] %vm1108, %v1092
        %1114 = vst.msk [vmem:[#allocation2 + $0x68] sm:$0xfe] %vm1106, %v1093
        %1115 = vst.msk [vmem:[#allocation2 + $0x78] sm:$0x1] %vm1108, %v1093
        %1116 = vst.msk [vmem:[#allocation2 + $0x88] sm:$0xfe] %vm1106, %v1094
        %1117 = vst.msk [vmem:[#allocation2 + $0x98] sm:$0x1] %vm1108, %v1094
        %1118 = vst.msk [vmem:[#allocation2 + $0xa8] sm:$0xfe] %vm1106, %v1095
        %1119 = vst.msk [vmem:[#allocation2 + $0xb8] sm:$0x1] %vm1108, %v1095
        %1120 = vst.msk [vmem:[#allocation2 + $0xc8] sm:$0xfe] %vm1106, %v1096
        %1121 = vst.msk [vmem:[#allocation2 + $0xd8] sm:$0x1] %vm1108, %v1096
        %1122 = vst.msk [vmem:[#allocation2 + $0xe8] sm:$0xfe] %vm1106, %v1097
        %1123 = vst.msk [vmem:[#allocation2 + $0xf8] sm:$0x1] %vm1108, %v1097
        %v1124 = vld [vmem:[%s487] sm:$0xff]
        %v1125 = vld [vmem:[%s487 + $0x10] sm:$0xff]
        %v1126 = vld [vmem:[%s487 + $0x20] sm:$0xff]
        %v1127 = vld [vmem:[%s487 + $0x30] sm:$0xff]
        %v1128 = vld [vmem:[%s487 + $0x40] sm:$0xff]
        %v1129 = vld [vmem:[%s487 + $0x50] sm:$0xff]
        %v1130 = vld [vmem:[%s487 + $0x60] sm:$0xff]
        %v1131 = vld [vmem:[%s487 + $0x70] sm:$0xff]
        %v1132 = vld [vmem:[%s1] sm:$0xff]
        %v1133 = vld [vmem:[%s1 + $0x8] sm:$0xf]
        %v1134 = vld [vmem:[%s575] sm:$0xff]
        %v1135 = vld [vmem:[%s575 + $0x10] sm:$0xff]
        %v1136 = vld [vmem:[%s575 + $0x20] sm:$0xff]
        %v1137 = vld [vmem:[%s575 + $0x30] sm:$0xff]
        %v1138 = vld [vmem:[%s575 + $0x40] sm:$0xff]
        %v1139 = vld [vmem:[%s575 + $0x50] sm:$0xff]
        %v1140 = vld [vmem:[%s575 + $0x60] sm:$0xff]
        %v1141 = vld [vmem:[%s575 + $0x70] sm:$0xff]
        %v1142 = vld [vmem:[%s346] sm:$0xff]
        %v1143 = vld [vmem:[%s346 + $0x8] sm:$0xf]
        %v1145 = vsel %vm349, %v1134, 0
        %v1148 = vsel %vm349, %v1135, 0
        %v1151 = vsel %vm349, %v1136, 0
        %v1154 = vsel %vm349, %v1137, 0
        %v1157 = vsel %vm349, %v1138, 0
        %v1160 = vsel %vm349, %v1139, 0
        %v1163 = vsel %vm349, %v1140, 0
        %v1166 = vsel %vm349, %v1141, 0
        %v1169 = vsel %vm374, %v1143, 0
        %1171 = vmatpush.msra.mxu0 0.0
        %1172 = vmatpush.msra.mxu0 0.0
        %1173 = vmatpush.msra.mxu0 0.0
        %1174 = vmatpush.msra.mxu0 0.0
        %1175 = vmatpush.msra.mxu0 0.0
        %1176 = vmatpush.msra.mxu0 0.0
        %1177 = vmatpush.msra.mxu0 0.0
        %1178 = vmatpush.msra.mxu0 0.0
        %1179 = vmatpush.msra.mxu0 0.0
        %1180 = vmatpush.msra.mxu0 0.0
        %1181 = vmatpush.msra.mxu0 0.0
        %1182 = vmatpush.msra.mxu0 0.0
        %1183 = vmatpush.msra.mxu0 0.0
        %1184 = vmatpush.msra.mxu0 0.0
        %1185 = vmatpush.msra.mxu0 %v1169
        %1186 = vmatpush.msra.mxu0 %v1142
        %1187 = vmatmul.f32.gmra.mxu0 %v1145
        %v1188 = vpop.f32.mrf.mxu0
        %v1189 = vadd.f32 0.0, %v1188
        %1190 = vmatmul.f32.gmra.mxu0 %v1148
        %v1191 = vpop.f32.mrf.mxu0
        %v1192 = vadd.f32 0.0, %v1191
        %1193 = vmatmul.f32.gmra.mxu0 %v1151
        %v1194 = vpop.f32.mrf.mxu0
        %v1195 = vadd.f32 0.0, %v1194
        %1196 = vmatmul.f32.gmra.mxu0 %v1154
        %v1197 = vpop.f32.mrf.mxu0
        %v1198 = vadd.f32 0.0, %v1197
        %1199 = vmatmul.f32.gmra.mxu0 %v1157
        %v1200 = vpop.f32.mrf.mxu0
        %v1201 = vadd.f32 0.0, %v1200
        %1202 = vmatmul.f32.gmra.mxu0 %v1160
        %v1203 = vpop.f32.mrf.mxu0
        %v1204 = vadd.f32 0.0, %v1203
        %1205 = vmatmul.f32.gmra.mxu0 %v1163
        %v1206 = vpop.f32.mrf.mxu0
        %v1207 = vadd.f32 0.0, %v1206
        %1208 = vmatmul.f32.gmra.mxu0 %v1166
        %v1209 = vpop.f32.mrf.mxu0
        %v1210 = vadd.f32 0.0, %v1209
        %1211 = vdwg.mxu0
        %v1213 = vsel %vm349, %v1124, 0
        %v1216 = vsel %vm349, %v1125, 0
        %v1219 = vsel %vm349, %v1126, 0
        %v1222 = vsel %vm349, %v1127, 0
        %v1225 = vsel %vm349, %v1128, 0
        %v1228 = vsel %vm349, %v1129, 0
        %v1231 = vsel %vm349, %v1130, 0
        %v1234 = vsel %vm349, %v1131, 0
        %v1237 = vsel %vm374, %v1133, 0
        %1239 = vmatpush.msra.mxu0 0.0
        %1240 = vmatpush.msra.mxu0 0.0
        %1241 = vmatpush.msra.mxu0 0.0
        %1242 = vmatpush.msra.mxu0 0.0
        %1243 = vmatpush.msra.mxu0 0.0
        %1244 = vmatpush.msra.mxu0 0.0
        %1245 = vmatpush.msra.mxu0 0.0
        %1246 = vmatpush.msra.mxu0 0.0
        %1247 = vmatpush.msra.mxu0 0.0
        %1248 = vmatpush.msra.mxu0 0.0
        %1249 = vmatpush.msra.mxu0 0.0
        %1250 = vmatpush.msra.mxu0 0.0
        %1251 = vmatpush.msra.mxu0 0.0
        %1252 = vmatpush.msra.mxu0 0.0
        %1253 = vmatpush.msra.mxu0 %v1237
        %1254 = vmatpush.msra.mxu0 %v1132
        %1255 = vmatmul.f32.gmra.mxu0 %v1213
        %v1256 = vpop.f32.mrf.mxu0
        %v1257 = vadd.f32 %v1189, %v1256
        %1258 = vmatmul.f32.gmra.mxu0 %v1216
        %v1259 = vpop.f32.mrf.mxu0
        %v1260 = vadd.f32 %v1192, %v1259
        %1261 = vmatmul.f32.gmra.mxu0 %v1219
        %v1262 = vpop.f32.mrf.mxu0
        %v1263 = vadd.f32 %v1195, %v1262
        %1264 = vmatmul.f32.gmra.mxu0 %v1222
        %v1265 = vpop.f32.mrf.mxu0
        %v1266 = vadd.f32 %v1198, %v1265
        %1267 = vmatmul.f32.gmra.mxu0 %v1225
        %v1268 = vpop.f32.mrf.mxu0
        %v1269 = vadd.f32 %v1201, %v1268
        %1270 = vmatmul.f32.gmra.mxu0 %v1228
        %v1271 = vpop.f32.mrf.mxu0
        %v1272 = vadd.f32 %v1204, %v1271
        %1273 = vmatmul.f32.gmra.mxu0 %v1231
        %v1274 = vpop.f32.mrf.mxu0
        %v1275 = vadd.f32 %v1207, %v1274
        %1276 = vmatmul.f32.gmra.mxu0 %v1234
        %v1277 = vpop.f32.mrf.mxu0
        %v1278 = vadd.f32 %v1210, %v1277
        %1279 = vdwg.mxu0
        %s1280 = scalar_lea.vmem %s280, 16
        %v1281 = vld [vmem:[%s1280] sm:$0xff]
        %v1282 = vld [vmem:[%s1280 + $0x10] sm:$0xff]
        %v1283 = vld [vmem:[%s1280 + $0x20] sm:$0xff]
        %v1284 = vld [vmem:[%s1280 + $0x30] sm:$0xff]
        %v1285 = vld [vmem:[%s1280 + $0x40] sm:$0xff]
        %v1286 = vld [vmem:[%s1280 + $0x50] sm:$0xff]
        %v1287 = vld [vmem:[%s1280 + $0x60] sm:$0xff]
        %v1288 = vld [vmem:[%s1280 + $0x70] sm:$0xff]
        %v1289 = vld [vmem:[%s496] sm:$0xff]
        %v1290 = vld [vmem:[%s496 + $0x8] sm:$0xf]
        %v1292 = vsel %vm349, %v1281, 0
        %v1295 = vsel %vm349, %v1282, 0
        %v1298 = vsel %vm349, %v1283, 0
        %v1301 = vsel %vm349, %v1284, 0
        %v1304 = vsel %vm349, %v1285, 0
        %v1307 = vsel %vm349, %v1286, 0
        %v1310 = vsel %vm349, %v1287, 0
        %v1313 = vsel %vm349, %v1288, 0
        %v1316 = vsel %vm374, %v1290, 0
        %1318 = vmatpush.msra.mxu0 0.0
        %1319 = vmatpush.msra.mxu0 0.0
        %1320 = vmatpush.msra.mxu0 0.0
        %1321 = vmatpush.msra.mxu0 0.0
        %1322 = vmatpush.msra.mxu0 0.0
        %1323 = vmatpush.msra.mxu0 0.0
        %1324 = vmatpush.msra.mxu0 0.0
        %1325 = vmatpush.msra.mxu0 0.0
        %1326 = vmatpush.msra.mxu0 0.0
        %1327 = vmatpush.msra.mxu0 0.0
        %1328 = vmatpush.msra.mxu0 0.0
        %1329 = vmatpush.msra.mxu0 0.0
        %1330 = vmatpush.msra.mxu0 0.0
        %1331 = vmatpush.msra.mxu0 0.0
        %1332 = vmatpush.msra.mxu0 %v1316
        %1333 = vmatpush.msra.mxu0 %v1289
        %1334 = vmatmul.f32.gmra.mxu0 %v1292
        %v1335 = vpop.f32.mrf.mxu0
        %v1336 = vadd.f32 0.0, %v1335
        %1337 = vmatmul.f32.gmra.mxu0 %v1295
        %v1338 = vpop.f32.mrf.mxu0
        %v1339 = vadd.f32 0.0, %v1338
        %1340 = vmatmul.f32.gmra.mxu0 %v1298
        %v1341 = vpop.f32.mrf.mxu0
        %v1342 = vadd.f32 0.0, %v1341
        %1343 = vmatmul.f32.gmra.mxu0 %v1301
        %v1344 = vpop.f32.mrf.mxu0
        %v1345 = vadd.f32 0.0, %v1344
        %1346 = vmatmul.f32.gmra.mxu0 %v1304
        %v1347 = vpop.f32.mrf.mxu0
        %v1348 = vadd.f32 0.0, %v1347
        %1349 = vmatmul.f32.gmra.mxu0 %v1307
        %v1350 = vpop.f32.mrf.mxu0
        %v1351 = vadd.f32 0.0, %v1350
        %1352 = vmatmul.f32.gmra.mxu0 %v1310
        %v1353 = vpop.f32.mrf.mxu0
        %v1354 = vadd.f32 0.0, %v1353
        %1355 = vmatmul.f32.gmra.mxu0 %v1313
        %v1356 = vpop.f32.mrf.mxu0
        %v1357 = vadd.f32 0.0, %v1356
        %1358 = vdwg.mxu0
        %v1359 = vadd.f32 %v1257, %v1336
        %v1360 = vadd.f32 %v1260, %v1339
        %v1361 = vadd.f32 %v1263, %v1342
        %v1362 = vadd.f32 %v1266, %v1345
        %v1363 = vadd.f32 %v1269, %v1348
        %v1364 = vadd.f32 %v1272, %v1351
        %v1365 = vadd.f32 %v1275, %v1354
        %v1366 = vadd.f32 %v1278, %v1357
        %s1367 = scalar_lea.vmem %s280, 160
        %v1368 = vld [vmem:[%s1367] sm:$0xff]
        %v1369 = vld [vmem:[%s1367 + $0x10] sm:$0xff]
        %v1370 = vld [vmem:[%s1367 + $0x20] sm:$0xff]
        %v1371 = vld [vmem:[%s1367 + $0x30] sm:$0xff]
        %v1372 = vld [vmem:[%s1367 + $0x40] sm:$0xff]
        %v1373 = vld [vmem:[%s1367 + $0x50] sm:$0xff]
        %v1374 = vld [vmem:[%s1367 + $0x60] sm:$0xff]
        %v1375 = vld [vmem:[%s1367 + $0x70] sm:$0xff]
        %v1376 = vld [vmem:[%s584] sm:$0xff]
        %v1377 = vld [vmem:[%s584 + $0x8] sm:$0xf]
        %v1379 = vsel %vm349, %v1368, 0
        %v1382 = vsel %vm349, %v1369, 0
        %v1385 = vsel %vm349, %v1370, 0
        %v1388 = vsel %vm349, %v1371, 0
        %v1391 = vsel %vm349, %v1372, 0
        %v1394 = vsel %vm349, %v1373, 0
        %v1397 = vsel %vm349, %v1374, 0
        %v1400 = vsel %vm349, %v1375, 0
        %v1403 = vsel %vm374, %v1377, 0
        %1405 = vmatpush.msra.mxu0 0.0
        %1406 = vmatpush.msra.mxu0 0.0
        %1407 = vmatpush.msra.mxu0 0.0
        %1408 = vmatpush.msra.mxu0 0.0
        %1409 = vmatpush.msra.mxu0 0.0
        %1410 = vmatpush.msra.mxu0 0.0
        %1411 = vmatpush.msra.mxu0 0.0
        %1412 = vmatpush.msra.mxu0 0.0
        %1413 = vmatpush.msra.mxu0 0.0
        %1414 = vmatpush.msra.mxu0 0.0
        %1415 = vmatpush.msra.mxu0 0.0
        %1416 = vmatpush.msra.mxu0 0.0
        %1417 = vmatpush.msra.mxu0 0.0
        %1418 = vmatpush.msra.mxu0 0.0
        %1419 = vmatpush.msra.mxu0 %v1403
        %1420 = vmatpush.msra.mxu0 %v1376
        %1421 = vmatmul.f32.gmra.mxu0 %v1379
        %v1422 = vpop.f32.mrf.mxu0
        %v1423 = vadd.f32 0.0, %v1422
        %1424 = vmatmul.f32.gmra.mxu0 %v1382
        %v1425 = vpop.f32.mrf.mxu0
        %v1426 = vadd.f32 0.0, %v1425
        %1427 = vmatmul.f32.gmra.mxu0 %v1385
        %v1428 = vpop.f32.mrf.mxu0
        %v1429 = vadd.f32 0.0, %v1428
        %1430 = vmatmul.f32.gmra.mxu0 %v1388
        %v1431 = vpop.f32.mrf.mxu0
        %v1432 = vadd.f32 0.0, %v1431
        %1433 = vmatmul.f32.gmra.mxu0 %v1391
        %v1434 = vpop.f32.mrf.mxu0
        %v1435 = vadd.f32 0.0, %v1434
        %1436 = vmatmul.f32.gmra.mxu0 %v1394
        %v1437 = vpop.f32.mrf.mxu0
        %v1438 = vadd.f32 0.0, %v1437
        %1439 = vmatmul.f32.gmra.mxu0 %v1397
        %v1440 = vpop.f32.mrf.mxu0
        %v1441 = vadd.f32 0.0, %v1440
        %1442 = vmatmul.f32.gmra.mxu0 %v1400
        %v1443 = vpop.f32.mrf.mxu0
        %v1444 = vadd.f32 0.0, %v1443
        %1445 = vdwg.mxu0
        %v1446 = vadd.f32 %v1359, %v1423
        %v1447 = vadd.f32 %v1360, %v1426
        %v1448 = vadd.f32 %v1361, %v1429
        %v1449 = vadd.f32 %v1362, %v1432
        %v1450 = vadd.f32 %v1363, %v1435
        %v1451 = vadd.f32 %v1364, %v1438
        %v1452 = vadd.f32 %v1365, %v1441
        %v1453 = vadd.f32 %v1366, %v1444
        %v1454 = vmul.f32 %v1446, %v663
        %v1455 = vmul.f32 %v1447, %v663
        %v1456 = vmul.f32 %v1448, %v663
        %v1457 = vmul.f32 %v1449, %v663
        %v1458 = vmul.f32 %v1450, %v663
        %v1459 = vmul.f32 %v1451, %v663
        %v1460 = vmul.f32 %v1452, %v663
        %v1461 = vmul.f32 %v1453, %v663
        %v1462 = vadd.f32 %v1454, %v672
        %v1463 = vadd.f32 %v1455, %v672
        %v1464 = vadd.f32 %v1456, %v672
        %v1465 = vadd.f32 %v1457, %v672
        %v1466 = vadd.f32 %v1458, %v672
        %v1467 = vadd.f32 %v1459, %v672
        %v1468 = vadd.f32 %v1460, %v672
        %v1469 = vadd.f32 %v1461, %v672
        %v1470 = vmax.f32 %v1462, 0.0
        %v1471 = vmax.f32 %v1463, 0.0
        %v1472 = vmax.f32 %v1464, 0.0
        %v1473 = vmax.f32 %v1465, 0.0
        %v1474 = vmax.f32 %v1466, 0.0
        %v1475 = vmax.f32 %v1467, 0.0
        %v1476 = vmax.f32 %v1468, 0.0
        %v1477 = vmax.f32 %v1469, 0.0
        %1486 = vrot.lane.b32.xlu0 %v1470, 64
        %v1487 = vpop.permute.xlu0 %1486
        %1488 = vrot.lane.b32.xlu0 %v1471, 64
        %v1489 = vpop.permute.xlu0 %1488
        %1490 = vrot.lane.b32.xlu0 %v1472, 64
        %v1491 = vpop.permute.xlu0 %1490
        %1492 = vrot.lane.b32.xlu0 %v1473, 64
        %v1493 = vpop.permute.xlu0 %1492
        %1494 = vrot.lane.b32.xlu0 %v1474, 64
        %v1495 = vpop.permute.xlu0 %1494
        %1496 = vrot.lane.b32.xlu0 %v1475, 64
        %v1497 = vpop.permute.xlu0 %1496
        %1498 = vrot.lane.b32.xlu0 %v1476, 64
        %v1499 = vpop.permute.xlu0 %1498
        %1500 = vrot.lane.b32.xlu0 %v1477, 64
        %v1501 = vpop.permute.xlu0 %1500
        %s1510 = scalar_lea.vmem [#allocation2], 32
        %1511 = vst.msk [vmem:[%s1510] sm:$0xff] %vm721, %v1487
        %1512 = vst.msk [vmem:[%s1510 + $0x20] sm:$0xff] %vm721, %v1489
        %1513 = vst.msk [vmem:[%s1510 + $0x40] sm:$0xff] %vm721, %v1491
        %1514 = vst.msk [vmem:[%s1510 + $0x60] sm:$0xff] %vm721, %v1493
        %1515 = vst.msk [vmem:[%s1510 + $0x80] sm:$0xff] %vm721, %v1495
        %1516 = vst.msk [vmem:[%s1510 + $0xa0] sm:$0xff] %vm721, %v1497
        %1517 = vst.msk [vmem:[%s1510 + $0xc0] sm:$0xff] %vm721, %v1499
        %1518 = vst.msk [vmem:[%s1510 + $0xe0] sm:$0xff] %vm721, %v1501
        %v1519 = vld [vmem:[%s575] sm:$0xff]
        %v1520 = vld [vmem:[%s575 + $0x10] sm:$0xff]
        %v1521 = vld [vmem:[%s575 + $0x20] sm:$0xff]
        %v1522 = vld [vmem:[%s575 + $0x30] sm:$0xff]
        %v1523 = vld [vmem:[%s575 + $0x40] sm:$0xff]
        %v1524 = vld [vmem:[%s575 + $0x50] sm:$0xff]
        %v1525 = vld [vmem:[%s575 + $0x60] sm:$0xff]
        %v1526 = vld [vmem:[%s575 + $0x70] sm:$0xff]
        %v1527 = vld [vmem:[%s1] sm:$0xff]
        %v1528 = vld [vmem:[%s1 + $0x8] sm:$0xf]
        %v1529 = vld [vmem:[%s487 + $0x1] sm:$0xff]
        %v1530 = vld [vmem:[%s487 + $0x11] sm:$0xff]
        %v1531 = vld [vmem:[%s487 + $0x21] sm:$0xff]
        %v1532 = vld [vmem:[%s487 + $0x31] sm:$0xff]
        %v1533 = vld [vmem:[%s487 + $0x41] sm:$0xff]
        %v1534 = vld [vmem:[%s487 + $0x51] sm:$0xff]
        %v1535 = vld [vmem:[%s487 + $0x61] sm:$0xff]
        %v1536 = vld [vmem:[%s487 + $0x71] sm:$0xff]
        %v1537 = vld [vmem:[%s346] sm:$0xff]
        %v1538 = vld [vmem:[%s346 + $0x8] sm:$0xf]
        %v1540 = vsel %vm349, %v1529, 0
        %v1543 = vsel %vm349, %v1530, 0
        %v1546 = vsel %vm349, %v1531, 0
        %v1549 = vsel %vm349, %v1532, 0
        %v1552 = vsel %vm349, %v1533, 0
        %v1555 = vsel %vm349, %v1534, 0
        %v1558 = vsel %vm349, %v1535, 0
        %v1561 = vsel %vm349, %v1536, 0
        %v1564 = vsel %vm374, %v1538, 0
        %1566 = vmatpush.msra.mxu0 0.0
        %1567 = vmatpush.msra.mxu0 0.0
        %1568 = vmatpush.msra.mxu0 0.0
        %1569 = vmatpush.msra.mxu0 0.0
        %1570 = vmatpush.msra.mxu0 0.0
        %1571 = vmatpush.msra.mxu0 0.0
        %1572 = vmatpush.msra.mxu0 0.0
        %1573 = vmatpush.msra.mxu0 0.0
        %1574 = vmatpush.msra.mxu0 0.0
        %1575 = vmatpush.msra.mxu0 0.0
        %1576 = vmatpush.msra.mxu0 0.0
        %1577 = vmatpush.msra.mxu0 0.0
        %1578 = vmatpush.msra.mxu0 0.0
        %1579 = vmatpush.msra.mxu0 0.0
        %1580 = vmatpush.msra.mxu0 %v1564
        %1581 = vmatpush.msra.mxu0 %v1537
        %1582 = vmatmul.f32.gmra.mxu0 %v1540
        %v1583 = vpop.f32.mrf.mxu0
        %v1584 = vadd.f32 0.0, %v1583
        %1585 = vmatmul.f32.gmra.mxu0 %v1543
        %v1586 = vpop.f32.mrf.mxu0
        %v1587 = vadd.f32 0.0, %v1586
        %1588 = vmatmul.f32.gmra.mxu0 %v1546
        %v1589 = vpop.f32.mrf.mxu0
        %v1590 = vadd.f32 0.0, %v1589
        %1591 = vmatmul.f32.gmra.mxu0 %v1549
        %v1592 = vpop.f32.mrf.mxu0
        %v1593 = vadd.f32 0.0, %v1592
        %1594 = vmatmul.f32.gmra.mxu0 %v1552
        %v1595 = vpop.f32.mrf.mxu0
        %v1596 = vadd.f32 0.0, %v1595
        %1597 = vmatmul.f32.gmra.mxu0 %v1555
        %v1598 = vpop.f32.mrf.mxu0
        %v1599 = vadd.f32 0.0, %v1598
        %1600 = vmatmul.f32.gmra.mxu0 %v1558
        %v1601 = vpop.f32.mrf.mxu0
        %v1602 = vadd.f32 0.0, %v1601
        %1603 = vmatmul.f32.gmra.mxu0 %v1561
        %v1604 = vpop.f32.mrf.mxu0
        %v1605 = vadd.f32 0.0, %v1604
        %1606 = vdwg.mxu0
        %v1608 = vsel %vm349, %v1519, 0
        %v1611 = vsel %vm349, %v1520, 0
        %v1614 = vsel %vm349, %v1521, 0
        %v1617 = vsel %vm349, %v1522, 0
        %v1620 = vsel %vm349, %v1523, 0
        %v1623 = vsel %vm349, %v1524, 0
        %v1626 = vsel %vm349, %v1525, 0
        %v1629 = vsel %vm349, %v1526, 0
        %v1632 = vsel %vm374, %v1528, 0
        %1634 = vmatpush.msra.mxu0 0.0
        %1635 = vmatpush.msra.mxu0 0.0
        %1636 = vmatpush.msra.mxu0 0.0
        %1637 = vmatpush.msra.mxu0 0.0
        %1638 = vmatpush.msra.mxu0 0.0
        %1639 = vmatpush.msra.mxu0 0.0
        %1640 = vmatpush.msra.mxu0 0.0
        %1641 = vmatpush.msra.mxu0 0.0
        %1642 = vmatpush.msra.mxu0 0.0
        %1643 = vmatpush.msra.mxu0 0.0
        %1644 = vmatpush.msra.mxu0 0.0
        %1645 = vmatpush.msra.mxu0 0.0
        %1646 = vmatpush.msra.mxu0 0.0
        %1647 = vmatpush.msra.mxu0 0.0
        %1648 = vmatpush.msra.mxu0 %v1632
        %1649 = vmatpush.msra.mxu0 %v1527
        %1650 = vmatmul.f32.gmra.mxu0 %v1608
        %v1651 = vpop.f32.mrf.mxu0
        %v1652 = vadd.f32 %v1584, %v1651
        %1653 = vmatmul.f32.gmra.mxu0 %v1611
        %v1654 = vpop.f32.mrf.mxu0
        %v1655 = vadd.f32 %v1587, %v1654
        %1656 = vmatmul.f32.gmra.mxu0 %v1614
        %v1657 = vpop.f32.mrf.mxu0
        %v1658 = vadd.f32 %v1590, %v1657
        %1659 = vmatmul.f32.gmra.mxu0 %v1617
        %v1660 = vpop.f32.mrf.mxu0
        %v1661 = vadd.f32 %v1593, %v1660
        %1662 = vmatmul.f32.gmra.mxu0 %v1620
        %v1663 = vpop.f32.mrf.mxu0
        %v1664 = vadd.f32 %v1596, %v1663
        %1665 = vmatmul.f32.gmra.mxu0 %v1623
        %v1666 = vpop.f32.mrf.mxu0
        %v1667 = vadd.f32 %v1599, %v1666
        %1668 = vmatmul.f32.gmra.mxu0 %v1626
        %v1669 = vpop.f32.mrf.mxu0
        %v1670 = vadd.f32 %v1602, %v1669
        %1671 = vmatmul.f32.gmra.mxu0 %v1629
        %v1672 = vpop.f32.mrf.mxu0
        %v1673 = vadd.f32 %v1605, %v1672
        %1674 = vdwg.mxu0
        %v1675 = vld [vmem:[%s1367] sm:$0xff]
        %v1676 = vld [vmem:[%s1367 + $0x10] sm:$0xff]
        %v1677 = vld [vmem:[%s1367 + $0x20] sm:$0xff]
        %v1678 = vld [vmem:[%s1367 + $0x30] sm:$0xff]
        %v1679 = vld [vmem:[%s1367 + $0x40] sm:$0xff]
        %v1680 = vld [vmem:[%s1367 + $0x50] sm:$0xff]
        %v1681 = vld [vmem:[%s1367 + $0x60] sm:$0xff]
        %v1682 = vld [vmem:[%s1367 + $0x70] sm:$0xff]
        %v1683 = vld [vmem:[%s496] sm:$0xff]
        %v1684 = vld [vmem:[%s496 + $0x8] sm:$0xf]
        %v1686 = vsel %vm349, %v1675, 0
        %v1689 = vsel %vm349, %v1676, 0
        %v1692 = vsel %vm349, %v1677, 0
        %v1695 = vsel %vm349, %v1678, 0
        %v1698 = vsel %vm349, %v1679, 0
        %v1701 = vsel %vm349, %v1680, 0
        %v1704 = vsel %vm349, %v1681, 0
        %v1707 = vsel %vm349, %v1682, 0
        %v1710 = vsel %vm374, %v1684, 0
        %1712 = vmatpush.msra.mxu0 0.0
        %1713 = vmatpush.msra.mxu0 0.0
        %1714 = vmatpush.msra.mxu0 0.0
        %1715 = vmatpush.msra.mxu0 0.0
        %1716 = vmatpush.msra.mxu0 0.0
        %1717 = vmatpush.msra.mxu0 0.0
        %1718 = vmatpush.msra.mxu0 0.0
        %1719 = vmatpush.msra.mxu0 0.0
        %1720 = vmatpush.msra.mxu0 0.0
        %1721 = vmatpush.msra.mxu0 0.0
        %1722 = vmatpush.msra.mxu0 0.0
        %1723 = vmatpush.msra.mxu0 0.0
        %1724 = vmatpush.msra.mxu0 0.0
        %1725 = vmatpush.msra.mxu0 0.0
        %1726 = vmatpush.msra.mxu0 %v1710
        %1727 = vmatpush.msra.mxu0 %v1683
        %1728 = vmatmul.f32.gmra.mxu0 %v1686
        %v1729 = vpop.f32.mrf.mxu0
        %v1730 = vadd.f32 0.0, %v1729
        %1731 = vmatmul.f32.gmra.mxu0 %v1689
        %v1732 = vpop.f32.mrf.mxu0
        %v1733 = vadd.f32 0.0, %v1732
        %1734 = vmatmul.f32.gmra.mxu0 %v1692
        %v1735 = vpop.f32.mrf.mxu0
        %v1736 = vadd.f32 0.0, %v1735
        %1737 = vmatmul.f32.gmra.mxu0 %v1695
        %v1738 = vpop.f32.mrf.mxu0
        %v1739 = vadd.f32 0.0, %v1738
        %1740 = vmatmul.f32.gmra.mxu0 %v1698
        %v1741 = vpop.f32.mrf.mxu0
        %v1742 = vadd.f32 0.0, %v1741
        %1743 = vmatmul.f32.gmra.mxu0 %v1701
        %v1744 = vpop.f32.mrf.mxu0
        %v1745 = vadd.f32 0.0, %v1744
        %1746 = vmatmul.f32.gmra.mxu0 %v1704
        %v1747 = vpop.f32.mrf.mxu0
        %v1748 = vadd.f32 0.0, %v1747
        %1749 = vmatmul.f32.gmra.mxu0 %v1707
        %v1750 = vpop.f32.mrf.mxu0
        %v1751 = vadd.f32 0.0, %v1750
        %1752 = vdwg.mxu0
        %v1753 = vadd.f32 %v1652, %v1730
        %v1754 = vadd.f32 %v1655, %v1733
        %v1755 = vadd.f32 %v1658, %v1736
        %v1756 = vadd.f32 %v1661, %v1739
        %v1757 = vadd.f32 %v1664, %v1742
        %v1758 = vadd.f32 %v1667, %v1745
        %v1759 = vadd.f32 %v1670, %v1748
        %v1760 = vadd.f32 %v1673, %v1751
        %v1761 = vld [vmem:[%s1280 + $0x1] sm:$0xff]
        %v1762 = vld [vmem:[%s1280 + $0x11] sm:$0xff]
        %v1763 = vld [vmem:[%s1280 + $0x21] sm:$0xff]
        %v1764 = vld [vmem:[%s1280 + $0x31] sm:$0xff]
        %v1765 = vld [vmem:[%s1280 + $0x41] sm:$0xff]
        %v1766 = vld [vmem:[%s1280 + $0x51] sm:$0xff]
        %v1767 = vld [vmem:[%s1280 + $0x61] sm:$0xff]
        %v1768 = vld [vmem:[%s1280 + $0x71] sm:$0xff]
        %v1769 = vld [vmem:[%s584] sm:$0xff]
        %v1770 = vld [vmem:[%s584 + $0x8] sm:$0xf]
        %v1772 = vsel %vm349, %v1761, 0
        %v1775 = vsel %vm349, %v1762, 0
        %v1778 = vsel %vm349, %v1763, 0
        %v1781 = vsel %vm349, %v1764, 0
        %v1784 = vsel %vm349, %v1765, 0
        %v1787 = vsel %vm349, %v1766, 0
        %v1790 = vsel %vm349, %v1767, 0
        %v1793 = vsel %vm349, %v1768, 0
        %v1796 = vsel %vm374, %v1770, 0
        %1798 = vmatpush.msra.mxu0 0.0
        %1799 = vmatpush.msra.mxu0 0.0
        %1800 = vmatpush.msra.mxu0 0.0
        %1801 = vmatpush.msra.mxu0 0.0
        %1802 = vmatpush.msra.mxu0 0.0
        %1803 = vmatpush.msra.mxu0 0.0
        %1804 = vmatpush.msra.mxu0 0.0
        %1805 = vmatpush.msra.mxu0 0.0
        %1806 = vmatpush.msra.mxu0 0.0
        %1807 = vmatpush.msra.mxu0 0.0
        %1808 = vmatpush.msra.mxu0 0.0
        %1809 = vmatpush.msra.mxu0 0.0
        %1810 = vmatpush.msra.mxu0 0.0
        %1811 = vmatpush.msra.mxu0 0.0
        %1812 = vmatpush.msra.mxu0 %v1796
        %1813 = vmatpush.msra.mxu0 %v1769
        %1814 = vmatmul.f32.gmra.mxu0 %v1772
        %v1815 = vpop.f32.mrf.mxu0
        %v1816 = vadd.f32 0.0, %v1815
        %1817 = vmatmul.f32.gmra.mxu0 %v1775
        %v1818 = vpop.f32.mrf.mxu0
        %v1819 = vadd.f32 0.0, %v1818
        %1820 = vmatmul.f32.gmra.mxu0 %v1778
        %v1821 = vpop.f32.mrf.mxu0
        %v1822 = vadd.f32 0.0, %v1821
        %1823 = vmatmul.f32.gmra.mxu0 %v1781
        %v1824 = vpop.f32.mrf.mxu0
        %v1825 = vadd.f32 0.0, %v1824
        %1826 = vmatmul.f32.gmra.mxu0 %v1784
        %v1827 = vpop.f32.mrf.mxu0
        %v1828 = vadd.f32 0.0, %v1827
        %1829 = vmatmul.f32.gmra.mxu0 %v1787
        %v1830 = vpop.f32.mrf.mxu0
        %v1831 = vadd.f32 0.0, %v1830
        %1832 = vmatmul.f32.gmra.mxu0 %v1790
        %v1833 = vpop.f32.mrf.mxu0
        %v1834 = vadd.f32 0.0, %v1833
        %1835 = vmatmul.f32.gmra.mxu0 %v1793
        %v1836 = vpop.f32.mrf.mxu0
        %v1837 = vadd.f32 0.0, %v1836
        %1838 = vdwg.mxu0
        %v1839 = vadd.f32 %v1753, %v1816
        %v1840 = vadd.f32 %v1754, %v1819
        %v1841 = vadd.f32 %v1755, %v1822
        %v1842 = vadd.f32 %v1756, %v1825
        %v1843 = vadd.f32 %v1757, %v1828
        %v1844 = vadd.f32 %v1758, %v1831
        %v1845 = vadd.f32 %v1759, %v1834
        %v1846 = vadd.f32 %v1760, %v1837
        %v1847 = vmul.f32 %v1839, %v663
        %v1848 = vmul.f32 %v1840, %v663
        %v1849 = vmul.f32 %v1841, %v663
        %v1850 = vmul.f32 %v1842, %v663
        %v1851 = vmul.f32 %v1843, %v663
        %v1852 = vmul.f32 %v1844, %v663
        %v1853 = vmul.f32 %v1845, %v663
        %v1854 = vmul.f32 %v1846, %v663
        %v1855 = vadd.f32 %v1847, %v672
        %v1856 = vadd.f32 %v1848, %v672
        %v1857 = vadd.f32 %v1849, %v672
        %v1858 = vadd.f32 %v1850, %v672
        %v1859 = vadd.f32 %v1851, %v672
        %v1860 = vadd.f32 %v1852, %v672
        %v1861 = vadd.f32 %v1853, %v672
        %v1862 = vadd.f32 %v1854, %v672
        %v1863 = vmax.f32 %v1855, 0.0
        %v1864 = vmax.f32 %v1856, 0.0
        %v1865 = vmax.f32 %v1857, 0.0
        %v1866 = vmax.f32 %v1858, 0.0
        %v1867 = vmax.f32 %v1859, 0.0
        %v1868 = vmax.f32 %v1860, 0.0
        %v1869 = vmax.f32 %v1861, 0.0
        %v1870 = vmax.f32 %v1862, 0.0
        %v1879 = vrot.slane %v1863, 7
        %v1880 = vrot.slane %v1864, 7
        %v1881 = vrot.slane %v1865, 7
        %v1882 = vrot.slane %v1866, 7
        %v1883 = vrot.slane %v1867, 7
        %v1884 = vrot.slane %v1868, 7
        %v1885 = vrot.slane %v1869, 7
        %v1886 = vrot.slane %v1870, 7
        %1895 = vst.msk [vmem:[%s1510] sm:$0xfe] %vm1106, %v1879
        %1896 = vst.msk [vmem:[%s1510 + $0x10] sm:$0x1] %vm1108, %v1879
        %1897 = vst.msk [vmem:[%s1510 + $0x20] sm:$0xfe] %vm1106, %v1880
        %1898 = vst.msk [vmem:[%s1510 + $0x30] sm:$0x1] %vm1108, %v1880
        %1899 = vst.msk [vmem:[%s1510 + $0x40] sm:$0xfe] %vm1106, %v1881
        %1900 = vst.msk [vmem:[%s1510 + $0x50] sm:$0x1] %vm1108, %v1881
        %1901 = vst.msk [vmem:[%s1510 + $0x60] sm:$0xfe] %vm1106, %v1882
        %1902 = vst.msk [vmem:[%s1510 + $0x70] sm:$0x1] %vm1108, %v1882
        %1903 = vst.msk [vmem:[%s1510 + $0x80] sm:$0xfe] %vm1106, %v1883
        %1904 = vst.msk [vmem:[%s1510 + $0x90] sm:$0x1] %vm1108, %v1883
        %1905 = vst.msk [vmem:[%s1510 + $0xa0] sm:$0xfe] %vm1106, %v1884
        %1906 = vst.msk [vmem:[%s1510 + $0xb0] sm:$0x1] %vm1108, %v1884
        %1907 = vst.msk [vmem:[%s1510 + $0xc0] sm:$0xfe] %vm1106, %v1885
        %1908 = vst.msk [vmem:[%s1510 + $0xd0] sm:$0x1] %vm1108, %v1885
        %1909 = vst.msk [vmem:[%s1510 + $0xe0] sm:$0xfe] %vm1106, %v1886
        %1910 = vst.msk [vmem:[%s1510 + $0xf0] sm:$0x1] %vm1108, %v1886
        %v1911 = vld [vmem:[#allocation2] sm:$0xff]
        %v1912 = vld [vmem:[#allocation2 + $0x8] sm:$0xff]
        %v1913 = vld [vmem:[#allocation2 + $0x20] sm:$0xff]
        %v1914 = vld [vmem:[#allocation2 + $0x28] sm:$0xff]
        %v1915 = vld [vmem:[#allocation2 + $0x40] sm:$0xff]
        %v1916 = vld [vmem:[#allocation2 + $0x48] sm:$0xff]
        %v1917 = vld [vmem:[#allocation2 + $0x60] sm:$0xff]
        %v1918 = vld [vmem:[#allocation2 + $0x68] sm:$0xff]
        %v1919 = vld [vmem:[#allocation2 + $0x80] sm:$0xff]
        %v1920 = vld [vmem:[#allocation2 + $0x88] sm:$0xff]
        %v1921 = vld [vmem:[#allocation2 + $0xa0] sm:$0xff]
        %v1922 = vld [vmem:[#allocation2 + $0xa8] sm:$0xff]
        %v1923 = vld [vmem:[#allocation2 + $0xc0] sm:$0xff]
        %v1924 = vld [vmem:[#allocation2 + $0xc8] sm:$0xff]
        %v1925 = vld [vmem:[#allocation2 + $0xe0] sm:$0xff]
        %v1926 = vld [vmem:[#allocation2 + $0xe8] sm:$0xff]
        %v1927 = vld [vmem:[#allocation2] sm:$0xfe]
        %v1928 = vld [vmem:[#allocation2 + $0x8] sm:$0xfe]
        %v1929 = vld [vmem:[#allocation2 + $0x10] sm:$0x1]
        %v1930 = vld [vmem:[#allocation2 + $0x18] sm:$0x1]
        %v1931 = vld [vmem:[#allocation2 + $0x20] sm:$0xfe]
        %v1932 = vld [vmem:[#allocation2 + $0x28] sm:$0xfe]
        %v1933 = vld [vmem:[#allocation2 + $0x30] sm:$0x1]
        %v1934 = vld [vmem:[#allocation2 + $0x38] sm:$0x1]
        %v1935 = vld [vmem:[#allocation2 + $0x40] sm:$0xfe]
        %v1936 = vld [vmem:[#allocation2 + $0x48] sm:$0xfe]
        %v1937 = vld [vmem:[#allocation2 + $0x50] sm:$0x1]
        %v1938 = vld [vmem:[#allocation2 + $0x58] sm:$0x1]
        %v1939 = vld [vmem:[#allocation2 + $0x60] sm:$0xfe]
        %v1940 = vld [vmem:[#allocation2 + $0x68] sm:$0xfe]
        %v1941 = vld [vmem:[#allocation2 + $0x70] sm:$0x1]
        %v1942 = vld [vmem:[#allocation2 + $0x78] sm:$0x1]
        %v1943 = vld [vmem:[#allocation2 + $0x80] sm:$0xfe]
        %v1944 = vld [vmem:[#allocation2 + $0x88] sm:$0xfe]
        %v1945 = vld [vmem:[#allocation2 + $0x90] sm:$0x1]
        %v1946 = vld [vmem:[#allocation2 + $0x98] sm:$0x1]
        %v1947 = vld [vmem:[#allocation2 + $0xa0] sm:$0xfe]
        %v1948 = vld [vmem:[#allocation2 + $0xa8] sm:$0xfe]
        %v1949 = vld [vmem:[#allocation2 + $0xb0] sm:$0x1]
        %v1950 = vld [vmem:[#allocation2 + $0xb8] sm:$0x1]
        %v1951 = vld [vmem:[#allocation2 + $0xc0] sm:$0xfe]
        %v1952 = vld [vmem:[#allocation2 + $0xc8] sm:$0xfe]
        %v1953 = vld [vmem:[#allocation2 + $0xd0] sm:$0x1]
        %v1954 = vld [vmem:[#allocation2 + $0xd8] sm:$0x1]
        %v1955 = vld [vmem:[#allocation2 + $0xe0] sm:$0xfe]
        %v1956 = vld [vmem:[#allocation2 + $0xe8] sm:$0xfe]
        %v1957 = vld [vmem:[#allocation2 + $0xf0] sm:$0x1]
        %v1958 = vld [vmem:[#allocation2 + $0xf8] sm:$0x1]
        %vm1991 = vcmask 1046528
        %v1992 = vrot.slane %v1927, 1
        %v1993 = vrot.slane %v1929, 1
        %v1994 = vsel %vm1991, %v1992, %v1993
        %v1995 = vrot.slane %v1928, 1
        %v1996 = vrot.slane %v1930, 1
        %v1997 = vsel %vm1991, %v1995, %v1996
        %v1998 = vrot.slane %v1931, 1
        %v1999 = vrot.slane %v1933, 1
        %v2000 = vsel %vm1991, %v1998, %v1999
        %v2001 = vrot.slane %v1932, 1
        %v2002 = vrot.slane %v1934, 1
        %v2003 = vsel %vm1991, %v2001, %v2002
        %v2004 = vrot.slane %v1935, 1
        %v2005 = vrot.slane %v1937, 1
        %v2006 = vsel %vm1991, %v2004, %v2005
        %v2007 = vrot.slane %v1936, 1
        %v2008 = vrot.slane %v1938, 1
        %v2009 = vsel %vm1991, %v2007, %v2008
        %v2010 = vrot.slane %v1939, 1
        %v2011 = vrot.slane %v1941, 1
        %v2012 = vsel %vm1991, %v2010, %v2011
        %v2013 = vrot.slane %v1940, 1
        %v2014 = vrot.slane %v1942, 1
        %v2015 = vsel %vm1991, %v2013, %v2014
        %v2016 = vrot.slane %v1943, 1
        %v2017 = vrot.slane %v1945, 1
        %v2018 = vsel %vm1991, %v2016, %v2017
        %v2019 = vrot.slane %v1944, 1
        %v2020 = vrot.slane %v1946, 1
        %v2021 = vsel %vm1991, %v2019, %v2020
        %v2022 = vrot.slane %v1947, 1
        %v2023 = vrot.slane %v1949, 1
        %v2024 = vsel %vm1991, %v2022, %v2023
        %v2025 = vrot.slane %v1948, 1
        %v2026 = vrot.slane %v1950, 1
        %v2027 = vsel %vm1991, %v2025, %v2026
        %v2028 = vrot.slane %v1951, 1
        %v2029 = vrot.slane %v1953, 1
        %v2030 = vsel %vm1991, %v2028, %v2029
        %v2031 = vrot.slane %v1952, 1
        %v2032 = vrot.slane %v1954, 1
        %v2033 = vsel %vm1991, %v2031, %v2032
        %v2034 = vrot.slane %v1955, 1
        %v2035 = vrot.slane %v1957, 1
        %v2036 = vsel %vm1991, %v2034, %v2035
        %v2037 = vrot.slane %v1956, 1
        %v2038 = vrot.slane %v1958, 1
        %v2039 = vsel %vm1991, %v2037, %v2038
        %v2056 = vld [vmem:[%s1510] sm:$0xff]
        %v2057 = vld [vmem:[%s1510 + $0x8] sm:$0xff]
        %v2058 = vld [vmem:[%s1510 + $0x20] sm:$0xff]
        %v2059 = vld [vmem:[%s1510 + $0x28] sm:$0xff]
        %v2060 = vld [vmem:[%s1510 + $0x40] sm:$0xff]
        %v2061 = vld [vmem:[%s1510 + $0x48] sm:$0xff]
        %v2062 = vld [vmem:[%s1510 + $0x60] sm:$0xff]
        %v2063 = vld [vmem:[%s1510 + $0x68] sm:$0xff]
        %v2064 = vld [vmem:[%s1510 + $0x80] sm:$0xff]
        %v2065 = vld [vmem:[%s1510 + $0x88] sm:$0xff]
        %v2066 = vld [vmem:[%s1510 + $0xa0] sm:$0xff]
        %v2067 = vld [vmem:[%s1510 + $0xa8] sm:$0xff]
        %v2068 = vld [vmem:[%s1510 + $0xc0] sm:$0xff]
        %v2069 = vld [vmem:[%s1510 + $0xc8] sm:$0xff]
        %v2070 = vld [vmem:[%s1510 + $0xe0] sm:$0xff]
        %v2071 = vld [vmem:[%s1510 + $0xe8] sm:$0xff]
        %v2072 = vld [vmem:[%s1510] sm:$0xfe]
        %v2073 = vld [vmem:[%s1510 + $0x8] sm:$0xfe]
        %v2074 = vld [vmem:[%s1510 + $0x10] sm:$0x1]
        %v2075 = vld [vmem:[%s1510 + $0x18] sm:$0x1]
        %v2076 = vld [vmem:[%s1510 + $0x20] sm:$0xfe]
        %v2077 = vld [vmem:[%s1510 + $0x28] sm:$0xfe]
        %v2078 = vld [vmem:[%s1510 + $0x30] sm:$0x1]
        %v2079 = vld [vmem:[%s1510 + $0x38] sm:$0x1]
        %v2080 = vld [vmem:[%s1510 + $0x40] sm:$0xfe]
        %v2081 = vld [vmem:[%s1510 + $0x48] sm:$0xfe]
        %v2082 = vld [vmem:[%s1510 + $0x50] sm:$0x1]
        %v2083 = vld [vmem:[%s1510 + $0x58] sm:$0x1]
        %v2084 = vld [vmem:[%s1510 + $0x60] sm:$0xfe]
        %v2085 = vld [vmem:[%s1510 + $0x68] sm:$0xfe]
        %v2086 = vld [vmem:[%s1510 + $0x70] sm:$0x1]
        %v2087 = vld [vmem:[%s1510 + $0x78] sm:$0x1]
        %v2088 = vld [vmem:[%s1510 + $0x80] sm:$0xfe]
        %v2089 = vld [vmem:[%s1510 + $0x88] sm:$0xfe]
        %v2090 = vld [vmem:[%s1510 + $0x90] sm:$0x1]
        %v2091 = vld [vmem:[%s1510 + $0x98] sm:$0x1]
        %v2092 = vld [vmem:[%s1510 + $0xa0] sm:$0xfe]
        %v2093 = vld [vmem:[%s1510 + $0xa8] sm:$0xfe]
        %v2094 = vld [vmem:[%s1510 + $0xb0] sm:$0x1]
        %v2095 = vld [vmem:[%s1510 + $0xb8] sm:$0x1]
        %v2096 = vld [vmem:[%s1510 + $0xc0] sm:$0xfe]
        %v2097 = vld [vmem:[%s1510 + $0xc8] sm:$0xfe]
        %v2098 = vld [vmem:[%s1510 + $0xd0] sm:$0x1]
        %v2099 = vld [vmem:[%s1510 + $0xd8] sm:$0x1]
        %v2100 = vld [vmem:[%s1510 + $0xe0] sm:$0xfe]
        %v2101 = vld [vmem:[%s1510 + $0xe8] sm:$0xfe]
        %v2102 = vld [vmem:[%s1510 + $0xf0] sm:$0x1]
        %v2103 = vld [vmem:[%s1510 + $0xf8] sm:$0x1]
        %v2136 = vrot.slane %v2072, 1
        %v2137 = vrot.slane %v2074, 1
        %v2138 = vsel %vm1991, %v2136, %v2137
        %v2139 = vrot.slane %v2073, 1
        %v2140 = vrot.slane %v2075, 1
        %v2141 = vsel %vm1991, %v2139, %v2140
        %v2142 = vrot.slane %v2076, 1
        %v2143 = vrot.slane %v2078, 1
        %v2144 = vsel %vm1991, %v2142, %v2143
        %v2145 = vrot.slane %v2077, 1
        %v2146 = vrot.slane %v2079, 1
        %v2147 = vsel %vm1991, %v2145, %v2146
        %v2148 = vrot.slane %v2080, 1
        %v2149 = vrot.slane %v2082, 1
        %v2150 = vsel %vm1991, %v2148, %v2149
        %v2151 = vrot.slane %v2081, 1
        %v2152 = vrot.slane %v2083, 1
        %v2153 = vsel %vm1991, %v2151, %v2152
        %v2154 = vrot.slane %v2084, 1
        %v2155 = vrot.slane %v2086, 1
        %v2156 = vsel %vm1991, %v2154, %v2155
        %v2157 = vrot.slane %v2085, 1
        %v2158 = vrot.slane %v2087, 1
        %v2159 = vsel %vm1991, %v2157, %v2158
        %v2160 = vrot.slane %v2088, 1
        %v2161 = vrot.slane %v2090, 1
        %v2162 = vsel %vm1991, %v2160, %v2161
        %v2163 = vrot.slane %v2089, 1
        %v2164 = vrot.slane %v2091, 1
        %v2165 = vsel %vm1991, %v2163, %v2164
        %v2166 = vrot.slane %v2092, 1
        %v2167 = vrot.slane %v2094, 1
        %v2168 = vsel %vm1991, %v2166, %v2167
        %v2169 = vrot.slane %v2093, 1
        %v2170 = vrot.slane %v2095, 1
        %v2171 = vsel %vm1991, %v2169, %v2170
        %v2172 = vrot.slane %v2096, 1
        %v2173 = vrot.slane %v2098, 1
        %v2174 = vsel %vm1991, %v2172, %v2173
        %v2175 = vrot.slane %v2097, 1
        %v2176 = vrot.slane %v2099, 1
        %v2177 = vsel %vm1991, %v2175, %v2176
        %v2178 = vrot.slane %v2100, 1
        %v2179 = vrot.slane %v2102, 1
        %v2180 = vsel %vm1991, %v2178, %v2179
        %v2181 = vrot.slane %v2101, 1
        %v2182 = vrot.slane %v2103, 1
        %v2183 = vsel %vm1991, %v2181, %v2182
        %v2200 = vld [vmem:[%s2] sm:$0xff]
        %v2201 = vld [vmem:[%s2 + $0x8] sm:$0xff]
        %v2202 = vld [vmem:[%s2 + $0x10] sm:$0xff]
        %v2203 = vld [vmem:[%s2 + $0x18] sm:$0xff]
        %v2204 = vld [vmem:[%s2 + $0x20] sm:$0xff]
        %v2205 = vld [vmem:[%s2 + $0x28] sm:$0xff]
        %v2206 = vld [vmem:[%s2 + $0x30] sm:$0xff]
        %v2207 = vld [vmem:[%s2 + $0x38] sm:$0xff]
        %v2208 = vld [vmem:[%s2 + $0x40] sm:$0xff]
        %v2209 = vld [vmem:[%s2 + $0x48] sm:$0xff]
        %v2210 = vld [vmem:[%s2 + $0x50] sm:$0xff]
        %v2211 = vld [vmem:[%s2 + $0x58] sm:$0xff]
        %v2212 = vld [vmem:[%s2 + $0x60] sm:$0xff]
        %v2213 = vld [vmem:[%s2 + $0x68] sm:$0xff]
        %v2214 = vld [vmem:[%s2 + $0x70] sm:$0xff]
        %v2215 = vld [vmem:[%s2 + $0x78] sm:$0xff]
        %v2216 = vld [vmem:[%s2 + $0x80] sm:$0xff]
        %v2217 = vld [vmem:[%s2 + $0x88] sm:$0xff]
        %v2218 = vld [vmem:[%s2 + $0x90] sm:$0xff]
        %v2219 = vld [vmem:[%s2 + $0x98] sm:$0xff]
        %v2220 = vld [vmem:[%s2 + $0xa0] sm:$0xff]
        %v2221 = vld [vmem:[%s2 + $0xa8] sm:$0xff]
        %v2222 = vld [vmem:[%s2 + $0xb0] sm:$0xff]
        %v2223 = vld [vmem:[%s2 + $0xb8] sm:$0xff]
        %v2224 = vld [vmem:[%s2 + $0xc0] sm:$0xff]
        %v2225 = vld [vmem:[%s2 + $0xc8] sm:$0xff]
        %v2226 = vld [vmem:[%s2 + $0xd0] sm:$0xff]
        %v2227 = vld [vmem:[%s2 + $0xd8] sm:$0xff]
        %v2228 = vld [vmem:[%s2 + $0xe0] sm:$0xff]
        %v2229 = vld [vmem:[%s2 + $0xe8] sm:$0xff]
        %v2230 = vld [vmem:[%s2 + $0xf0] sm:$0xff]
        %v2231 = vld [vmem:[%s2 + $0xf8] sm:$0xff]
        %v2232 = vld [vmem:[%s2 + $0x100] sm:$0xff]
        %v2233 = vld [vmem:[%s2 + $0x108] sm:$0xff]
        %v2234 = vld [vmem:[%s2 + $0x110] sm:$0xff]
        %v2235 = vld [vmem:[%s2 + $0x118] sm:$0xff]
        %v2236 = vld [vmem:[%s2 + $0x120] sm:$0xff]
        %v2237 = vld [vmem:[%s2 + $0x128] sm:$0xff]
        %v2238 = vld [vmem:[%s2 + $0x130] sm:$0xff]
        %v2239 = vld [vmem:[%s2 + $0x138] sm:$0xff]
        %v2240 = vld [vmem:[%s2 + $0x140] sm:$0xff]
        %v2241 = vld [vmem:[%s2 + $0x148] sm:$0xff]
        %v2242 = vld [vmem:[%s2 + $0x150] sm:$0xff]
        %v2243 = vld [vmem:[%s2 + $0x158] sm:$0xff]
        %v2244 = vld [vmem:[%s2 + $0x160] sm:$0xff]
        %v2245 = vld [vmem:[%s2 + $0x168] sm:$0xff]
        %v2246 = vld [vmem:[%s2 + $0x170] sm:$0xff]
        %v2247 = vld [vmem:[%s2 + $0x178] sm:$0xff]
        %v2248 = vld [vmem:[%s2 + $0x180] sm:$0xff]
        %v2249 = vld [vmem:[%s2 + $0x188] sm:$0xff]
        %v2250 = vld [vmem:[%s2 + $0x190] sm:$0xff]
        %v2251 = vld [vmem:[%s2 + $0x198] sm:$0xff]
        %v2252 = vld [vmem:[%s2 + $0x1a0] sm:$0xff]
        %v2253 = vld [vmem:[%s2 + $0x1a8] sm:$0xff]
        %v2254 = vld [vmem:[%s2 + $0x1b0] sm:$0xff]
        %v2255 = vld [vmem:[%s2 + $0x1b8] sm:$0xff]
        %v2256 = vld [vmem:[%s2 + $0x1c0] sm:$0xff]
        %v2257 = vld [vmem:[%s2 + $0x1c8] sm:$0xff]
        %v2258 = vld [vmem:[%s2 + $0x1d0] sm:$0xff]
        %v2259 = vld [vmem:[%s2 + $0x1d8] sm:$0xff]
        %v2260 = vld [vmem:[%s2 + $0x1e0] sm:$0xff]
        %v2261 = vld [vmem:[%s2 + $0x1e8] sm:$0xff]
        %v2262 = vld [vmem:[%s2 + $0x1f0] sm:$0xff]
        %v2263 = vld [vmem:[%s2 + $0x1f8] sm:$0xff]
        %v2264 = vld [vmem:[%s2 + $0x200] sm:$0xff]
        %v2265 = vld [vmem:[%s2 + $0x208] sm:$0xff]
        %v2266 = vld [vmem:[%s2 + $0x210] sm:$0xff]
        %v2267 = vld [vmem:[%s2 + $0x218] sm:$0xff]
        %v2268 = vld [vmem:[%s2 + $0x220] sm:$0xff]
        %v2269 = vld [vmem:[%s2 + $0x228] sm:$0xff]
        %v2270 = vld [vmem:[%s2 + $0x230] sm:$0xff]
        %v2271 = vld [vmem:[%s2 + $0x238] sm:$0xff]
        %v2272 = vld [vmem:[%s2 + $0x240] sm:$0xff]
        %v2273 = vld [vmem:[%s2 + $0x248] sm:$0xff]
        %v2274 = vld [vmem:[%s2 + $0x250] sm:$0xff]
        %v2275 = vld [vmem:[%s2 + $0x258] sm:$0xff]
        %v2276 = vld [vmem:[%s2 + $0x260] sm:$0xff]
        %v2277 = vld [vmem:[%s2 + $0x268] sm:$0xff]
        %v2278 = vld [vmem:[%s2 + $0x270] sm:$0xff]
        %v2279 = vld [vmem:[%s2 + $0x278] sm:$0xff]
        %v2280 = vld [vmem:[%s2 + $0x280] sm:$0xff]
        %v2281 = vld [vmem:[%s2 + $0x288] sm:$0xff]
        %v2282 = vld [vmem:[%s2 + $0x290] sm:$0xff]
        %v2283 = vld [vmem:[%s2 + $0x298] sm:$0xff]
        %v2284 = vld [vmem:[%s2 + $0x2a0] sm:$0xff]
        %v2285 = vld [vmem:[%s2 + $0x2a8] sm:$0xff]
        %v2286 = vld [vmem:[%s2 + $0x2b0] sm:$0xff]
        %v2287 = vld [vmem:[%s2 + $0x2b8] sm:$0xff]
        %v2288 = vld [vmem:[%s2 + $0x2c0] sm:$0xff]
        %v2289 = vld [vmem:[%s2 + $0x2c8] sm:$0xff]
        %v2290 = vld [vmem:[%s2 + $0x2d0] sm:$0xff]
        %v2291 = vld [vmem:[%s2 + $0x2d8] sm:$0xff]
        %v2292 = vld [vmem:[%s2 + $0x2e0] sm:$0xff]
        %v2293 = vld [vmem:[%s2 + $0x2e8] sm:$0xff]
        %v2294 = vld [vmem:[%s2 + $0x2f0] sm:$0xff]
        %v2295 = vld [vmem:[%s2 + $0x2f8] sm:$0xff]
        %v2296 = vld [vmem:[%s2 + $0x300] sm:$0xff]
        %v2297 = vld [vmem:[%s2 + $0x308] sm:$0xff]
        %v2298 = vld [vmem:[%s2 + $0x310] sm:$0xff]
        %v2299 = vld [vmem:[%s2 + $0x318] sm:$0xff]
        %v2300 = vld [vmem:[%s2 + $0x320] sm:$0xff]
        %v2301 = vld [vmem:[%s2 + $0x328] sm:$0xff]
        %v2302 = vld [vmem:[%s2 + $0x330] sm:$0xff]
        %v2303 = vld [vmem:[%s2 + $0x338] sm:$0xff]
        %v2304 = vld [vmem:[%s2 + $0x340] sm:$0xff]
        %v2305 = vld [vmem:[%s2 + $0x348] sm:$0xff]
        %v2306 = vld [vmem:[%s2 + $0x350] sm:$0xff]
        %v2307 = vld [vmem:[%s2 + $0x358] sm:$0xff]
        %v2308 = vld [vmem:[%s2 + $0x360] sm:$0xff]
        %v2309 = vld [vmem:[%s2 + $0x368] sm:$0xff]
        %v2310 = vld [vmem:[%s2 + $0x370] sm:$0xff]
        %v2311 = vld [vmem:[%s2 + $0x378] sm:$0xff]
        %v2312 = vld [vmem:[%s2 + $0x380] sm:$0xff]
        %v2313 = vld [vmem:[%s2 + $0x388] sm:$0xff]
        %v2314 = vld [vmem:[%s2 + $0x390] sm:$0xff]
        %v2315 = vld [vmem:[%s2 + $0x398] sm:$0xff]
        %v2316 = vld [vmem:[%s2 + $0x3a0] sm:$0xff]
        %v2317 = vld [vmem:[%s2 + $0x3a8] sm:$0xff]
        %v2318 = vld [vmem:[%s2 + $0x3b0] sm:$0xff]
        %v2319 = vld [vmem:[%s2 + $0x3b8] sm:$0xff]
        %v2320 = vld [vmem:[%s2 + $0x3c0] sm:$0xff]
        %v2321 = vld [vmem:[%s2 + $0x3c8] sm:$0xff]
        %v2322 = vld [vmem:[%s2 + $0x3d0] sm:$0xff]
        %v2323 = vld [vmem:[%s2 + $0x3d8] sm:$0xff]
        %v2324 = vld [vmem:[%s2 + $0x3e0] sm:$0xff]
        %v2325 = vld [vmem:[%s2 + $0x3e8] sm:$0xff]
        %v2326 = vld [vmem:[%s2 + $0x3f0] sm:$0xff]
        %v2327 = vld [vmem:[%s2 + $0x3f8] sm:$0xff]
        %2328 = vmatpush.msra.mxu0 %v2215
        %2329 = vmatpush.msra.mxu0 %v2214
        %2330 = vmatpush.msra.mxu0 %v2213
        %2331 = vmatpush.msra.mxu0 %v2212
        %2332 = vmatpush.msra.mxu0 %v2211
        %2333 = vmatpush.msra.mxu0 %v2210
        %2334 = vmatpush.msra.mxu0 %v2209
        %2335 = vmatpush.msra.mxu0 %v2208
        %2336 = vmatpush.msra.mxu0 %v2207
        %2337 = vmatpush.msra.mxu0 %v2206
        %2338 = vmatpush.msra.mxu0 %v2205
        %2339 = vmatpush.msra.mxu0 %v2204
        %2340 = vmatpush.msra.mxu0 %v2203
        %2341 = vmatpush.msra.mxu0 %v2202
        %2342 = vmatpush.msra.mxu0 %v2201
        %2343 = vmatpush.msra.mxu0 %v2200
        %2344 = vmatmul.f32.gmra.mxu0 %v1911
        %v2345 = vpop.f32.mrf.mxu0
        %v2346 = vadd.f32 0.0, %v2345
        %2347 = vmatmul.f32.gmra.mxu0 %v1913
        %v2348 = vpop.f32.mrf.mxu0
        %v2349 = vadd.f32 0.0, %v2348
        %2350 = vmatmul.f32.gmra.mxu0 %v1915
        %v2351 = vpop.f32.mrf.mxu0
        %v2352 = vadd.f32 0.0, %v2351
        %2353 = vmatmul.f32.gmra.mxu0 %v1917
        %v2354 = vpop.f32.mrf.mxu0
        %v2355 = vadd.f32 0.0, %v2354
        %2356 = vmatmul.f32.gmra.mxu0 %v1919
        %v2357 = vpop.f32.mrf.mxu0
        %v2358 = vadd.f32 0.0, %v2357
        %2359 = vmatmul.f32.gmra.mxu0 %v1921
        %v2360 = vpop.f32.mrf.mxu0
        %v2361 = vadd.f32 0.0, %v2360
        %2362 = vmatmul.f32.gmra.mxu0 %v1923
        %v2363 = vpop.f32.mrf.mxu0
        %v2364 = vadd.f32 0.0, %v2363
        %2365 = vmatmul.f32.gmra.mxu0 %v1925
        %v2366 = vpop.f32.mrf.mxu0
        %v2367 = vadd.f32 0.0, %v2366
        %2368 = vdwg.mxu0
        %2369 = vmatpush.msra.mxu0 %v2231
        %2370 = vmatpush.msra.mxu0 %v2230
        %2371 = vmatpush.msra.mxu0 %v2229
        %2372 = vmatpush.msra.mxu0 %v2228
        %2373 = vmatpush.msra.mxu0 %v2227
        %2374 = vmatpush.msra.mxu0 %v2226
        %2375 = vmatpush.msra.mxu0 %v2225
        %2376 = vmatpush.msra.mxu0 %v2224
        %2377 = vmatpush.msra.mxu0 %v2223
        %2378 = vmatpush.msra.mxu0 %v2222
        %2379 = vmatpush.msra.mxu0 %v2221
        %2380 = vmatpush.msra.mxu0 %v2220
        %2381 = vmatpush.msra.mxu0 %v2219
        %2382 = vmatpush.msra.mxu0 %v2218
        %2383 = vmatpush.msra.mxu0 %v2217
        %2384 = vmatpush.msra.mxu0 %v2216
        %2385 = vmatmul.f32.gmra.mxu0 %v1912
        %v2386 = vpop.f32.mrf.mxu0
        %v2387 = vadd.f32 %v2346, %v2386
        %2388 = vmatmul.f32.gmra.mxu0 %v1914
        %v2389 = vpop.f32.mrf.mxu0
        %v2390 = vadd.f32 %v2349, %v2389
        %2391 = vmatmul.f32.gmra.mxu0 %v1916
        %v2392 = vpop.f32.mrf.mxu0
        %v2393 = vadd.f32 %v2352, %v2392
        %2394 = vmatmul.f32.gmra.mxu0 %v1918
        %v2395 = vpop.f32.mrf.mxu0
        %v2396 = vadd.f32 %v2355, %v2395
        %2397 = vmatmul.f32.gmra.mxu0 %v1920
        %v2398 = vpop.f32.mrf.mxu0
        %v2399 = vadd.f32 %v2358, %v2398
        %2400 = vmatmul.f32.gmra.mxu0 %v1922
        %v2401 = vpop.f32.mrf.mxu0
        %v2402 = vadd.f32 %v2361, %v2401
        %2403 = vmatmul.f32.gmra.mxu0 %v1924
        %v2404 = vpop.f32.mrf.mxu0
        %v2405 = vadd.f32 %v2364, %v2404
        %2406 = vmatmul.f32.gmra.mxu0 %v1926
        %v2407 = vpop.f32.mrf.mxu0
        %v2408 = vadd.f32 %v2367, %v2407
        %2409 = vdwg.mxu0
        %2410 = vmatpush.msra.mxu0 %v2247
        %2411 = vmatpush.msra.mxu0 %v2246
        %2412 = vmatpush.msra.mxu0 %v2245
        %2413 = vmatpush.msra.mxu0 %v2244
        %2414 = vmatpush.msra.mxu0 %v2243
        %2415 = vmatpush.msra.mxu0 %v2242
        %2416 = vmatpush.msra.mxu0 %v2241
        %2417 = vmatpush.msra.mxu0 %v2240
        %2418 = vmatpush.msra.mxu0 %v2239
        %2419 = vmatpush.msra.mxu0 %v2238
        %2420 = vmatpush.msra.mxu0 %v2237
        %2421 = vmatpush.msra.mxu0 %v2236
        %2422 = vmatpush.msra.mxu0 %v2235
        %2423 = vmatpush.msra.mxu0 %v2234
        %2424 = vmatpush.msra.mxu0 %v2233
        %2425 = vmatpush.msra.mxu0 %v2232
        %2426 = vmatmul.f32.gmra.mxu0 %v1994
        %v2427 = vpop.f32.mrf.mxu0
        %v2428 = vadd.f32 %v2387, %v2427
        %2429 = vmatmul.f32.gmra.mxu0 %v2000
        %v2430 = vpop.f32.mrf.mxu0
        %v2431 = vadd.f32 %v2390, %v2430
        %2432 = vmatmul.f32.gmra.mxu0 %v2006
        %v2433 = vpop.f32.mrf.mxu0
        %v2434 = vadd.f32 %v2393, %v2433
        %2435 = vmatmul.f32.gmra.mxu0 %v2012
        %v2436 = vpop.f32.mrf.mxu0
        %v2437 = vadd.f32 %v2396, %v2436
        %2438 = vmatmul.f32.gmra.mxu0 %v2018
        %v2439 = vpop.f32.mrf.mxu0
        %v2440 = vadd.f32 %v2399, %v2439
        %2441 = vmatmul.f32.gmra.mxu0 %v2024
        %v2442 = vpop.f32.mrf.mxu0
        %v2443 = vadd.f32 %v2402, %v2442
        %2444 = vmatmul.f32.gmra.mxu0 %v2030
        %v2445 = vpop.f32.mrf.mxu0
        %v2446 = vadd.f32 %v2405, %v2445
        %2447 = vmatmul.f32.gmra.mxu0 %v2036
        %v2448 = vpop.f32.mrf.mxu0
        %v2449 = vadd.f32 %v2408, %v2448
        %2450 = vdwg.mxu0
        %2451 = vmatpush.msra.mxu0 %v2263
        %2452 = vmatpush.msra.mxu0 %v2262
        %2453 = vmatpush.msra.mxu0 %v2261
        %2454 = vmatpush.msra.mxu0 %v2260
        %2455 = vmatpush.msra.mxu0 %v2259
        %2456 = vmatpush.msra.mxu0 %v2258
        %2457 = vmatpush.msra.mxu0 %v2257
        %2458 = vmatpush.msra.mxu0 %v2256
        %2459 = vmatpush.msra.mxu0 %v2255
        %2460 = vmatpush.msra.mxu0 %v2254
        %2461 = vmatpush.msra.mxu0 %v2253
        %2462 = vmatpush.msra.mxu0 %v2252
        %2463 = vmatpush.msra.mxu0 %v2251
        %2464 = vmatpush.msra.mxu0 %v2250
        %2465 = vmatpush.msra.mxu0 %v2249
        %2466 = vmatpush.msra.mxu0 %v2248
        %2467 = vmatmul.f32.gmra.mxu0 %v1997
        %v2468 = vpop.f32.mrf.mxu0
        %v2469 = vadd.f32 %v2428, %v2468
        %2470 = vmatmul.f32.gmra.mxu0 %v2003
        %v2471 = vpop.f32.mrf.mxu0
        %v2472 = vadd.f32 %v2431, %v2471
        %2473 = vmatmul.f32.gmra.mxu0 %v2009
        %v2474 = vpop.f32.mrf.mxu0
        %v2475 = vadd.f32 %v2434, %v2474
        %2476 = vmatmul.f32.gmra.mxu0 %v2015
        %v2477 = vpop.f32.mrf.mxu0
        %v2478 = vadd.f32 %v2437, %v2477
        %2479 = vmatmul.f32.gmra.mxu0 %v2021
        %v2480 = vpop.f32.mrf.mxu0
        %v2481 = vadd.f32 %v2440, %v2480
        %2482 = vmatmul.f32.gmra.mxu0 %v2027
        %v2483 = vpop.f32.mrf.mxu0
        %v2484 = vadd.f32 %v2443, %v2483
        %2485 = vmatmul.f32.gmra.mxu0 %v2033
        %v2486 = vpop.f32.mrf.mxu0
        %v2487 = vadd.f32 %v2446, %v2486
        %2488 = vmatmul.f32.gmra.mxu0 %v2039
        %v2489 = vpop.f32.mrf.mxu0
        %v2490 = vadd.f32 %v2449, %v2489
        %2491 = vdwg.mxu0
        %2492 = vmatpush.msra.mxu0 %v2279
        %2493 = vmatpush.msra.mxu0 %v2278
        %2494 = vmatpush.msra.mxu0 %v2277
        %2495 = vmatpush.msra.mxu0 %v2276
        %2496 = vmatpush.msra.mxu0 %v2275
        %2497 = vmatpush.msra.mxu0 %v2274
        %2498 = vmatpush.msra.mxu0 %v2273
        %2499 = vmatpush.msra.mxu0 %v2272
        %2500 = vmatpush.msra.mxu0 %v2271
        %2501 = vmatpush.msra.mxu0 %v2270
        %2502 = vmatpush.msra.mxu0 %v2269
        %2503 = vmatpush.msra.mxu0 %v2268
        %2504 = vmatpush.msra.mxu0 %v2267
        %2505 = vmatpush.msra.mxu0 %v2266
        %2506 = vmatpush.msra.mxu0 %v2265
        %2507 = vmatpush.msra.mxu0 %v2264
        %2508 = vmatmul.f32.gmra.mxu0 %v2056
        %v2509 = vpop.f32.mrf.mxu0
        %v2510 = vadd.f32 %v2469, %v2509
        %2511 = vmatmul.f32.gmra.mxu0 %v2058
        %v2512 = vpop.f32.mrf.mxu0
        %v2513 = vadd.f32 %v2472, %v2512
        %2514 = vmatmul.f32.gmra.mxu0 %v2060
        %v2515 = vpop.f32.mrf.mxu0
        %v2516 = vadd.f32 %v2475, %v2515
        %2517 = vmatmul.f32.gmra.mxu0 %v2062
        %v2518 = vpop.f32.mrf.mxu0
        %v2519 = vadd.f32 %v2478, %v2518
        %2520 = vmatmul.f32.gmra.mxu0 %v2064
        %v2521 = vpop.f32.mrf.mxu0
        %v2522 = vadd.f32 %v2481, %v2521
        %2523 = vmatmul.f32.gmra.mxu0 %v2066
        %v2524 = vpop.f32.mrf.mxu0
        %v2525 = vadd.f32 %v2484, %v2524
        %2526 = vmatmul.f32.gmra.mxu0 %v2068
        %v2527 = vpop.f32.mrf.mxu0
        %v2528 = vadd.f32 %v2487, %v2527
        %2529 = vmatmul.f32.gmra.mxu0 %v2070
        %v2530 = vpop.f32.mrf.mxu0
        %v2531 = vadd.f32 %v2490, %v2530
        %2532 = vdwg.mxu0
        %2533 = vmatpush.msra.mxu0 %v2295
        %2534 = vmatpush.msra.mxu0 %v2294
        %2535 = vmatpush.msra.mxu0 %v2293
        %2536 = vmatpush.msra.mxu0 %v2292
        %2537 = vmatpush.msra.mxu0 %v2291
        %2538 = vmatpush.msra.mxu0 %v2290
        %2539 = vmatpush.msra.mxu0 %v2289
        %2540 = vmatpush.msra.mxu0 %v2288
        %2541 = vmatpush.msra.mxu0 %v2287
        %2542 = vmatpush.msra.mxu0 %v2286
        %2543 = vmatpush.msra.mxu0 %v2285
        %2544 = vmatpush.msra.mxu0 %v2284
        %2545 = vmatpush.msra.mxu0 %v2283
        %2546 = vmatpush.msra.mxu0 %v2282
        %2547 = vmatpush.msra.mxu0 %v2281
        %2548 = vmatpush.msra.mxu0 %v2280
        %2549 = vmatmul.f32.gmra.mxu0 %v2057
        %v2550 = vpop.f32.mrf.mxu0
        %v2551 = vadd.f32 %v2510, %v2550
        %2552 = vmatmul.f32.gmra.mxu0 %v2059
        %v2553 = vpop.f32.mrf.mxu0
        %v2554 = vadd.f32 %v2513, %v2553
        %2555 = vmatmul.f32.gmra.mxu0 %v2061
        %v2556 = vpop.f32.mrf.mxu0
        %v2557 = vadd.f32 %v2516, %v2556
        %2558 = vmatmul.f32.gmra.mxu0 %v2063
        %v2559 = vpop.f32.mrf.mxu0
        %v2560 = vadd.f32 %v2519, %v2559
        %2561 = vmatmul.f32.gmra.mxu0 %v2065
        %v2562 = vpop.f32.mrf.mxu0
        %v2563 = vadd.f32 %v2522, %v2562
        %2564 = vmatmul.f32.gmra.mxu0 %v2067
        %v2565 = vpop.f32.mrf.mxu0
        %v2566 = vadd.f32 %v2525, %v2565
        %2567 = vmatmul.f32.gmra.mxu0 %v2069
        %v2568 = vpop.f32.mrf.mxu0
        %v2569 = vadd.f32 %v2528, %v2568
        %2570 = vmatmul.f32.gmra.mxu0 %v2071
        %v2571 = vpop.f32.mrf.mxu0
        %v2572 = vadd.f32 %v2531, %v2571
        %2573 = vdwg.mxu0
        %2574 = vmatpush.msra.mxu0 %v2311
        %2575 = vmatpush.msra.mxu0 %v2310
        %2576 = vmatpush.msra.mxu0 %v2309
        %2577 = vmatpush.msra.mxu0 %v2308
        %2578 = vmatpush.msra.mxu0 %v2307
        %2579 = vmatpush.msra.mxu0 %v2306
        %2580 = vmatpush.msra.mxu0 %v2305
        %2581 = vmatpush.msra.mxu0 %v2304
        %2582 = vmatpush.msra.mxu0 %v2303
        %2583 = vmatpush.msra.mxu0 %v2302
        %2584 = vmatpush.msra.mxu0 %v2301
        %2585 = vmatpush.msra.mxu0 %v2300
        %2586 = vmatpush.msra.mxu0 %v2299
        %2587 = vmatpush.msra.mxu0 %v2298
        %2588 = vmatpush.msra.mxu0 %v2297
        %2589 = vmatpush.msra.mxu0 %v2296
        %2590 = vmatmul.f32.gmra.mxu0 %v2138
        %v2591 = vpop.f32.mrf.mxu0
        %v2592 = vadd.f32 %v2551, %v2591
        %2593 = vmatmul.f32.gmra.mxu0 %v2144
        %v2594 = vpop.f32.mrf.mxu0
        %v2595 = vadd.f32 %v2554, %v2594
        %2596 = vmatmul.f32.gmra.mxu0 %v2150
        %v2597 = vpop.f32.mrf.mxu0
        %v2598 = vadd.f32 %v2557, %v2597
        %2599 = vmatmul.f32.gmra.mxu0 %v2156
        %v2600 = vpop.f32.mrf.mxu0
        %v2601 = vadd.f32 %v2560, %v2600
        %2602 = vmatmul.f32.gmra.mxu0 %v2162
        %v2603 = vpop.f32.mrf.mxu0
        %v2604 = vadd.f32 %v2563, %v2603
        %2605 = vmatmul.f32.gmra.mxu0 %v2168
        %v2606 = vpop.f32.mrf.mxu0
        %v2607 = vadd.f32 %v2566, %v2606
        %2608 = vmatmul.f32.gmra.mxu0 %v2174
        %v2609 = vpop.f32.mrf.mxu0
        %v2610 = vadd.f32 %v2569, %v2609
        %2611 = vmatmul.f32.gmra.mxu0 %v2180
        %v2612 = vpop.f32.mrf.mxu0
        %v2613 = vadd.f32 %v2572, %v2612
        %2614 = vdwg.mxu0
        %2615 = vmatpush.msra.mxu0 %v2327
        %2616 = vmatpush.msra.mxu0 %v2326
        %2617 = vmatpush.msra.mxu0 %v2325
        %2618 = vmatpush.msra.mxu0 %v2324
        %2619 = vmatpush.msra.mxu0 %v2323
        %2620 = vmatpush.msra.mxu0 %v2322
        %2621 = vmatpush.msra.mxu0 %v2321
        %2622 = vmatpush.msra.mxu0 %v2320
        %2623 = vmatpush.msra.mxu0 %v2319
        %2624 = vmatpush.msra.mxu0 %v2318
        %2625 = vmatpush.msra.mxu0 %v2317
        %2626 = vmatpush.msra.mxu0 %v2316
        %2627 = vmatpush.msra.mxu0 %v2315
        %2628 = vmatpush.msra.mxu0 %v2314
        %2629 = vmatpush.msra.mxu0 %v2313
        %2630 = vmatpush.msra.mxu0 %v2312
        %2631 = vmatmul.f32.gmra.mxu0 %v2141
        %v2632 = vpop.f32.mrf.mxu0
        %v2633 = vadd.f32 %v2592, %v2632
        %2634 = vmatmul.f32.gmra.mxu0 %v2147
        %v2635 = vpop.f32.mrf.mxu0
        %v2636 = vadd.f32 %v2595, %v2635
        %2637 = vmatmul.f32.gmra.mxu0 %v2153
        %v2638 = vpop.f32.mrf.mxu0
        %v2639 = vadd.f32 %v2598, %v2638
        %2640 = vmatmul.f32.gmra.mxu0 %v2159
        %v2641 = vpop.f32.mrf.mxu0
        %v2642 = vadd.f32 %v2601, %v2641
        %2643 = vmatmul.f32.gmra.mxu0 %v2165
        %v2644 = vpop.f32.mrf.mxu0
        %v2645 = vadd.f32 %v2604, %v2644
        %2646 = vmatmul.f32.gmra.mxu0 %v2171
        %v2647 = vpop.f32.mrf.mxu0
        %v2648 = vadd.f32 %v2607, %v2647
        %2649 = vmatmul.f32.gmra.mxu0 %v2177
        %v2650 = vpop.f32.mrf.mxu0
        %v2651 = vadd.f32 %v2610, %v2650
        %2652 = vmatmul.f32.gmra.mxu0 %v2183
        %v2653 = vpop.f32.mrf.mxu0
        %v2654 = vadd.f32 %v2613, %v2653
        %2655 = vdwg.mxu0
        %v2656 = vperm.slane %v284, 0
        %v2657 = vmul.f32 %v2633, %v2656
        %v2658 = vmul.f32 %v2636, %v2656
        %v2659 = vmul.f32 %v2639, %v2656
        %v2660 = vmul.f32 %v2642, %v2656
        %v2661 = vmul.f32 %v2645, %v2656
        %v2662 = vmul.f32 %v2648, %v2656
        %v2663 = vmul.f32 %v2651, %v2656
        %v2664 = vmul.f32 %v2654, %v2656
        %v2665 = vperm.slane %v285, 0
        %v2666 = vadd.f32 %v2657, %v2665
        %v2667 = vadd.f32 %v2658, %v2665
        %v2668 = vadd.f32 %v2659, %v2665
        %v2669 = vadd.f32 %v2660, %v2665
        %v2670 = vadd.f32 %v2661, %v2665
        %v2671 = vadd.f32 %v2662, %v2665
        %v2672 = vadd.f32 %v2663, %v2665
        %v2673 = vadd.f32 %v2664, %v2665
        %v2674 = vmax.f32 %v2666, 0.0
        %v2675 = vmax.f32 %v2667, 0.0
        %v2676 = vmax.f32 %v2668, 0.0
        %v2677 = vmax.f32 %v2669, 0.0
        %v2678 = vmax.f32 %v2670, 0.0
        %v2679 = vmax.f32 %v2671, 0.0
        %v2680 = vmax.f32 %v2672, 0.0
        %v2681 = vmax.f32 %v2673, 0.0
        %v2682 = vld [vmem:[%s3] sm:$0xff]
        %v2683 = vld [vmem:[%s3 + $0x8] sm:$0xff]
        %v2684 = vld [vmem:[%s3 + $0x10] sm:$0xff]
        %v2685 = vld [vmem:[%s3 + $0x18] sm:$0xff]
        %v2686 = vld [vmem:[%s3 + $0x20] sm:$0xff]
        %v2687 = vld [vmem:[%s3 + $0x28] sm:$0xff]
        %v2688 = vld [vmem:[%s3 + $0x30] sm:$0xff]
        %v2689 = vld [vmem:[%s3 + $0x38] sm:$0xff]
        %v2690 = vperm.slane %v286, 0
        %vm2691 = vcmask 523264
        %v2693 = vsel %vm2691, %v2674, 0
        %v2696 = vsel %vm2691, %v2675, 0
        %v2699 = vsel %vm2691, %v2676, 0
        %v2702 = vsel %vm2691, %v2677, 0
        %v2705 = vsel %vm2691, %v2678, 0
        %v2708 = vsel %vm2691, %v2679, 0
        %v2711 = vsel %vm2691, %v2680, 0
        %v2714 = vsel %vm2691, %v2681, 0
        %2716 = vmatpush.msra.mxu0 0.0
        %2717 = vmatpush.msra.mxu0 0.0
        %2718 = vmatpush.msra.mxu0 0.0
        %2719 = vmatpush.msra.mxu0 0.0
        %2720 = vmatpush.msra.mxu0 0.0
        %2721 = vmatpush.msra.mxu0 0.0
        %2722 = vmatpush.msra.mxu0 0.0
        %2723 = vmatpush.msra.mxu0 0.0
        %2724 = vmatpush.msra.mxu0 %v2689
        %2725 = vmatpush.msra.mxu0 %v2688
        %2726 = vmatpush.msra.mxu0 %v2687
        %2727 = vmatpush.msra.mxu0 %v2686
        %2728 = vmatpush.msra.mxu0 %v2685
        %2729 = vmatpush.msra.mxu0 %v2684
        %2730 = vmatpush.msra.mxu0 %v2683
        %2731 = vmatpush.msra.mxu0 %v2682
        %2732 = vmatmul.f32.gmra.mxu0 %v2693
        %v2733 = vpop.f32.mrf.mxu0
        %v2734 = vadd.f32 %v2690, %v2733
        %2735 = vmatmul.f32.gmra.mxu0 %v2696
        %v2736 = vpop.f32.mrf.mxu0
        %v2737 = vadd.f32 %v2690, %v2736
        %2738 = vmatmul.f32.gmra.mxu0 %v2699
        %v2739 = vpop.f32.mrf.mxu0
        %v2740 = vadd.f32 %v2690, %v2739
        %2741 = vmatmul.f32.gmra.mxu0 %v2702
        %v2742 = vpop.f32.mrf.mxu0
        %v2743 = vadd.f32 %v2690, %v2742
        %2744 = vmatmul.f32.gmra.mxu0 %v2705
        %v2745 = vpop.f32.mrf.mxu0
        %v2746 = vadd.f32 %v2690, %v2745
        %2747 = vmatmul.f32.gmra.mxu0 %v2708
        %v2748 = vpop.f32.mrf.mxu0
        %v2749 = vadd.f32 %v2690, %v2748
        %2750 = vmatmul.f32.gmra.mxu0 %v2711
        %v2751 = vpop.f32.mrf.mxu0
        %v2752 = vadd.f32 %v2690, %v2751
        %2753 = vmatmul.f32.gmra.mxu0 %v2714
        %v2754 = vpop.f32.mrf.mxu0
        %v2755 = vadd.f32 %v2690, %v2754
        %2756 = vdwg.mxu0
        %v2757 = vperm.slane %v287, 0
        %v2758 = vmul.f32 %v2734, %v2757
        %v2759 = vmul.f32 %v2737, %v2757
        %v2760 = vmul.f32 %v2740, %v2757
        %v2761 = vmul.f32 %v2743, %v2757
        %v2762 = vmul.f32 %v2746, %v2757
        %v2763 = vmul.f32 %v2749, %v2757
        %v2764 = vmul.f32 %v2752, %v2757
        %v2765 = vmul.f32 %v2755, %v2757
        %v2766 = vperm.slane %v288, 0
        %v2767 = vadd.f32 %v2758, %v2766
        %v2768 = vadd.f32 %v2759, %v2766
        %v2769 = vadd.f32 %v2760, %v2766
        %v2770 = vadd.f32 %v2761, %v2766
        %v2771 = vadd.f32 %v2762, %v2766
        %v2772 = vadd.f32 %v2763, %v2766
        %v2773 = vadd.f32 %v2764, %v2766
        %v2774 = vadd.f32 %v2765, %v2766
        %v2775 = vmax.f32 %v2767, 0.0
        %v2776 = vmax.f32 %v2768, 0.0
        %v2777 = vmax.f32 %v2769, 0.0
        %v2778 = vmax.f32 %v2770, 0.0
        %v2779 = vmax.f32 %v2771, 0.0
        %v2780 = vmax.f32 %v2772, 0.0
        %v2781 = vmax.f32 %v2773, 0.0
        %v2782 = vmax.f32 %v2774, 0.0
        %v2783 = vperm.slane %v289, 0
        %v2784 = vmul.f32 %v2775, %v2783
        %v2785 = vmul.f32 %v2776, %v2783
        %v2786 = vmul.f32 %v2777, %v2783
        %v2787 = vmul.f32 %v2778, %v2783
        %v2788 = vmul.f32 %v2779, %v2783
        %v2789 = vmul.f32 %v2780, %v2783
        %v2790 = vmul.f32 %v2781, %v2783
        %v2791 = vmul.f32 %v2782, %v2783
        %v2792 = vsel %vm2691, %v2784, 0.0
        %2793 = vadd.xlane.f32.xlu0 %v2792
        %v2794 = vpop.xlane.xlu0 %2793
        %v2795 = vsel %vm2691, %v2785, 0.0
        %2796 = vadd.xlane.f32.xlu0 %v2795
        %v2797 = vpop.xlane.xlu0 %2796
        %v2798 = vsel %vm2691, %v2786, 0.0
        %2799 = vadd.xlane.f32.xlu0 %v2798
        %v2800 = vpop.xlane.xlu0 %2799
        %v2801 = vsel %vm2691, %v2787, 0.0
        %2802 = vadd.xlane.f32.xlu0 %v2801
        %v2803 = vpop.xlane.xlu0 %2802
        %v2804 = vsel %vm2691, %v2788, 0.0
        %2805 = vadd.xlane.f32.xlu0 %v2804
        %v2806 = vpop.xlane.xlu0 %2805
        %v2807 = vsel %vm2691, %v2789, 0.0
        %2808 = vadd.xlane.f32.xlu0 %v2807
        %v2809 = vpop.xlane.xlu0 %2808
        %v2810 = vsel %vm2691, %v2790, 0.0
        %2811 = vadd.xlane.f32.xlu0 %v2810
        %v2812 = vpop.xlane.xlu0 %2811
        %v2813 = vsel %vm2691, %v2791, 0.0
        %2814 = vadd.xlane.f32.xlu0 %v2813
        %v2815 = vpop.xlane.xlu0 %2814
        %s2817 = vtos %v290
        %v2818 = vstv %s2817
        %v2820 = vadd.f32 %v2794, %v2818
        %v2821 = vadd.f32 %v2797, %v2818
        %v2822 = vadd.f32 %v2800, %v2818
        %v2823 = vadd.f32 %v2803, %v2818
        %v2824 = vadd.f32 %v2806, %v2818
        %v2825 = vadd.f32 %v2809, %v2818
        %v2826 = vadd.f32 %v2812, %v2818
        %v2827 = vadd.f32 %v2815, %v2818
        %v2828 = vld [vmem:[%s5] sm:$0xff]
        %v2829 = vld [vmem:[%s5 + $0x8] sm:$0xff]
        %v2830 = vld [vmem:[%s5 + $0x10] sm:$0xff]
        %v2831 = vld [vmem:[%s5 + $0x18] sm:$0xff]
        %v2840 = vlaneseq
        %v2841 = vand.u32 %v2840, 127
        %v2842 = vperm.slane %v2820, %v2841
        %v2843 = vperm.slane %v2821, %v2841
        %v2844 = vperm.slane %v2822, %v2841
        %v2845 = vperm.slane %v2823, %v2841
        %v2846 = vperm.slane %v2824, %v2841
        %v2847 = vperm.slane %v2825, %v2841
        %v2848 = vperm.slane %v2826, %v2841
        %v2849 = vperm.slane %v2827, %v2841
        %vm2850 = vcmask 1041409
        %v2851 = vsel %vm2850, %v2843, %v2842
        %vm2852 = vcmask 1042434
        %v2853 = vsel %vm2852, %v2844, %v2851
        %vm2854 = vcmask 1043459
        %v2855 = vsel %vm2854, %v2845, %v2853
        %vm2856 = vcmask 1044484
        %v2857 = vsel %vm2856, %v2846, %v2855
        %vm2858 = vcmask 1045509
        %v2859 = vsel %vm2858, %v2847, %v2857
        %vm2860 = vcmask 1046534
        %v2861 = vsel %vm2860, %v2848, %v2859
        %vm2862 = vcmask 1047559
        %v2863 = vsel %vm2862, %v2849, %v2861
        %vm2865 = vcmask 64512
        %v2867 = vsel %vm2865, %v2828, 0
        %v2870 = vsel %vm2865, %v2829, 0
        %v2873 = vsel %vm2865, %v2830, 0
        %v2876 = vsel %vm2865, %v2831, 0
        %2878 = vmatpush.msra.mxu0 0.0
        %2879 = vmatpush.msra.mxu0 0.0
        %2880 = vmatpush.msra.mxu0 0.0
        %2881 = vmatpush.msra.mxu0 0.0
        %2882 = vmatpush.msra.mxu0 0.0
        %2883 = vmatpush.msra.mxu0 0.0
        %2884 = vmatpush.msra.mxu0 0.0
        %2885 = vmatpush.msra.mxu0 0.0
        %2886 = vmatpush.msra.mxu0 0.0
        %2887 = vmatpush.msra.mxu0 0.0
        %2888 = vmatpush.msra.mxu0 0.0
        %2889 = vmatpush.msra.mxu0 0.0
        %2890 = vmatpush.msra.mxu0 0.0
        %2891 = vmatpush.msra.mxu0 0.0
        %2892 = vmatpush.msra.mxu0 0.0
        %2893 = vmatpush.msra.mxu0 %v2863
        %2894 = vmatmul.f32.gmra.mxu0 %v2867
        %v2895 = vpop.f32.mrf.mxu0
        %v2896 = vadd.f32 0.0, %v2895
        %2897 = vmatmul.f32.gmra.mxu0 %v2870
        %v2898 = vpop.f32.mrf.mxu0
        %v2899 = vadd.f32 0.0, %v2898
        %2900 = vmatmul.f32.gmra.mxu0 %v2873
        %v2901 = vpop.f32.mrf.mxu0
        %v2902 = vadd.f32 0.0, %v2901
        %2903 = vmatmul.f32.gmra.mxu0 %v2876
        %v2904 = vpop.f32.mrf.mxu0
        %v2905 = vadd.f32 0.0, %v2904
        %2906 = vdwg.mxu0
        %v2907 = vld [vmem:[%s6] sm:$0xff]
        %v2909 = vsel %vm2865, %v2896, 0
        %v2912 = vsel %vm2865, %v2899, 0
        %v2915 = vsel %vm2865, %v2902, 0
        %v2918 = vsel %vm2865, %v2905, 0
        %2920 = vmatpush.msra.mxu0 0.0
        %2921 = vmatpush.msra.mxu0 0.0
        %2922 = vmatpush.msra.mxu0 0.0
        %2923 = vmatpush.msra.mxu0 0.0
        %2924 = vmatpush.msra.mxu0 0.0
        %2925 = vmatpush.msra.mxu0 0.0
        %2926 = vmatpush.msra.mxu0 0.0
        %2927 = vmatpush.msra.mxu0 0.0
        %2928 = vmatpush.msra.mxu0 0.0
        %2929 = vmatpush.msra.mxu0 0.0
        %2930 = vmatpush.msra.mxu0 0.0
        %2931 = vmatpush.msra.mxu0 0.0
        %2932 = vmatpush.msra.mxu0 0.0
        %2933 = vmatpush.msra.mxu0 0.0
        %2934 = vmatpush.msra.mxu0 0.0
        %2935 = vmatpush.msra.mxu0 %v2907
        %2936 = vmatmul.f32.gmra.mxu0 %v2909
        %v2937 = vpop.f32.mrf.mxu0
        %v2938 = vadd.f32 0.0, %v2937
        %2939 = vmatmul.f32.gmra.mxu0 %v2912
        %v2940 = vpop.f32.mrf.mxu0
        %v2941 = vadd.f32 0.0, %v2940
        %2942 = vmatmul.f32.gmra.mxu0 %v2915
        %v2943 = vpop.f32.mrf.mxu0
        %v2944 = vadd.f32 0.0, %v2943
        %2945 = vmatmul.f32.gmra.mxu0 %v2918
        %v2946 = vpop.f32.mrf.mxu0
        %v2947 = vadd.f32 0.0, %v2946
        %2948 = vdwg.mxu0
        %vm2949 = vcmask 261120
        %2950 = vst.msk [vmem:[%s274] sm:$0xff] %vm2949, %v2938
        %2951 = vst.msk [vmem:[%s274 + $0x8] sm:$0xff] %vm2949, %v2941
        %2952 = vst.msk [vmem:[%s274 + $0x10] sm:$0xff] %vm2949, %v2944
        %2953 = vst.msk [vmem:[%s274 + $0x18] sm:$0xff] %vm2949, %v2947
        %s2954 = sand.u32 %s181, 1
        %s2955 = scalar_lea.sflag [#allocation4], %s2954
        %s2956 = sand.u32 %s181, 1
        %s2957 = smul.addr %s2956, 32
        %s2958 = scalar_lea.vmem [#allocation3], %s2957
        // Predicated region
        $region49: #{aleatoric_net_pallas.1} parent=47 // pred_check
          %p2959 = pneg %p191
        $region50: #{aleatoric_net_pallas.1} parent=47 // pred_check_branch
          %2961 = sbr.rel (%p2959) target = $region52
        $region51: #{aleatoric_net_pallas.1} parent=47 // pred_region
          %2963 = vsyncadd %s2955, 0
          %s2964 = smul.addr %s21, 4
          %s2965 = smul.addr %s2964, 8
          %s2966 = scalar_lea.hbm %s7, %s2965
          %s2967 = sshll.u32 %s2958, 4
          %s2968 = int_to_ptr.vmem [resolvable:$true] %s2967
          %s2969 = sshll.u32 %s2966, 4
          %s2970 = int_to_ptr.hbm [resolvable:$true] %s2969
          %2975 = dma.vmem_to_hbm [thread:$0]  %s2968, 512, %s2970, %s2955, 128, 128, 8
        $region52: #{aleatoric_net_pallas.1} parent=47 // pred_fallthru
          _
      $region48: #{aleatoric_net_pallas.1} parent=5 // pred_fallthru
        _
      %p2976 = scmp.le.s32.totalorder 2, %s16
      // Predicated region
      $region53: #{aleatoric_net_pallas.1} parent=5 // pred_check
        %p2977 = pneg %p2976
      $region54: #{aleatoric_net_pallas.1} parent=5 // pred_check_branch
        %2979 = sbr.rel (%p2977) target = $region56
      $region55: #{aleatoric_net_pallas.1} parent=5 // pred_region
        %s2980 = ssub.s32 %s16, 2
        // Predicated region
        $region57: #{aleatoric_net_pallas.1} parent=55 // pred_check
          %p2981 = pneg %p197
        $region58: #{aleatoric_net_pallas.1} parent=55 // pred_check_branch
          %2983 = sbr.rel (%p2981) target = $region60
        $region59: #{aleatoric_net_pallas.1} parent=55 // pred_region
          %s2984 = sand.u32 %s182, 1
          %s2985 = scalar_lea.sflag [#allocation4], %s2984
          %s2986 = sand.u32 %s182, 1
          %s2987 = smul.addr %s2986, 32
          %s2988 = scalar_lea.vmem [#allocation3], %s2987
          %2990 = dma.done %s2985, 512
        $region60: #{aleatoric_net_pallas.1} parent=55 // pred_fallthru
          _
      $region56: #{aleatoric_net_pallas.1} parent=5 // pred_fallthru
        _
    $region6: #{aleatoric_net_pallas.1} parent=1 // loop_footer
      %s20 = sadd.s32 1, %s16
    $region7: #{aleatoric_net_pallas.1} parent=1 // loop_footer_branch
      %15 = sbr.rel target = $region3
    $region8: #{aleatoric_net_pallas.1} parent=1 // loop_exit
      _
    %2991 = vsyncpa [#allocation4], 1
    %s2992 = scalar_lea.sflag [#allocation4], 1
    %2993 = vsyncpa %s2992, 1

</llo_original>
